<compile_context>
chip_gen: v5e
topology: v5e:2x2
jax: 0.10.0
libtpu: 0.0.40
codegen_flags: <defaults>
</compile_context>

<pallas_src>
import math

import jax
import jax.numpy as jnp
from jax import lax
from jax.experimental import pallas as pl
from jax.experimental.pallas import tpu as pltpu

_GN_EPS = 1e-5  # torch.nn.GroupNorm default


def _erf_poly(x):
    # Abramowitz & Stegun 7.1.26 rational approximation (|err| < 1.5e-7),
    # i.e. torch.nn.GELU()'s exact erf-based GELU to float32 precision.
    p = 0.3275911
    a1, a2, a3, a4, a5 = (0.254829592, -0.284496736, 1.421413741,
                          -1.453152027, 1.061405429)
    s = jnp.where(x >= 0.0, 1.0, -1.0)
    a = jnp.abs(x)
    t = 1.0 / (1.0 + p * a)
    poly = ((((a5 * t + a4) * t + a3) * t + a2) * t + a1) * t
    return s * (1.0 - poly * jnp.exp(-a * a))


def _gelu_kernel(x):
    return 0.5 * x * (1.0 + _erf_poly(x * (1.0 / math.sqrt(2.0))))


def _gelu_exact(x):
    return 0.5 * x * (1.0 + jax.scipy.special.erf(x / math.sqrt(2.0)))


# ---------------------------------------------------------------------------
# Fused whole-batch kernel (channels-first, lane-dense):
#   depthwise 7x7 conv + bias + time cond + GroupNorm(1, Cin)
#   -> 3x3 conv (Cin -> Cmid) + bias + GELU + GroupNorm(1, Cmid)
#   -> 3x3 conv (Cmid -> Cout) + bias + residual 1x1 conv (folded)
# ---------------------------------------------------------------------------
def _make_fused_kernel(B, Cin, Cmid, Cout, H, W, Wp, nlanes):
    inv_cnt1 = 1.0 / float(Cin * H * W)
    inv_cnt2 = 1.0 / float(Cmid * H * W)

    # Static lane-roll amounts: shifted[k] == src[k + off] at every valid
    # (interior) flattened position; the 3-wide zero halo guarantees the
    # wrap-around never contaminates valid positions.
    dw_shifts = [(-((di - 3) * Wp + (dj - 3))) % nlanes
                 for di in range(7) for dj in range(7)]
    c3_shifts = [(-((di - 1) * Wp + (dj - 1))) % nlanes
                 for di in range(3) for dj in range(3)]

    def roll(v, s):
        return v if s == 0 else pltpu.roll(v, s, axis=1)

    def kernel(x_ref, mask_ref, wds_ref, bc1_ref, g1_ref, be1_ref,
               w1_ref, b1_ref, g2_ref, be2_ref, w2_ref, wr_ref, b2r_ref,
               o_ref):
        f32 = jnp.float32
        x = x_ref[...]            # (B*Cin, nlanes)  zero-padded, flattened
        mask = mask_ref[...]      # (1, nlanes)      1.0 at valid pixels
        wds = wds_ref[...]        # (B*Cin, 49)      depthwise taps per row

        # ---- stage 1: depthwise 7x7 via 49 lane-rolled MACs ----------------
        acc_a = jnp.zeros(x.shape, f32)
        acc_b = jnp.zeros(x.shape, f32)
        for t in range(49):
            tap = roll(x, dw_shifts[t]) * wds[:, t:t + 1]
            if t % 2 == 0:
                acc_a = acc_a + tap
            else:
                acc_b = acc_b + tap
        h1 = (acc_a + acc_b) + bc1_ref[...]      # + conv bias + time cond

        # ---- GroupNorm(num_groups=1) per sample, one-pass masked stats -----
        def group_norm(hfull, nch, inv_count, g_col, be_col):
            hm = hfull * mask
            row_s1 = jnp.sum(hm, axis=1, keepdims=True)        # (B*nch, 1)
            row_s2 = jnp.sum(hm * hm, axis=1, keepdims=True)
            rows = lax.broadcasted_iota(jnp.int32, (B * nch, 1), 0)
            scale = jnp.zeros((B * nch, 1), f32)
            shift = jnp.zeros((B * nch, 1), f32)
            for b in range(B):
                inb = ((rows >= b * nch) & (rows < (b + 1) * nch)).astype(f32)
                s1 = jnp.sum(row_s1 * inb)
                s2 = jnp.sum(row_s2 * inb)
                mu = s1 * inv_count
                var = s2 * inv_count - mu * mu          # one-pass E[x^2]-E[x]^2
                r = lax.rsqrt(var + _GN_EPS)
                scale = scale + inb * r
                shift = shift + inb * (-mu * r)
            scale = scale * g_col
            shift = shift * g_col + be_col
            # re-mask so the 1-px halo read by the next conv's rolls is zero
            return (hfull * scale + shift) * mask

        h1n = group_norm(h1, Cin, inv_cnt1, g1_ref[...], be1_ref[...])

        # ---- stage 2: 3x3 conv Cin->Cmid, 9 accumulated block-diag matmuls -
        acc2 = jnp.dot(w1_ref[0], roll(h1n, c3_shifts[0]),
                       preferred_element_type=f32)
        for t in range(1, 9):
            acc2 = acc2 + jnp.dot(w1_ref[t], roll(h1n, c3_shifts[t]),
                                  preferred_element_type=f32)
        h2 = _gelu_kernel(acc2 + b1_ref[...])
        h2n = group_norm(h2, Cmid, inv_cnt2, g2_ref[...], be2_ref[...])

        # ---- stage 3: 3x3 conv Cmid->Cout + residual 1x1 conv (folded) -----
        acc3 = jnp.dot(wr_ref[...], x, preferred_element_type=f32)  # residual
        for t in range(9):
            acc3 = acc3 + jnp.dot(w2_ref[t], roll(h2n, c3_shifts[t]),
                                  preferred_element_type=f32)
        o_ref[...] = (acc3 + b2r_ref[...]).astype(o_ref.dtype)

    return kernel


def convnext_block(x_nchw, time_emb, p):
    """ConvNextBlock forward.  x_nchw: (B, Cin, H, W); time_emb: (B, Tdim)."""
    x = x_nchw.astype(jnp.float32)                       # stays channels-first
    b, cin, h, w = x.shape
    cmid = p["w1"].shape[2]
    cout = p["w2"].shape[2]
    hp, wp = h + 6, w + 6
    nflat = hp * wp
    nlanes = ((nflat + 127) // 128) * 128                # lane-dense width

    # Time conditioning: tiny, plain XLA, folded into the stage-1 bias column.
    cond = _gelu_exact(time_emb.astype(jnp.float32)) @ p["wt"] + p["bt"]

    # Zero-pad ONCE (7x7 'same' halo) and flatten spatial onto the lane axis.
    xpad = jnp.pad(x, ((0, 0), (0, 0), (3, 3), (3, 3)))  # (B, Cin, Hp, Wp)
    xflat = jnp.pad(xpad.reshape(b, cin, nflat),
                    ((0, 0), (0, 0), (0, nlanes - nflat))
                    ).reshape(b * cin, nlanes)

    mask2d = jnp.zeros((hp, wp), jnp.float32).at[3:3 + h, 3:3 + w].set(1.0)
    mask = jnp.pad(mask2d.reshape(1, nflat), ((0, 0), (0, nlanes - nflat)))

    def bcol(v):                                         # (1, C) -> (B*C, 1)
        return jnp.tile(v.reshape(1, -1), (b, 1)).reshape(-1, 1)

    wds_t = jnp.tile(p["wds"].T, (b, 1))                 # (B*Cin, 49)
    bc1_col = (jnp.tile(p["bds"], (b, 1)) + cond).reshape(b * cin, 1)

    # Block-diagonal (over batch) conv weights so the whole batch rides one
    # MXU contraction per tap; residual 1x1 conv likewise.
    eye_b = jnp.eye(b, dtype=jnp.float32)
    w1bd = jnp.stack([jnp.kron(eye_b, p["w1"][t].T) for t in range(9)])
    w2bd = jnp.stack([jnp.kron(eye_b, p["w2"][t].T) for t in range(9)])
    wrbd = jnp.kron(eye_b, p["wr"].T)

    out = pl.pallas_call(
        _make_fused_kernel(b, cin, cmid, cout, h, w, wp, nlanes),
        out_shape=jax.ShapeDtypeStruct((b * cout, nlanes), jnp.float32),
        compiler_params=pltpu.CompilerParams(
            vmem_limit_bytes=32 * 1024 * 1024),
    )(xflat, mask, wds_t, bc1_col, bcol(p["g1"]), bcol(p["be1"]),
      w1bd, bcol(p["b1"]), bcol(p["g2"]), bcol(p["be2"]),
      w2bd, wrbd, bcol(p["b2"] + p["br"]))

    # Lane-dense kernel output -> extract the valid interior (cheap XLA slice).
    out = out[:, :nflat].reshape(b, cout, hp, wp)[:, :, 3:3 + h, 3:3 + w]
    return out                                           # NCHW, no transpose


# ---------------------------------------------------------------------------
# pure-JAX reference (lax.conv + exact erf) for an in-script sanity check
# ---------------------------------------------------------------------------
def convnext_block_reference(x_nchw, time_emb, p):
    x = jnp.transpose(x_nchw, (0, 2, 3, 1)).astype(jnp.float32)
    cin = x.shape[-1]
    cmid = p["w1"].shape[2]
    cout = p["w2"].shape[2]

    def gn(v, gamma, beta):
        mu = jnp.mean(v, axis=(1, 2, 3), keepdims=True)
        var = jnp.mean(jnp.square(v - mu), axis=(1, 2, 3), keepdims=True)
        return ((v - mu) * lax.rsqrt(var + _GN_EPS)
                * gamma.reshape(1, 1, 1, -1) + beta.reshape(1, 1, 1, -1))

    dn = ("NHWC", "HWIO", "NHWC")
    hh = lax.conv_general_dilated(
        x, p["wds"].reshape(7, 7, 1, cin), (1, 1), ((3, 3), (3, 3)),
        dimension_numbers=dn, feature_group_count=cin)
    hh = hh + p["bds"].reshape(1, 1, 1, cin)
    cond = _gelu_exact(time_emb.astype(jnp.float32)) @ p["wt"] + p["bt"]
    hh = hh + cond[:, None, None, :]
    hh = gn(hh, p["g1"], p["be1"])
    hh = lax.conv_general_dilated(hh, p["w1"].reshape(3, 3, cin, cmid),
                                  (1, 1), ((1, 1), (1, 1)),
                                  dimension_numbers=dn)
    hh = _gelu_exact(hh + p["b1"].reshape(1, 1, 1, cmid))
    hh = gn(hh, p["g2"], p["be2"])
    hh = lax.conv_general_dilated(hh, p["w2"].reshape(3, 3, cmid, cout),
                                  (1, 1), ((1, 1), (1, 1)),
                                  dimension_numbers=dn)
    hh = hh + p["b2"].reshape(1, 1, 1, cout)
    res = jnp.einsum("bhwc,co->bhwo", x, p["wr"]) + p["br"].reshape(1, 1, 1, cout)
    return jnp.transpose(hh + res, (0, 3, 1, 2))


if __name__ == "__main__":
    # ConvNextBlock(in_channels=4, out_channels=8, time_embedding_dim=32,
    #               channel_scale_factor=2, normalize=True)
    B, Cin, Cout, H, W = 2, 4, 8, 16, 16
    Cmid = Cout * 2
    Tdim = 32

    key = jax.random.PRNGKey(0)
    ks = jax.random.split(key, 16)

    def rnd(k, shape, scale=0.1):
        return scale * jax.random.normal(k, shape, dtype=jnp.float32)

    params = {
        "wds": rnd(ks[0], (49, Cin)),          # depthwise 7x7 taps (row-major)
        "bds": rnd(ks[1], (1, Cin)),
        "wt": rnd(ks[2], (Tdim, Cin)),         # time_projection Linear
        "bt": rnd(ks[3], (1, Cin)),
        "g1": 1.0 + rnd(ks[4], (1, Cin)),      # GroupNorm(1, Cin) affine
        "be1": rnd(ks[5], (1, Cin)),
        "w1": rnd(ks[6], (9, Cin, Cmid)),      # 3x3 conv taps (row-major)
        "b1": rnd(ks[7], (1, Cmid)),
        "g2": 1.0 + rnd(ks[8], (1, Cmid)),     # GroupNorm(1, Cmid) affine
        "be2": rnd(ks[9], (1, Cmid)),
        "w2": rnd(ks[10], (9, Cmid, Cout)),    # 3x3 conv taps (row-major)
        "b2": rnd(ks[11], (1, Cout)),
        "wr": rnd(ks[12], (Cin, Cout)),        # residual 1x1 conv
        "br": rnd(ks[13], (1, Cout)),
    }

    x = jax.random.normal(ks[14], (B, Cin, H, W), dtype=jnp.float32)      # NCHW
    time_emb = jax.random.normal(ks[15], (B, Tdim), dtype=jnp.float32)

    out = jax.block_until_ready(convnext_block(x, time_emb, params))
    ref = jax.block_until_ready(convnext_block_reference(x, time_emb, params))

    assert out.shape == (B, Cout, H, W), out.shape
    max_err = float(jnp.max(jnp.abs(out - ref)))
    assert max_err < 5e-3, f"max abs error {max_err}"
    print("KERNEL_OK")
</pallas_src>

<mosaic_0001>
module attributes {stable_mosaic.version = 11 : i64} {
  func.func @kernel(%arg0: memref<8x512xf32, #tpu.memory_space<vmem>>, %arg1: memref<1x512xf32, #tpu.memory_space<vmem>>, %arg2: memref<8x49xf32, #tpu.memory_space<vmem>>, %arg3: memref<8x1xf32, #tpu.memory_space<vmem>>, %arg4: memref<8x1xf32, #tpu.memory_space<vmem>>, %arg5: memref<8x1xf32, #tpu.memory_space<vmem>>, %arg6: memref<9x32x8xf32, #tpu.memory_space<vmem>>, %arg7: memref<32x1xf32, #tpu.memory_space<vmem>>, %arg8: memref<32x1xf32, #tpu.memory_space<vmem>>, %arg9: memref<32x1xf32, #tpu.memory_space<vmem>>, %arg10: memref<9x16x32xf32, #tpu.memory_space<vmem>>, %arg11: memref<16x8xf32, #tpu.memory_space<vmem>>, %arg12: memref<16x1xf32, #tpu.memory_space<vmem>>, %arg13: memref<16x512xf32, #tpu.memory_space<vmem>>) attributes {dimension_semantics = [], scalar_prefetch = 0 : i64, scratch_operands = 0 : i64, tpu.core_type = #tpu.core_type<tc>} {
    %c0 = arith.constant 0 : index
    %c0_0 = arith.constant 0 : index
    %0 = vector.load %arg0[%c0, %c0_0] : memref<8x512xf32, #tpu.memory_space<vmem>>, vector<8x512xf32>
    %c0_1 = arith.constant 0 : index
    %c0_2 = arith.constant 0 : index
    %1 = vector.load %arg1[%c0_1, %c0_2] : memref<1x512xf32, #tpu.memory_space<vmem>>, vector<1x512xf32>
    %c0_3 = arith.constant 0 : index
    %c0_4 = arith.constant 0 : index
    %2 = vector.load %arg2[%c0_3, %c0_4] : memref<8x49xf32, #tpu.memory_space<vmem>>, vector<8x49xf32>
    %cst = arith.constant 0.000000e+00 : f32
    %3 = vector.broadcast %cst : f32 to vector<8x512xf32>
    %cst_5 = arith.constant 0.000000e+00 : f32
    %4 = vector.broadcast %cst_5 : f32 to vector<8x512xf32>
    %c69_i32 = arith.constant 69 : i32
    %5 = tpu.dynamic_rotate %0 by %c69_i32 dim 1 : vector<8x512xf32>, i32 -> vector<8x512xf32>
    %6 = vector.extract_strided_slice %2 {offsets = [0, 0], sizes = [8, 1], strides = [1, 1]} : vector<8x49xf32> to vector<8x1xf32>
    %7 = vector.broadcast %6 : vector<8x1xf32> to vector<8x512xf32>
    %8 = arith.mulf %5, %7 : vector<8x512xf32>
    %9 = arith.addf %3, %8 : vector<8x512xf32>
    %c68_i32 = arith.constant 68 : i32
    %10 = tpu.dynamic_rotate %0 by %c68_i32 dim 1 : vector<8x512xf32>, i32 -> vector<8x512xf32>
    %11 = vector.extract_strided_slice %2 {offsets = [0, 1], sizes = [8, 1], strides = [1, 1]} : vector<8x49xf32> to vector<8x1xf32>
    %12 = vector.broadcast %11 : vector<8x1xf32> to vector<8x512xf32>
    %13 = arith.mulf %10, %12 : vector<8x512xf32>
    %14 = arith.addf %4, %13 : vector<8x512xf32>
    %c67_i32 = arith.constant 67 : i32
    %15 = tpu.dynamic_rotate %0 by %c67_i32 dim 1 : vector<8x512xf32>, i32 -> vector<8x512xf32>
    %16 = vector.extract_strided_slice %2 {offsets = [0, 2], sizes = [8, 1], strides = [1, 1]} : vector<8x49xf32> to vector<8x1xf32>
    %17 = vector.broadcast %16 : vector<8x1xf32> to vector<8x512xf32>
    %18 = arith.mulf %15, %17 : vector<8x512xf32>
    %19 = arith.addf %9, %18 : vector<8x512xf32>
    %c66_i32 = arith.constant 66 : i32
    %20 = tpu.dynamic_rotate %0 by %c66_i32 dim 1 : vector<8x512xf32>, i32 -> vector<8x512xf32>
    %21 = vector.extract_strided_slice %2 {offsets = [0, 3], sizes = [8, 1], strides = [1, 1]} : vector<8x49xf32> to vector<8x1xf32>
    %22 = vector.broadcast %21 : vector<8x1xf32> to vector<8x512xf32>
    %23 = arith.mulf %20, %22 : vector<8x512xf32>
    %24 = arith.addf %14, %23 : vector<8x512xf32>
    %c65_i32 = arith.constant 65 : i32
    %25 = tpu.dynamic_rotate %0 by %c65_i32 dim 1 : vector<8x512xf32>, i32 -> vector<8x512xf32>
    %26 = vector.extract_strided_slice %2 {offsets = [0, 4], sizes = [8, 1], strides = [1, 1]} : vector<8x49xf32> to vector<8x1xf32>
    %27 = vector.broadcast %26 : vector<8x1xf32> to vector<8x512xf32>
    %28 = arith.mulf %25, %27 : vector<8x512xf32>
    %29 = arith.addf %19, %28 : vector<8x512xf32>
    %c64_i32 = arith.constant 64 : i32
    %30 = tpu.dynamic_rotate %0 by %c64_i32 dim 1 : vector<8x512xf32>, i32 -> vector<8x512xf32>
    %31 = vector.extract_strided_slice %2 {offsets = [0, 5], sizes = [8, 1], strides = [1, 1]} : vector<8x49xf32> to vector<8x1xf32>
    %32 = vector.broadcast %31 : vector<8x1xf32> to vector<8x512xf32>
    %33 = arith.mulf %30, %32 : vector<8x512xf32>
    %34 = arith.addf %24, %33 : vector<8x512xf32>
    %c63_i32 = arith.constant 63 : i32
    %35 = tpu.dynamic_rotate %0 by %c63_i32 dim 1 : vector<8x512xf32>, i32 -> vector<8x512xf32>
    %36 = vector.extract_strided_slice %2 {offsets = [0, 6], sizes = [8, 1], strides = [1, 1]} : vector<8x49xf32> to vector<8x1xf32>
    %37 = vector.broadcast %36 : vector<8x1xf32> to vector<8x512xf32>
    %38 = arith.mulf %35, %37 : vector<8x512xf32>
    %39 = arith.addf %29, %38 : vector<8x512xf32>
    %c47_i32 = arith.constant 47 : i32
    %40 = tpu.dynamic_rotate %0 by %c47_i32 dim 1 : vector<8x512xf32>, i32 -> vector<8x512xf32>
    %41 = vector.extract_strided_slice %2 {offsets = [0, 7], sizes = [8, 1], strides = [1, 1]} : vector<8x49xf32> to vector<8x1xf32>
    %42 = vector.broadcast %41 : vector<8x1xf32> to vector<8x512xf32>
    %43 = arith.mulf %40, %42 : vector<8x512xf32>
    %44 = arith.addf %34, %43 : vector<8x512xf32>
    %c46_i32 = arith.constant 46 : i32
    %45 = tpu.dynamic_rotate %0 by %c46_i32 dim 1 : vector<8x512xf32>, i32 -> vector<8x512xf32>
    %46 = vector.extract_strided_slice %2 {offsets = [0, 8], sizes = [8, 1], strides = [1, 1]} : vector<8x49xf32> to vector<8x1xf32>
    %47 = vector.broadcast %46 : vector<8x1xf32> to vector<8x512xf32>
    %48 = arith.mulf %45, %47 : vector<8x512xf32>
    %49 = arith.addf %39, %48 : vector<8x512xf32>
    %c45_i32 = arith.constant 45 : i32
    %50 = tpu.dynamic_rotate %0 by %c45_i32 dim 1 : vector<8x512xf32>, i32 -> vector<8x512xf32>
    %51 = vector.extract_strided_slice %2 {offsets = [0, 9], sizes = [8, 1], strides = [1, 1]} : vector<8x49xf32> to vector<8x1xf32>
    %52 = vector.broadcast %51 : vector<8x1xf32> to vector<8x512xf32>
    %53 = arith.mulf %50, %52 : vector<8x512xf32>
    %54 = arith.addf %44, %53 : vector<8x512xf32>
    %c44_i32 = arith.constant 44 : i32
    %55 = tpu.dynamic_rotate %0 by %c44_i32 dim 1 : vector<8x512xf32>, i32 -> vector<8x512xf32>
    %56 = vector.extract_strided_slice %2 {offsets = [0, 10], sizes = [8, 1], strides = [1, 1]} : vector<8x49xf32> to vector<8x1xf32>
    %57 = vector.broadcast %56 : vector<8x1xf32> to vector<8x512xf32>
    %58 = arith.mulf %55, %57 : vector<8x512xf32>
    %59 = arith.addf %49, %58 : vector<8x512xf32>
    %c43_i32 = arith.constant 43 : i32
    %60 = tpu.dynamic_rotate %0 by %c43_i32 dim 1 : vector<8x512xf32>, i32 -> vector<8x512xf32>
    %61 = vector.extract_strided_slice %2 {offsets = [0, 11], sizes = [8, 1], strides = [1, 1]} : vector<8x49xf32> to vector<8x1xf32>
    %62 = vector.broadcast %61 : vector<8x1xf32> to vector<8x512xf32>
    %63 = arith.mulf %60, %62 : vector<8x512xf32>
    %64 = arith.addf %54, %63 : vector<8x512xf32>
    %c42_i32 = arith.constant 42 : i32
    %65 = tpu.dynamic_rotate %0 by %c42_i32 dim 1 : vector<8x512xf32>, i32 -> vector<8x512xf32>
    %66 = vector.extract_strided_slice %2 {offsets = [0, 12], sizes = [8, 1], strides = [1, 1]} : vector<8x49xf32> to vector<8x1xf32>
    %67 = vector.broadcast %66 : vector<8x1xf32> to vector<8x512xf32>
    %68 = arith.mulf %65, %67 : vector<8x512xf32>
    %69 = arith.addf %59, %68 : vector<8x512xf32>
    %c41_i32 = arith.constant 41 : i32
    %70 = tpu.dynamic_rotate %0 by %c41_i32 dim 1 : vector<8x512xf32>, i32 -> vector<8x512xf32>
    %71 = vector.extract_strided_slice %2 {offsets = [0, 13], sizes = [8, 1], strides = [1, 1]} : vector<8x49xf32> to vector<8x1xf32>
    %72 = vector.broadcast %71 : vector<8x1xf32> to vector<8x512xf32>
    %73 = arith.mulf %70, %72 : vector<8x512xf32>
    %74 = arith.addf %64, %73 : vector<8x512xf32>
    %c25_i32 = arith.constant 25 : i32
    %75 = tpu.dynamic_rotate %0 by %c25_i32 dim 1 : vector<8x512xf32>, i32 -> vector<8x512xf32>
    %76 = vector.extract_strided_slice %2 {offsets = [0, 14], sizes = [8, 1], strides = [1, 1]} : vector<8x49xf32> to vector<8x1xf32>
    %77 = vector.broadcast %76 : vector<8x1xf32> to vector<8x512xf32>
    %78 = arith.mulf %75, %77 : vector<8x512xf32>
    %79 = arith.addf %69, %78 : vector<8x512xf32>
    %c24_i32 = arith.constant 24 : i32
    %80 = tpu.dynamic_rotate %0 by %c24_i32 dim 1 : vector<8x512xf32>, i32 -> vector<8x512xf32>
    %81 = vector.extract_strided_slice %2 {offsets = [0, 15], sizes = [8, 1], strides = [1, 1]} : vector<8x49xf32> to vector<8x1xf32>
    %82 = vector.broadcast %81 : vector<8x1xf32> to vector<8x512xf32>
    %83 = arith.mulf %80, %82 : vector<8x512xf32>
    %84 = arith.addf %74, %83 : vector<8x512xf32>
    %c23_i32 = arith.constant 23 : i32
    %85 = tpu.dynamic_rotate %0 by %c23_i32 dim 1 : vector<8x512xf32>, i32 -> vector<8x512xf32>
    %86 = vector.extract_strided_slice %2 {offsets = [0, 16], sizes = [8, 1], strides = [1, 1]} : vector<8x49xf32> to vector<8x1xf32>
    %87 = vector.broadcast %86 : vector<8x1xf32> to vector<8x512xf32>
    %88 = arith.mulf %85, %87 : vector<8x512xf32>
    %89 = arith.addf %79, %88 : vector<8x512xf32>
    %c22_i32 = arith.constant 22 : i32
    %90 = tpu.dynamic_rotate %0 by %c22_i32 dim 1 : vector<8x512xf32>, i32 -> vector<8x512xf32>
    %91 = vector.extract_strided_slice %2 {offsets = [0, 17], sizes = [8, 1], strides = [1, 1]} : vector<8x49xf32> to vector<8x1xf32>
    %92 = vector.broadcast %91 : vector<8x1xf32> to vector<8x512xf32>
    %93 = arith.mulf %90, %92 : vector<8x512xf32>
    %94 = arith.addf %84, %93 : vector<8x512xf32>
    %c21_i32 = arith.constant 21 : i32
    %95 = tpu.dynamic_rotate %0 by %c21_i32 dim 1 : vector<8x512xf32>, i32 -> vector<8x512xf32>
    %96 = vector.extract_strided_slice %2 {offsets = [0, 18], sizes = [8, 1], strides = [1, 1]} : vector<8x49xf32> to vector<8x1xf32>
    %97 = vector.broadcast %96 : vector<8x1xf32> to vector<8x512xf32>
    %98 = arith.mulf %95, %97 : vector<8x512xf32>
    %99 = arith.addf %89, %98 : vector<8x512xf32>
    %c20_i32 = arith.constant 20 : i32
    %100 = tpu.dynamic_rotate %0 by %c20_i32 dim 1 : vector<8x512xf32>, i32 -> vector<8x512xf32>
    %101 = vector.extract_strided_slice %2 {offsets = [0, 19], sizes = [8, 1], strides = [1, 1]} : vector<8x49xf32> to vector<8x1xf32>
    %102 = vector.broadcast %101 : vector<8x1xf32> to vector<8x512xf32>
    %103 = arith.mulf %100, %102 : vector<8x512xf32>
    %104 = arith.addf %94, %103 : vector<8x512xf32>
    %c19_i32 = arith.constant 19 : i32
    %105 = tpu.dynamic_rotate %0 by %c19_i32 dim 1 : vector<8x512xf32>, i32 -> vector<8x512xf32>
    %106 = vector.extract_strided_slice %2 {offsets = [0, 20], sizes = [8, 1], strides = [1, 1]} : vector<8x49xf32> to vector<8x1xf32>
    %107 = vector.broadcast %106 : vector<8x1xf32> to vector<8x512xf32>
    %108 = arith.mulf %105, %107 : vector<8x512xf32>
    %109 = arith.addf %99, %108 : vector<8x512xf32>
    %c3_i32 = arith.constant 3 : i32
    %110 = tpu.dynamic_rotate %0 by %c3_i32 dim 1 : vector<8x512xf32>, i32 -> vector<8x512xf32>
    %111 = vector.extract_strided_slice %2 {offsets = [0, 21], sizes = [8, 1], strides = [1, 1]} : vector<8x49xf32> to vector<8x1xf32>
    %112 = vector.broadcast %111 : vector<8x1xf32> to vector<8x512xf32>
    %113 = arith.mulf %110, %112 : vector<8x512xf32>
    %114 = arith.addf %104, %113 : vector<8x512xf32>
    %c2_i32 = arith.constant 2 : i32
    %115 = tpu.dynamic_rotate %0 by %c2_i32 dim 1 : vector<8x512xf32>, i32 -> vector<8x512xf32>
    %116 = vector.extract_strided_slice %2 {offsets = [0, 22], sizes = [8, 1], strides = [1, 1]} : vector<8x49xf32> to vector<8x1xf32>
    %117 = vector.broadcast %116 : vector<8x1xf32> to vector<8x512xf32>
    %118 = arith.mulf %115, %117 : vector<8x512xf32>
    %119 = arith.addf %109, %118 : vector<8x512xf32>
    %c1_i32 = arith.constant 1 : i32
    %120 = tpu.dynamic_rotate %0 by %c1_i32 dim 1 : vector<8x512xf32>, i32 -> vector<8x512xf32>
    %121 = vector.extract_strided_slice %2 {offsets = [0, 23], sizes = [8, 1], strides = [1, 1]} : vector<8x49xf32> to vector<8x1xf32>
    %122 = vector.broadcast %121 : vector<8x1xf32> to vector<8x512xf32>
    %123 = arith.mulf %120, %122 : vector<8x512xf32>
    %124 = arith.addf %114, %123 : vector<8x512xf32>
    %125 = vector.extract_strided_slice %2 {offsets = [0, 24], sizes = [8, 1], strides = [1, 1]} : vector<8x49xf32> to vector<8x1xf32>
    %126 = vector.broadcast %125 : vector<8x1xf32> to vector<8x512xf32>
    %127 = arith.mulf %0, %126 : vector<8x512xf32>
    %128 = arith.addf %119, %127 : vector<8x512xf32>
    %c511_i32 = arith.constant 511 : i32
    %129 = tpu.dynamic_rotate %0 by %c511_i32 dim 1 : vector<8x512xf32>, i32 -> vector<8x512xf32>
    %130 = vector.extract_strided_slice %2 {offsets = [0, 25], sizes = [8, 1], strides = [1, 1]} : vector<8x49xf32> to vector<8x1xf32>
    %131 = vector.broadcast %130 : vector<8x1xf32> to vector<8x512xf32>
    %132 = arith.mulf %129, %131 : vector<8x512xf32>
    %133 = arith.addf %124, %132 : vector<8x512xf32>
    %c510_i32 = arith.constant 510 : i32
    %134 = tpu.dynamic_rotate %0 by %c510_i32 dim 1 : vector<8x512xf32>, i32 -> vector<8x512xf32>
    %135 = vector.extract_strided_slice %2 {offsets = [0, 26], sizes = [8, 1], strides = [1, 1]} : vector<8x49xf32> to vector<8x1xf32>
    %136 = vector.broadcast %135 : vector<8x1xf32> to vector<8x512xf32>
    %137 = arith.mulf %134, %136 : vector<8x512xf32>
    %138 = arith.addf %128, %137 : vector<8x512xf32>
    %c509_i32 = arith.constant 509 : i32
    %139 = tpu.dynamic_rotate %0 by %c509_i32 dim 1 : vector<8x512xf32>, i32 -> vector<8x512xf32>
    %140 = vector.extract_strided_slice %2 {offsets = [0, 27], sizes = [8, 1], strides = [1, 1]} : vector<8x49xf32> to vector<8x1xf32>
    %141 = vector.broadcast %140 : vector<8x1xf32> to vector<8x512xf32>
    %142 = arith.mulf %139, %141 : vector<8x512xf32>
    %143 = arith.addf %133, %142 : vector<8x512xf32>
    %c493_i32 = arith.constant 493 : i32
    %144 = tpu.dynamic_rotate %0 by %c493_i32 dim 1 : vector<8x512xf32>, i32 -> vector<8x512xf32>
    %145 = vector.extract_strided_slice %2 {offsets = [0, 28], sizes = [8, 1], strides = [1, 1]} : vector<8x49xf32> to vector<8x1xf32>
    %146 = vector.broadcast %145 : vector<8x1xf32> to vector<8x512xf32>
    %147 = arith.mulf %144, %146 : vector<8x512xf32>
    %148 = arith.addf %138, %147 : vector<8x512xf32>
    %c492_i32 = arith.constant 492 : i32
    %149 = tpu.dynamic_rotate %0 by %c492_i32 dim 1 : vector<8x512xf32>, i32 -> vector<8x512xf32>
    %150 = vector.extract_strided_slice %2 {offsets = [0, 29], sizes = [8, 1], strides = [1, 1]} : vector<8x49xf32> to vector<8x1xf32>
    %151 = vector.broadcast %150 : vector<8x1xf32> to vector<8x512xf32>
    %152 = arith.mulf %149, %151 : vector<8x512xf32>
    %153 = arith.addf %143, %152 : vector<8x512xf32>
    %c491_i32 = arith.constant 491 : i32
    %154 = tpu.dynamic_rotate %0 by %c491_i32 dim 1 : vector<8x512xf32>, i32 -> vector<8x512xf32>
    %155 = vector.extract_strided_slice %2 {offsets = [0, 30], sizes = [8, 1], strides = [1, 1]} : vector<8x49xf32> to vector<8x1xf32>
    %156 = vector.broadcast %155 : vector<8x1xf32> to vector<8x512xf32>
    %157 = arith.mulf %154, %156 : vector<8x512xf32>
    %158 = arith.addf %148, %157 : vector<8x512xf32>
    %c490_i32 = arith.constant 490 : i32
    %159 = tpu.dynamic_rotate %0 by %c490_i32 dim 1 : vector<8x512xf32>, i32 -> vector<8x512xf32>
    %160 = vector.extract_strided_slice %2 {offsets = [0, 31], sizes = [8, 1], strides = [1, 1]} : vector<8x49xf32> to vector<8x1xf32>
    %161 = vector.broadcast %160 : vector<8x1xf32> to vector<8x512xf32>
    %162 = arith.mulf %159, %161 : vector<8x512xf32>
    %163 = arith.addf %153, %162 : vector<8x512xf32>
    %c489_i32 = arith.constant 489 : i32
    %164 = tpu.dynamic_rotate %0 by %c489_i32 dim 1 : vector<8x512xf32>, i32 -> vector<8x512xf32>
    %165 = vector.extract_strided_slice %2 {offsets = [0, 32], sizes = [8, 1], strides = [1, 1]} : vector<8x49xf32> to vector<8x1xf32>
    %166 = vector.broadcast %165 : vector<8x1xf32> to vector<8x512xf32>
    %167 = arith.mulf %164, %166 : vector<8x512xf32>
    %168 = arith.addf %158, %167 : vector<8x512xf32>
    %c488_i32 = arith.constant 488 : i32
    %169 = tpu.dynamic_rotate %0 by %c488_i32 dim 1 : vector<8x512xf32>, i32 -> vector<8x512xf32>
    %170 = vector.extract_strided_slice %2 {offsets = [0, 33], sizes = [8, 1], strides = [1, 1]} : vector<8x49xf32> to vector<8x1xf32>
    %171 = vector.broadcast %170 : vector<8x1xf32> to vector<8x512xf32>
    %172 = arith.mulf %169, %171 : vector<8x512xf32>
    %173 = arith.addf %163, %172 : vector<8x512xf32>
    %c487_i32 = arith.constant 487 : i32
    %174 = tpu.dynamic_rotate %0 by %c487_i32 dim 1 : vector<8x512xf32>, i32 -> vector<8x512xf32>
    %175 = vector.extract_strided_slice %2 {offsets = [0, 34], sizes = [8, 1], strides = [1, 1]} : vector<8x49xf32> to vector<8x1xf32>
    %176 = vector.broadcast %175 : vector<8x1xf32> to vector<8x512xf32>
    %177 = arith.mulf %174, %176 : vector<8x512xf32>
    %178 = arith.addf %168, %177 : vector<8x512xf32>
    %c471_i32 = arith.constant 471 : i32
    %179 = tpu.dynamic_rotate %0 by %c471_i32 dim 1 : vector<8x512xf32>, i32 -> vector<8x512xf32>
    %180 = vector.extract_strided_slice %2 {offsets = [0, 35], sizes = [8, 1], strides = [1, 1]} : vector<8x49xf32> to vector<8x1xf32>
    %181 = vector.broadcast %180 : vector<8x1xf32> to vector<8x512xf32>
    %182 = arith.mulf %179, %181 : vector<8x512xf32>
    %183 = arith.addf %173, %182 : vector<8x512xf32>
    %c470_i32 = arith.constant 470 : i32
    %184 = tpu.dynamic_rotate %0 by %c470_i32 dim 1 : vector<8x512xf32>, i32 -> vector<8x512xf32>
    %185 = vector.extract_strided_slice %2 {offsets = [0, 36], sizes = [8, 1], strides = [1, 1]} : vector<8x49xf32> to vector<8x1xf32>
    %186 = vector.broadcast %185 : vector<8x1xf32> to vector<8x512xf32>
    %187 = arith.mulf %184, %186 : vector<8x512xf32>
    %188 = arith.addf %178, %187 : vector<8x512xf32>
    %c469_i32 = arith.constant 469 : i32
    %189 = tpu.dynamic_rotate %0 by %c469_i32 dim 1 : vector<8x512xf32>, i32 -> vector<8x512xf32>
    %190 = vector.extract_strided_slice %2 {offsets = [0, 37], sizes = [8, 1], strides = [1, 1]} : vector<8x49xf32> to vector<8x1xf32>
    %191 = vector.broadcast %190 : vector<8x1xf32> to vector<8x512xf32>
    %192 = arith.mulf %189, %191 : vector<8x512xf32>
    %193 = arith.addf %183, %192 : vector<8x512xf32>
    %c468_i32 = arith.constant 468 : i32
    %194 = tpu.dynamic_rotate %0 by %c468_i32 dim 1 : vector<8x512xf32>, i32 -> vector<8x512xf32>
    %195 = vector.extract_strided_slice %2 {offsets = [0, 38], sizes = [8, 1], strides = [1, 1]} : vector<8x49xf32> to vector<8x1xf32>
    %196 = vector.broadcast %195 : vector<8x1xf32> to vector<8x512xf32>
    %197 = arith.mulf %194, %196 : vector<8x512xf32>
    %198 = arith.addf %188, %197 : vector<8x512xf32>
    %c467_i32 = arith.constant 467 : i32
    %199 = tpu.dynamic_rotate %0 by %c467_i32 dim 1 : vector<8x512xf32>, i32 -> vector<8x512xf32>
    %200 = vector.extract_strided_slice %2 {offsets = [0, 39], sizes = [8, 1], strides = [1, 1]} : vector<8x49xf32> to vector<8x1xf32>
    %201 = vector.broadcast %200 : vector<8x1xf32> to vector<8x512xf32>
    %202 = arith.mulf %199, %201 : vector<8x512xf32>
    %203 = arith.addf %193, %202 : vector<8x512xf32>
    %c466_i32 = arith.constant 466 : i32
    %204 = tpu.dynamic_rotate %0 by %c466_i32 dim 1 : vector<8x512xf32>, i32 -> vector<8x512xf32>
    %205 = vector.extract_strided_slice %2 {offsets = [0, 40], sizes = [8, 1], strides = [1, 1]} : vector<8x49xf32> to vector<8x1xf32>
    %206 = vector.broadcast %205 : vector<8x1xf32> to vector<8x512xf32>
    %207 = arith.mulf %204, %206 : vector<8x512xf32>
    %208 = arith.addf %198, %207 : vector<8x512xf32>
    %c465_i32 = arith.constant 465 : i32
    %209 = tpu.dynamic_rotate %0 by %c465_i32 dim 1 : vector<8x512xf32>, i32 -> vector<8x512xf32>
    %210 = vector.extract_strided_slice %2 {offsets = [0, 41], sizes = [8, 1], strides = [1, 1]} : vector<8x49xf32> to vector<8x1xf32>
    %211 = vector.broadcast %210 : vector<8x1xf32> to vector<8x512xf32>
    %212 = arith.mulf %209, %211 : vector<8x512xf32>
    %213 = arith.addf %203, %212 : vector<8x512xf32>
    %c449_i32 = arith.constant 449 : i32
    %214 = tpu.dynamic_rotate %0 by %c449_i32 dim 1 : vector<8x512xf32>, i32 -> vector<8x512xf32>
    %215 = vector.extract_strided_slice %2 {offsets = [0, 42], sizes = [8, 1], strides = [1, 1]} : vector<8x49xf32> to vector<8x1xf32>
    %216 = vector.broadcast %215 : vector<8x1xf32> to vector<8x512xf32>
    %217 = arith.mulf %214, %216 : vector<8x512xf32>
    %218 = arith.addf %208, %217 : vector<8x512xf32>
    %c448_i32 = arith.constant 448 : i32
    %219 = tpu.dynamic_rotate %0 by %c448_i32 dim 1 : vector<8x512xf32>, i32 -> vector<8x512xf32>
    %220 = vector.extract_strided_slice %2 {offsets = [0, 43], sizes = [8, 1], strides = [1, 1]} : vector<8x49xf32> to vector<8x1xf32>
    %221 = vector.broadcast %220 : vector<8x1xf32> to vector<8x512xf32>
    %222 = arith.mulf %219, %221 : vector<8x512xf32>
    %223 = arith.addf %213, %222 : vector<8x512xf32>
    %c447_i32 = arith.constant 447 : i32
    %224 = tpu.dynamic_rotate %0 by %c447_i32 dim 1 : vector<8x512xf32>, i32 -> vector<8x512xf32>
    %225 = vector.extract_strided_slice %2 {offsets = [0, 44], sizes = [8, 1], strides = [1, 1]} : vector<8x49xf32> to vector<8x1xf32>
    %226 = vector.broadcast %225 : vector<8x1xf32> to vector<8x512xf32>
    %227 = arith.mulf %224, %226 : vector<8x512xf32>
    %228 = arith.addf %218, %227 : vector<8x512xf32>
    %c446_i32 = arith.constant 446 : i32
    %229 = tpu.dynamic_rotate %0 by %c446_i32 dim 1 : vector<8x512xf32>, i32 -> vector<8x512xf32>
    %230 = vector.extract_strided_slice %2 {offsets = [0, 45], sizes = [8, 1], strides = [1, 1]} : vector<8x49xf32> to vector<8x1xf32>
    %231 = vector.broadcast %230 : vector<8x1xf32> to vector<8x512xf32>
    %232 = arith.mulf %229, %231 : vector<8x512xf32>
    %233 = arith.addf %223, %232 : vector<8x512xf32>
    %c445_i32 = arith.constant 445 : i32
    %234 = tpu.dynamic_rotate %0 by %c445_i32 dim 1 : vector<8x512xf32>, i32 -> vector<8x512xf32>
    %235 = vector.extract_strided_slice %2 {offsets = [0, 46], sizes = [8, 1], strides = [1, 1]} : vector<8x49xf32> to vector<8x1xf32>
    %236 = vector.broadcast %235 : vector<8x1xf32> to vector<8x512xf32>
    %237 = arith.mulf %234, %236 : vector<8x512xf32>
    %238 = arith.addf %228, %237 : vector<8x512xf32>
    %c444_i32 = arith.constant 444 : i32
    %239 = tpu.dynamic_rotate %0 by %c444_i32 dim 1 : vector<8x512xf32>, i32 -> vector<8x512xf32>
    %240 = vector.extract_strided_slice %2 {offsets = [0, 47], sizes = [8, 1], strides = [1, 1]} : vector<8x49xf32> to vector<8x1xf32>
    %241 = vector.broadcast %240 : vector<8x1xf32> to vector<8x512xf32>
    %242 = arith.mulf %239, %241 : vector<8x512xf32>
    %243 = arith.addf %233, %242 : vector<8x512xf32>
    %c443_i32 = arith.constant 443 : i32
    %244 = tpu.dynamic_rotate %0 by %c443_i32 dim 1 : vector<8x512xf32>, i32 -> vector<8x512xf32>
    %245 = vector.extract_strided_slice %2 {offsets = [0, 48], sizes = [8, 1], strides = [1, 1]} : vector<8x49xf32> to vector<8x1xf32>
    %246 = vector.broadcast %245 : vector<8x1xf32> to vector<8x512xf32>
    %247 = arith.mulf %244, %246 : vector<8x512xf32>
    %248 = arith.addf %238, %247 : vector<8x512xf32>
    %249 = arith.addf %248, %243 : vector<8x512xf32>
    %c0_6 = arith.constant 0 : index
    %c0_7 = arith.constant 0 : index
    %250 = vector.load %arg3[%c0_6, %c0_7] : memref<8x1xf32, #tpu.memory_space<vmem>>, vector<8x1xf32>
    %251 = vector.broadcast %250 : vector<8x1xf32> to vector<8x512xf32>
    %252 = arith.addf %249, %251 : vector<8x512xf32>
    %c0_8 = arith.constant 0 : index
    %c0_9 = arith.constant 0 : index
    %253 = vector.load %arg4[%c0_8, %c0_9] : memref<8x1xf32, #tpu.memory_space<vmem>>, vector<8x1xf32>
    %c0_10 = arith.constant 0 : index
    %c0_11 = arith.constant 0 : index
    %254 = vector.load %arg5[%c0_10, %c0_11] : memref<8x1xf32, #tpu.memory_space<vmem>>, vector<8x1xf32>
    %255 = vector.broadcast %1 : vector<1x512xf32> to vector<8x512xf32>
    %256 = arith.mulf %252, %255 : vector<8x512xf32>
    %cst_12 = arith.constant dense<0.000000e+00> : vector<8xf32>
    %257 = vector.multi_reduction <add>, %256, %cst_12 [1] : vector<8x512xf32> to vector<8xf32>
    %258 = vector.shape_cast %257 : vector<8xf32> to vector<8x1xf32>
    %259 = arith.mulf %256, %256 : vector<8x512xf32>
    %cst_13 = arith.constant dense<0.000000e+00> : vector<8xf32>
    %260 = vector.multi_reduction <add>, %259, %cst_13 [1] : vector<8x512xf32> to vector<8xf32>
    %261 = vector.shape_cast %260 : vector<8xf32> to vector<8x1xf32>
    %262 = tpu.iota {dimensions = array<i32: 0>} : vector<8x1xi32>
    %cst_14 = arith.constant 0.000000e+00 : f32
    %263 = vector.broadcast %cst_14 : f32 to vector<8x1xf32>
    %cst_15 = arith.constant 0.000000e+00 : f32
    %264 = vector.broadcast %cst_15 : f32 to vector<8x1xf32>
    %c0_i32 = arith.constant 0 : i32
    %265 = vector.broadcast %c0_i32 : i32 to vector<8x1xi32>
    %266 = arith.cmpi sge, %262, %265 : vector<8x1xi32>
    %c4_i32 = arith.constant 4 : i32
    %267 = vector.broadcast %c4_i32 : i32 to vector<8x1xi32>
    %268 = arith.cmpi slt, %262, %267 : vector<8x1xi32>
    %269 = arith.andi %266, %268 : vector<8x1xi1>
    %270 = arith.extui %269 : vector<8x1xi1> to vector<8x1xi32>
    %271 = arith.sitofp %270 : vector<8x1xi32> to vector<8x1xf32>
    %272 = arith.mulf %258, %271 : vector<8x1xf32>
    %273 = vector.shape_cast %272 : vector<8x1xf32> to vector<1x8x1xf32>
    %cst_16 = arith.constant dense<0.000000e+00> : vector<1xf32>
    %274 = vector.multi_reduction <add>, %273, %cst_16 [1, 2] : vector<1x8x1xf32> to vector<1xf32>
    %275 = vector.shape_cast %274 : vector<1xf32> to vector<1x1x1xf32>
    %276 = vector.extract %275[0, 0, 0] : f32 from vector<1x1x1xf32>
    %277 = arith.mulf %261, %271 : vector<8x1xf32>
    %278 = vector.shape_cast %277 : vector<8x1xf32> to vector<1x8x1xf32>
    %cst_17 = arith.constant dense<0.000000e+00> : vector<1xf32>
    %279 = vector.multi_reduction <add>, %278, %cst_17 [1, 2] : vector<1x8x1xf32> to vector<1xf32>
    %280 = vector.shape_cast %279 : vector<1xf32> to vector<1x1x1xf32>
    %281 = vector.extract %280[0, 0, 0] : f32 from vector<1x1x1xf32>
    %cst_18 = arith.constant 9.765625E-4 : f32
    %282 = arith.mulf %276, %cst_18 : f32
    %cst_19 = arith.constant 9.765625E-4 : f32
    %283 = arith.mulf %281, %cst_19 : f32
    %284 = arith.mulf %282, %282 : f32
    %285 = arith.subf %283, %284 : f32
    %cst_20 = arith.constant 9.99999974E-6 : f32
    %286 = arith.addf %285, %cst_20 : f32
    %287 = math.rsqrt %286 : f32
    %288 = vector.broadcast %287 : f32 to vector<8x1xf32>
    %289 = arith.mulf %271, %288 : vector<8x1xf32>
    %290 = arith.addf %263, %289 : vector<8x1xf32>
    %cst_21 = arith.constant 0.000000e+00 : f32
    %291 = arith.subf %cst_21, %282 : f32
    %292 = arith.mulf %291, %287 : f32
    %293 = vector.broadcast %292 : f32 to vector<8x1xf32>
    %294 = arith.mulf %271, %293 : vector<8x1xf32>
    %295 = arith.addf %264, %294 : vector<8x1xf32>
    %c4_i32_22 = arith.constant 4 : i32
    %296 = vector.broadcast %c4_i32_22 : i32 to vector<8x1xi32>
    %297 = arith.cmpi sge, %262, %296 : vector<8x1xi32>
    %c8_i32 = arith.constant 8 : i32
    %298 = vector.broadcast %c8_i32 : i32 to vector<8x1xi32>
    %299 = arith.cmpi slt, %262, %298 : vector<8x1xi32>
    %300 = arith.andi %297, %299 : vector<8x1xi1>
    %301 = arith.extui %300 : vector<8x1xi1> to vector<8x1xi32>
    %302 = arith.sitofp %301 : vector<8x1xi32> to vector<8x1xf32>
    %303 = arith.mulf %258, %302 : vector<8x1xf32>
    %304 = vector.shape_cast %303 : vector<8x1xf32> to vector<1x8x1xf32>
    %cst_23 = arith.constant dense<0.000000e+00> : vector<1xf32>
    %305 = vector.multi_reduction <add>, %304, %cst_23 [1, 2] : vector<1x8x1xf32> to vector<1xf32>
    %306 = vector.shape_cast %305 : vector<1xf32> to vector<1x1x1xf32>
    %307 = vector.extract %306[0, 0, 0] : f32 from vector<1x1x1xf32>
    %308 = arith.mulf %261, %302 : vector<8x1xf32>
    %309 = vector.shape_cast %308 : vector<8x1xf32> to vector<1x8x1xf32>
    %cst_24 = arith.constant dense<0.000000e+00> : vector<1xf32>
    %310 = vector.multi_reduction <add>, %309, %cst_24 [1, 2] : vector<1x8x1xf32> to vector<1xf32>
    %311 = vector.shape_cast %310 : vector<1xf32> to vector<1x1x1xf32>
    %312 = vector.extract %311[0, 0, 0] : f32 from vector<1x1x1xf32>
    %cst_25 = arith.constant 9.765625E-4 : f32
    %313 = arith.mulf %307, %cst_25 : f32
    %cst_26 = arith.constant 9.765625E-4 : f32
    %314 = arith.mulf %312, %cst_26 : f32
    %315 = arith.mulf %313, %313 : f32
    %316 = arith.subf %314, %315 : f32
    %cst_27 = arith.constant 9.99999974E-6 : f32
    %317 = arith.addf %316, %cst_27 : f32
    %318 = math.rsqrt %317 : f32
    %319 = vector.broadcast %318 : f32 to vector<8x1xf32>
    %320 = arith.mulf %302, %319 : vector<8x1xf32>
    %321 = arith.addf %290, %320 : vector<8x1xf32>
    %cst_28 = arith.constant 0.000000e+00 : f32
    %322 = arith.subf %cst_28, %313 : f32
    %323 = arith.mulf %322, %318 : f32
    %324 = vector.broadcast %323 : f32 to vector<8x1xf32>
    %325 = arith.mulf %302, %324 : vector<8x1xf32>
    %326 = arith.addf %295, %325 : vector<8x1xf32>
    %327 = arith.mulf %321, %253 : vector<8x1xf32>
    %328 = arith.mulf %326, %253 : vector<8x1xf32>
    %329 = arith.addf %328, %254 : vector<8x1xf32>
    %330 = vector.broadcast %327 : vector<8x1xf32> to vector<8x512xf32>
    %331 = arith.mulf %252, %330 : vector<8x512xf32>
    %332 = vector.broadcast %329 : vector<8x1xf32> to vector<8x512xf32>
    %333 = arith.addf %331, %332 : vector<8x512xf32>
    %334 = vector.broadcast %1 : vector<1x512xf32> to vector<8x512xf32>
    %335 = arith.mulf %333, %334 : vector<8x512xf32>
    %c0_29 = arith.constant 0 : index
    %c0_30 = arith.constant 0 : index
    %c0_31 = arith.constant 0 : index
    %336 = vector.load %arg6[%c0_29, %c0_30, %c0_31] : memref<9x32x8xf32, #tpu.memory_space<vmem>>, vector<1x32x8xf32>
    %337 = vector.shape_cast %336 : vector<1x32x8xf32> to vector<32x8xf32>
    %c23_i32_32 = arith.constant 23 : i32
    %338 = tpu.dynamic_rotate %335 by %c23_i32_32 dim 1 : vector<8x512xf32>, i32 -> vector<8x512xf32>
    %cst_33 = arith.constant dense<0.000000e+00> : vector<32x512xf32>
    %339 = tpu.matmul %337, %338, %cst_33 {dimension_numbers = #tpu.dot_dimension_numbers<[1], [0], [0], [1], [0, 0, 1, 1], [], []>} : vector<32x8xf32>, vector<8x512xf32>, vector<32x512xf32> -> vector<32x512xf32>
    %c1 = arith.constant 1 : index
    %c0_34 = arith.constant 0 : index
    %c0_35 = arith.constant 0 : index
    %340 = vector.load %arg6[%c1, %c0_34, %c0_35] : memref<9x32x8xf32, #tpu.memory_space<vmem>>, vector<1x32x8xf32>
    %341 = vector.shape_cast %340 : vector<1x32x8xf32> to vector<32x8xf32>
    %c22_i32_36 = arith.constant 22 : i32
    %342 = tpu.dynamic_rotate %335 by %c22_i32_36 dim 1 : vector<8x512xf32>, i32 -> vector<8x512xf32>
    %cst_37 = arith.constant dense<0.000000e+00> : vector<32x512xf32>
    %343 = tpu.matmul %341, %342, %cst_37 {dimension_numbers = #tpu.dot_dimension_numbers<[1], [0], [0], [1], [0, 0, 1, 1], [], []>} : vector<32x8xf32>, vector<8x512xf32>, vector<32x512xf32> -> vector<32x512xf32>
    %344 = arith.addf %339, %343 : vector<32x512xf32>
    %c2 = arith.constant 2 : index
    %c0_38 = arith.constant 0 : index
    %c0_39 = arith.constant 0 : index
    %345 = vector.load %arg6[%c2, %c0_38, %c0_39] : memref<9x32x8xf32, #tpu.memory_space<vmem>>, vector<1x32x8xf32>
    %346 = vector.shape_cast %345 : vector<1x32x8xf32> to vector<32x8xf32>
    %c21_i32_40 = arith.constant 21 : i32
    %347 = tpu.dynamic_rotate %335 by %c21_i32_40 dim 1 : vector<8x512xf32>, i32 -> vector<8x512xf32>
    %cst_41 = arith.constant dense<0.000000e+00> : vector<32x512xf32>
    %348 = tpu.matmul %346, %347, %cst_41 {dimension_numbers = #tpu.dot_dimension_numbers<[1], [0], [0], [1], [0, 0, 1, 1], [], []>} : vector<32x8xf32>, vector<8x512xf32>, vector<32x512xf32> -> vector<32x512xf32>
    %349 = arith.addf %344, %348 : vector<32x512xf32>
    %c3 = arith.constant 3 : index
    %c0_42 = arith.constant 0 : index
    %c0_43 = arith.constant 0 : index
    %350 = vector.load %arg6[%c3, %c0_42, %c0_43] : memref<9x32x8xf32, #tpu.memory_space<vmem>>, vector<1x32x8xf32>
    %351 = vector.shape_cast %350 : vector<1x32x8xf32> to vector<32x8xf32>
    %c1_i32_44 = arith.constant 1 : i32
    %352 = tpu.dynamic_rotate %335 by %c1_i32_44 dim 1 : vector<8x512xf32>, i32 -> vector<8x512xf32>
    %cst_45 = arith.constant dense<0.000000e+00> : vector<32x512xf32>
    %353 = tpu.matmul %351, %352, %cst_45 {dimension_numbers = #tpu.dot_dimension_numbers<[1], [0], [0], [1], [0, 0, 1, 1], [], []>} : vector<32x8xf32>, vector<8x512xf32>, vector<32x512xf32> -> vector<32x512xf32>
    %354 = arith.addf %349, %353 : vector<32x512xf32>
    %c4 = arith.constant 4 : index
    %c0_46 = arith.constant 0 : index
    %c0_47 = arith.constant 0 : index
    %355 = vector.load %arg6[%c4, %c0_46, %c0_47] : memref<9x32x8xf32, #tpu.memory_space<vmem>>, vector<1x32x8xf32>
    %356 = vector.shape_cast %355 : vector<1x32x8xf32> to vector<32x8xf32>
    %cst_48 = arith.constant dense<0.000000e+00> : vector<32x512xf32>
    %357 = tpu.matmul %356, %335, %cst_48 {dimension_numbers = #tpu.dot_dimension_numbers<[1], [0], [0], [1], [0, 0, 1, 1], [], []>} : vector<32x8xf32>, vector<8x512xf32>, vector<32x512xf32> -> vector<32x512xf32>
    %358 = arith.addf %354, %357 : vector<32x512xf32>
    %c5 = arith.constant 5 : index
    %c0_49 = arith.constant 0 : index
    %c0_50 = arith.constant 0 : index
    %359 = vector.load %arg6[%c5, %c0_49, %c0_50] : memref<9x32x8xf32, #tpu.memory_space<vmem>>, vector<1x32x8xf32>
    %360 = vector.shape_cast %359 : vector<1x32x8xf32> to vector<32x8xf32>
    %c511_i32_51 = arith.constant 511 : i32
    %361 = tpu.dynamic_rotate %335 by %c511_i32_51 dim 1 : vector<8x512xf32>, i32 -> vector<8x512xf32>
    %cst_52 = arith.constant dense<0.000000e+00> : vector<32x512xf32>
    %362 = tpu.matmul %360, %361, %cst_52 {dimension_numbers = #tpu.dot_dimension_numbers<[1], [0], [0], [1], [0, 0, 1, 1], [], []>} : vector<32x8xf32>, vector<8x512xf32>, vector<32x512xf32> -> vector<32x512xf32>
    %363 = arith.addf %358, %362 : vector<32x512xf32>
    %c6 = arith.constant 6 : index
    %c0_53 = arith.constant 0 : index
    %c0_54 = arith.constant 0 : index
    %364 = vector.load %arg6[%c6, %c0_53, %c0_54] : memref<9x32x8xf32, #tpu.memory_space<vmem>>, vector<1x32x8xf32>
    %365 = vector.shape_cast %364 : vector<1x32x8xf32> to vector<32x8xf32>
    %c491_i32_55 = arith.constant 491 : i32
    %366 = tpu.dynamic_rotate %335 by %c491_i32_55 dim 1 : vector<8x512xf32>, i32 -> vector<8x512xf32>
    %cst_56 = arith.constant dense<0.000000e+00> : vector<32x512xf32>
    %367 = tpu.matmul %365, %366, %cst_56 {dimension_numbers = #tpu.dot_dimension_numbers<[1], [0], [0], [1], [0, 0, 1, 1], [], []>} : vector<32x8xf32>, vector<8x512xf32>, vector<32x512xf32> -> vector<32x512xf32>
    %368 = arith.addf %363, %367 : vector<32x512xf32>
    %c7 = arith.constant 7 : index
    %c0_57 = arith.constant 0 : index
    %c0_58 = arith.constant 0 : index
    %369 = vector.load %arg6[%c7, %c0_57, %c0_58] : memref<9x32x8xf32, #tpu.memory_space<vmem>>, vector<1x32x8xf32>
    %370 = vector.shape_cast %369 : vector<1x32x8xf32> to vector<32x8xf32>
    %c490_i32_59 = arith.constant 490 : i32
    %371 = tpu.dynamic_rotate %335 by %c490_i32_59 dim 1 : vector<8x512xf32>, i32 -> vector<8x512xf32>
    %cst_60 = arith.constant dense<0.000000e+00> : vector<32x512xf32>
    %372 = tpu.matmul %370, %371, %cst_60 {dimension_numbers = #tpu.dot_dimension_numbers<[1], [0], [0], [1], [0, 0, 1, 1], [], []>} : vector<32x8xf32>, vector<8x512xf32>, vector<32x512xf32> -> vector<32x512xf32>
    %373 = arith.addf %368, %372 : vector<32x512xf32>
    %c8 = arith.constant 8 : index
    %c0_61 = arith.constant 0 : index
    %c0_62 = arith.constant 0 : index
    %374 = vector.load %arg6[%c8, %c0_61, %c0_62] : memref<9x32x8xf32, #tpu.memory_space<vmem>>, vector<1x32x8xf32>
    %375 = vector.shape_cast %374 : vector<1x32x8xf32> to vector<32x8xf32>
    %c489_i32_63 = arith.constant 489 : i32
    %376 = tpu.dynamic_rotate %335 by %c489_i32_63 dim 1 : vector<8x512xf32>, i32 -> vector<8x512xf32>
    %cst_64 = arith.constant dense<0.000000e+00> : vector<32x512xf32>
    %377 = tpu.matmul %375, %376, %cst_64 {dimension_numbers = #tpu.dot_dimension_numbers<[1], [0], [0], [1], [0, 0, 1, 1], [], []>} : vector<32x8xf32>, vector<8x512xf32>, vector<32x512xf32> -> vector<32x512xf32>
    %378 = arith.addf %373, %377 : vector<32x512xf32>
    %c0_65 = arith.constant 0 : index
    %c0_66 = arith.constant 0 : index
    %379 = vector.load %arg7[%c0_65, %c0_66] : memref<32x1xf32, #tpu.memory_space<vmem>>, vector<32x1xf32>
    %380 = vector.broadcast %379 : vector<32x1xf32> to vector<32x512xf32>
    %381 = arith.addf %378, %380 : vector<32x512xf32>
    %cst_67 = arith.constant 5.000000e-01 : f32
    %382 = vector.broadcast %cst_67 : f32 to vector<32x512xf32>
    %383 = arith.mulf %382, %381 : vector<32x512xf32>
    %cst_68 = arith.constant 0.707106769 : f32
    %384 = vector.broadcast %cst_68 : f32 to vector<32x512xf32>
    %385 = arith.mulf %381, %384 : vector<32x512xf32>
    %cst_69 = arith.constant 0.000000e+00 : f32
    %386 = vector.broadcast %cst_69 : f32 to vector<32x512xf32>
    %387 = arith.cmpf oge, %385, %386 : vector<32x512xf32>
    %cst_70 = arith.constant 1.000000e+00 : f32
    %cst_71 = arith.constant -1.000000e+00 : f32
    %388 = vector.broadcast %cst_70 : f32 to vector<32x512xf32>
    %389 = vector.broadcast %cst_71 : f32 to vector<32x512xf32>
    %390 = arith.select %387, %388, %389 : vector<32x512xi1>, vector<32x512xf32>
    %391 = math.absf %385 : vector<32x512xf32>
    %cst_72 = arith.constant 0.327591091 : f32
    %392 = vector.broadcast %cst_72 : f32 to vector<32x512xf32>
    %393 = arith.mulf %392, %391 : vector<32x512xf32>
    %cst_73 = arith.constant 1.000000e+00 : f32
    %394 = vector.broadcast %cst_73 : f32 to vector<32x512xf32>
    %395 = arith.addf %394, %393 : vector<32x512xf32>
    %cst_74 = arith.constant 1.000000e+00 : f32
    %396 = vector.broadcast %cst_74 : f32 to vector<32x512xf32>
    %397 = arith.divf %396, %395 : vector<32x512xf32>
    %cst_75 = arith.constant 1.06140542 : f32
    %398 = vector.broadcast %cst_75 : f32 to vector<32x512xf32>
    %399 = arith.mulf %398, %397 : vector<32x512xf32>
    %cst_76 = arith.constant -1.45315206 : f32
    %400 = vector.broadcast %cst_76 : f32 to vector<32x512xf32>
    %401 = arith.addf %399, %400 : vector<32x512xf32>
    %402 = arith.mulf %401, %397 : vector<32x512xf32>
    %cst_77 = arith.constant 1.42141378 : f32
    %403 = vector.broadcast %cst_77 : f32 to vector<32x512xf32>
    %404 = arith.addf %402, %403 : vector<32x512xf32>
    %405 = arith.mulf %404, %397 : vector<32x512xf32>
    %cst_78 = arith.constant -0.284496725 : f32
    %406 = vector.broadcast %cst_78 : f32 to vector<32x512xf32>
    %407 = arith.addf %405, %406 : vector<32x512xf32>
    %408 = arith.mulf %407, %397 : vector<32x512xf32>
    %cst_79 = arith.constant 0.254829586 : f32
    %409 = vector.broadcast %cst_79 : f32 to vector<32x512xf32>
    %410 = arith.addf %408, %409 : vector<32x512xf32>
    %411 = arith.mulf %410, %397 : vector<32x512xf32>
    %cst_80 = arith.constant 0.000000e+00 : f32
    %412 = vector.broadcast %cst_80 : f32 to vector<32x512xf32>
    %413 = arith.subf %412, %391 : vector<32x512xf32>
    %414 = arith.mulf %413, %391 : vector<32x512xf32>
    %415 = math.exp %414 : vector<32x512xf32>
    %416 = arith.mulf %411, %415 : vector<32x512xf32>
    %cst_81 = arith.constant 1.000000e+00 : f32
    %417 = vector.broadcast %cst_81 : f32 to vector<32x512xf32>
    %418 = arith.subf %417, %416 : vector<32x512xf32>
    %419 = arith.mulf %390, %418 : vector<32x512xf32>
    %cst_82 = arith.constant 1.000000e+00 : f32
    %420 = vector.broadcast %cst_82 : f32 to vector<32x512xf32>
    %421 = arith.addf %420, %419 : vector<32x512xf32>
    %422 = arith.mulf %383, %421 : vector<32x512xf32>
    %c0_83 = arith.constant 0 : index
    %c0_84 = arith.constant 0 : index
    %423 = vector.load %arg8[%c0_83, %c0_84] : memref<32x1xf32, #tpu.memory_space<vmem>>, vector<32x1xf32>
    %c0_85 = arith.constant 0 : index
    %c0_86 = arith.constant 0 : index
    %424 = vector.load %arg9[%c0_85, %c0_86] : memref<32x1xf32, #tpu.memory_space<vmem>>, vector<32x1xf32>
    %425 = vector.broadcast %1 : vector<1x512xf32> to vector<32x512xf32>
    %426 = arith.mulf %422, %425 : vector<32x512xf32>
    %cst_87 = arith.constant dense<0.000000e+00> : vector<32xf32>
    %427 = vector.multi_reduction <add>, %426, %cst_87 [1] : vector<32x512xf32> to vector<32xf32>
    %428 = vector.shape_cast %427 : vector<32xf32> to vector<32x1xf32>
    %429 = arith.mulf %426, %426 : vector<32x512xf32>
    %cst_88 = arith.constant dense<0.000000e+00> : vector<32xf32>
    %430 = vector.multi_reduction <add>, %429, %cst_88 [1] : vector<32x512xf32> to vector<32xf32>
    %431 = vector.shape_cast %430 : vector<32xf32> to vector<32x1xf32>
    %432 = tpu.iota {dimensions = array<i32: 0>} : vector<32x1xi32>
    %cst_89 = arith.constant 0.000000e+00 : f32
    %433 = vector.broadcast %cst_89 : f32 to vector<32x1xf32>
    %cst_90 = arith.constant 0.000000e+00 : f32
    %434 = vector.broadcast %cst_90 : f32 to vector<32x1xf32>
    %c0_i32_91 = arith.constant 0 : i32
    %435 = vector.broadcast %c0_i32_91 : i32 to vector<32x1xi32>
    %436 = arith.cmpi sge, %432, %435 : vector<32x1xi32>
    %c16_i32 = arith.constant 16 : i32
    %437 = vector.broadcast %c16_i32 : i32 to vector<32x1xi32>
    %438 = arith.cmpi slt, %432, %437 : vector<32x1xi32>
    %439 = arith.andi %436, %438 : vector<32x1xi1>
    %440 = arith.extui %439 : vector<32x1xi1> to vector<32x1xi32>
    %441 = arith.sitofp %440 : vector<32x1xi32> to vector<32x1xf32>
    %442 = arith.mulf %428, %441 : vector<32x1xf32>
    %443 = vector.shape_cast %442 : vector<32x1xf32> to vector<1x32x1xf32>
    %cst_92 = arith.constant dense<0.000000e+00> : vector<1xf32>
    %444 = vector.multi_reduction <add>, %443, %cst_92 [1, 2] : vector<1x32x1xf32> to vector<1xf32>
    %445 = vector.shape_cast %444 : vector<1xf32> to vector<1x1x1xf32>
    %446 = vector.extract %445[0, 0, 0] : f32 from vector<1x1x1xf32>
    %447 = arith.mulf %431, %441 : vector<32x1xf32>
    %448 = vector.shape_cast %447 : vector<32x1xf32> to vector<1x32x1xf32>
    %cst_93 = arith.constant dense<0.000000e+00> : vector<1xf32>
    %449 = vector.multi_reduction <add>, %448, %cst_93 [1, 2] : vector<1x32x1xf32> to vector<1xf32>
    %450 = vector.shape_cast %449 : vector<1xf32> to vector<1x1x1xf32>
    %451 = vector.extract %450[0, 0, 0] : f32 from vector<1x1x1xf32>
    %cst_94 = arith.constant 2.44140625E-4 : f32
    %452 = arith.mulf %446, %cst_94 : f32
    %cst_95 = arith.constant 2.44140625E-4 : f32
    %453 = arith.mulf %451, %cst_95 : f32
    %454 = arith.mulf %452, %452 : f32
    %455 = arith.subf %453, %454 : f32
    %cst_96 = arith.constant 9.99999974E-6 : f32
    %456 = arith.addf %455, %cst_96 : f32
    %457 = math.rsqrt %456 : f32
    %458 = vector.broadcast %457 : f32 to vector<32x1xf32>
    %459 = arith.mulf %441, %458 : vector<32x1xf32>
    %460 = arith.addf %433, %459 : vector<32x1xf32>
    %cst_97 = arith.constant 0.000000e+00 : f32
    %461 = arith.subf %cst_97, %452 : f32
    %462 = arith.mulf %461, %457 : f32
    %463 = vector.broadcast %462 : f32 to vector<32x1xf32>
    %464 = arith.mulf %441, %463 : vector<32x1xf32>
    %465 = arith.addf %434, %464 : vector<32x1xf32>
    %c16_i32_98 = arith.constant 16 : i32
    %466 = vector.broadcast %c16_i32_98 : i32 to vector<32x1xi32>
    %467 = arith.cmpi sge, %432, %466 : vector<32x1xi32>
    %c32_i32 = arith.constant 32 : i32
    %468 = vector.broadcast %c32_i32 : i32 to vector<32x1xi32>
    %469 = arith.cmpi slt, %432, %468 : vector<32x1xi32>
    %470 = arith.andi %467, %469 : vector<32x1xi1>
    %471 = arith.extui %470 : vector<32x1xi1> to vector<32x1xi32>
    %472 = arith.sitofp %471 : vector<32x1xi32> to vector<32x1xf32>
    %473 = arith.mulf %428, %472 : vector<32x1xf32>
    %474 = vector.shape_cast %473 : vector<32x1xf32> to vector<1x32x1xf32>
    %cst_99 = arith.constant dense<0.000000e+00> : vector<1xf32>
    %475 = vector.multi_reduction <add>, %474, %cst_99 [1, 2] : vector<1x32x1xf32> to vector<1xf32>
    %476 = vector.shape_cast %475 : vector<1xf32> to vector<1x1x1xf32>
    %477 = vector.extract %476[0, 0, 0] : f32 from vector<1x1x1xf32>
    %478 = arith.mulf %431, %472 : vector<32x1xf32>
    %479 = vector.shape_cast %478 : vector<32x1xf32> to vector<1x32x1xf32>
    %cst_100 = arith.constant dense<0.000000e+00> : vector<1xf32>
    %480 = vector.multi_reduction <add>, %479, %cst_100 [1, 2] : vector<1x32x1xf32> to vector<1xf32>
    %481 = vector.shape_cast %480 : vector<1xf32> to vector<1x1x1xf32>
    %482 = vector.extract %481[0, 0, 0] : f32 from vector<1x1x1xf32>
    %cst_101 = arith.constant 2.44140625E-4 : f32
    %483 = arith.mulf %477, %cst_101 : f32
    %cst_102 = arith.constant 2.44140625E-4 : f32
    %484 = arith.mulf %482, %cst_102 : f32
    %485 = arith.mulf %483, %483 : f32
    %486 = arith.subf %484, %485 : f32
    %cst_103 = arith.constant 9.99999974E-6 : f32
    %487 = arith.addf %486, %cst_103 : f32
    %488 = math.rsqrt %487 : f32
    %489 = vector.broadcast %488 : f32 to vector<32x1xf32>
    %490 = arith.mulf %472, %489 : vector<32x1xf32>
    %491 = arith.addf %460, %490 : vector<32x1xf32>
    %cst_104 = arith.constant 0.000000e+00 : f32
    %492 = arith.subf %cst_104, %483 : f32
    %493 = arith.mulf %492, %488 : f32
    %494 = vector.broadcast %493 : f32 to vector<32x1xf32>
    %495 = arith.mulf %472, %494 : vector<32x1xf32>
    %496 = arith.addf %465, %495 : vector<32x1xf32>
    %497 = arith.mulf %491, %423 : vector<32x1xf32>
    %498 = arith.mulf %496, %423 : vector<32x1xf32>
    %499 = arith.addf %498, %424 : vector<32x1xf32>
    %500 = vector.broadcast %497 : vector<32x1xf32> to vector<32x512xf32>
    %501 = arith.mulf %422, %500 : vector<32x512xf32>
    %502 = vector.broadcast %499 : vector<32x1xf32> to vector<32x512xf32>
    %503 = arith.addf %501, %502 : vector<32x512xf32>
    %504 = vector.broadcast %1 : vector<1x512xf32> to vector<32x512xf32>
    %505 = arith.mulf %503, %504 : vector<32x512xf32>
    %c0_105 = arith.constant 0 : index
    %c0_106 = arith.constant 0 : index
    %506 = vector.load %arg11[%c0_105, %c0_106] : memref<16x8xf32, #tpu.memory_space<vmem>>, vector<16x8xf32>
    %cst_107 = arith.constant dense<0.000000e+00> : vector<16x512xf32>
    %507 = tpu.matmul %506, %0, %cst_107 {dimension_numbers = #tpu.dot_dimension_numbers<[1], [0], [0], [1], [0, 0, 1, 1], [], []>} : vector<16x8xf32>, vector<8x512xf32>, vector<16x512xf32> -> vector<16x512xf32>
    %c0_108 = arith.constant 0 : index
    %c0_109 = arith.constant 0 : index
    %c0_110 = arith.constant 0 : index
    %508 = vector.load %arg10[%c0_108, %c0_109, %c0_110] : memref<9x16x32xf32, #tpu.memory_space<vmem>>, vector<1x16x32xf32>
    %509 = vector.shape_cast %508 : vector<1x16x32xf32> to vector<16x32xf32>
    %c23_i32_111 = arith.constant 23 : i32
    %510 = tpu.dynamic_rotate %505 by %c23_i32_111 dim 1 : vector<32x512xf32>, i32 -> vector<32x512xf32>
    %cst_112 = arith.constant dense<0.000000e+00> : vector<16x512xf32>
    %511 = tpu.matmul %509, %510, %cst_112 {dimension_numbers = #tpu.dot_dimension_numbers<[1], [0], [0], [1], [0, 0, 1, 1], [], []>} : vector<16x32xf32>, vector<32x512xf32>, vector<16x512xf32> -> vector<16x512xf32>
    %512 = arith.addf %507, %511 : vector<16x512xf32>
    %c1_113 = arith.constant 1 : index
    %c0_114 = arith.constant 0 : index
    %c0_115 = arith.constant 0 : index
    %513 = vector.load %arg10[%c1_113, %c0_114, %c0_115] : memref<9x16x32xf32, #tpu.memory_space<vmem>>, vector<1x16x32xf32>
    %514 = vector.shape_cast %513 : vector<1x16x32xf32> to vector<16x32xf32>
    %c22_i32_116 = arith.constant 22 : i32
    %515 = tpu.dynamic_rotate %505 by %c22_i32_116 dim 1 : vector<32x512xf32>, i32 -> vector<32x512xf32>
    %cst_117 = arith.constant dense<0.000000e+00> : vector<16x512xf32>
    %516 = tpu.matmul %514, %515, %cst_117 {dimension_numbers = #tpu.dot_dimension_numbers<[1], [0], [0], [1], [0, 0, 1, 1], [], []>} : vector<16x32xf32>, vector<32x512xf32>, vector<16x512xf32> -> vector<16x512xf32>
    %517 = arith.addf %512, %516 : vector<16x512xf32>
    %c2_118 = arith.constant 2 : index
    %c0_119 = arith.constant 0 : index
    %c0_120 = arith.constant 0 : index
    %518 = vector.load %arg10[%c2_118, %c0_119, %c0_120] : memref<9x16x32xf32, #tpu.memory_space<vmem>>, vector<1x16x32xf32>
    %519 = vector.shape_cast %518 : vector<1x16x32xf32> to vector<16x32xf32>
    %c21_i32_121 = arith.constant 21 : i32
    %520 = tpu.dynamic_rotate %505 by %c21_i32_121 dim 1 : vector<32x512xf32>, i32 -> vector<32x512xf32>
    %cst_122 = arith.constant dense<0.000000e+00> : vector<16x512xf32>
    %521 = tpu.matmul %519, %520, %cst_122 {dimension_numbers = #tpu.dot_dimension_numbers<[1], [0], [0], [1], [0, 0, 1, 1], [], []>} : vector<16x32xf32>, vector<32x512xf32>, vector<16x512xf32> -> vector<16x512xf32>
    %522 = arith.addf %517, %521 : vector<16x512xf32>
    %c3_123 = arith.constant 3 : index
    %c0_124 = arith.constant 0 : index
    %c0_125 = arith.constant 0 : index
    %523 = vector.load %arg10[%c3_123, %c0_124, %c0_125] : memref<9x16x32xf32, #tpu.memory_space<vmem>>, vector<1x16x32xf32>
    %524 = vector.shape_cast %523 : vector<1x16x32xf32> to vector<16x32xf32>
    %c1_i32_126 = arith.constant 1 : i32
    %525 = tpu.dynamic_rotate %505 by %c1_i32_126 dim 1 : vector<32x512xf32>, i32 -> vector<32x512xf32>
    %cst_127 = arith.constant dense<0.000000e+00> : vector<16x512xf32>
    %526 = tpu.matmul %524, %525, %cst_127 {dimension_numbers = #tpu.dot_dimension_numbers<[1], [0], [0], [1], [0, 0, 1, 1], [], []>} : vector<16x32xf32>, vector<32x512xf32>, vector<16x512xf32> -> vector<16x512xf32>
    %527 = arith.addf %522, %526 : vector<16x512xf32>
    %c4_128 = arith.constant 4 : index
    %c0_129 = arith.constant 0 : index
    %c0_130 = arith.constant 0 : index
    %528 = vector.load %arg10[%c4_128, %c0_129, %c0_130] : memref<9x16x32xf32, #tpu.memory_space<vmem>>, vector<1x16x32xf32>
    %529 = vector.shape_cast %528 : vector<1x16x32xf32> to vector<16x32xf32>
    %cst_131 = arith.constant dense<0.000000e+00> : vector<16x512xf32>
    %530 = tpu.matmul %529, %505, %cst_131 {dimension_numbers = #tpu.dot_dimension_numbers<[1], [0], [0], [1], [0, 0, 1, 1], [], []>} : vector<16x32xf32>, vector<32x512xf32>, vector<16x512xf32> -> vector<16x512xf32>
    %531 = arith.addf %527, %530 : vector<16x512xf32>
    %c5_132 = arith.constant 5 : index
    %c0_133 = arith.constant 0 : index
    %c0_134 = arith.constant 0 : index
    %532 = vector.load %arg10[%c5_132, %c0_133, %c0_134] : memref<9x16x32xf32, #tpu.memory_space<vmem>>, vector<1x16x32xf32>
    %533 = vector.shape_cast %532 : vector<1x16x32xf32> to vector<16x32xf32>
    %c511_i32_135 = arith.constant 511 : i32
    %534 = tpu.dynamic_rotate %505 by %c511_i32_135 dim 1 : vector<32x512xf32>, i32 -> vector<32x512xf32>
    %cst_136 = arith.constant dense<0.000000e+00> : vector<16x512xf32>
    %535 = tpu.matmul %533, %534, %cst_136 {dimension_numbers = #tpu.dot_dimension_numbers<[1], [0], [0], [1], [0, 0, 1, 1], [], []>} : vector<16x32xf32>, vector<32x512xf32>, vector<16x512xf32> -> vector<16x512xf32>
    %536 = arith.addf %531, %535 : vector<16x512xf32>
    %c6_137 = arith.constant 6 : index
    %c0_138 = arith.constant 0 : index
    %c0_139 = arith.constant 0 : index
    %537 = vector.load %arg10[%c6_137, %c0_138, %c0_139] : memref<9x16x32xf32, #tpu.memory_space<vmem>>, vector<1x16x32xf32>
    %538 = vector.shape_cast %537 : vector<1x16x32xf32> to vector<16x32xf32>
    %c491_i32_140 = arith.constant 491 : i32
    %539 = tpu.dynamic_rotate %505 by %c491_i32_140 dim 1 : vector<32x512xf32>, i32 -> vector<32x512xf32>
    %cst_141 = arith.constant dense<0.000000e+00> : vector<16x512xf32>
    %540 = tpu.matmul %538, %539, %cst_141 {dimension_numbers = #tpu.dot_dimension_numbers<[1], [0], [0], [1], [0, 0, 1, 1], [], []>} : vector<16x32xf32>, vector<32x512xf32>, vector<16x512xf32> -> vector<16x512xf32>
    %541 = arith.addf %536, %540 : vector<16x512xf32>
    %c7_142 = arith.constant 7 : index
    %c0_143 = arith.constant 0 : index
    %c0_144 = arith.constant 0 : index
    %542 = vector.load %arg10[%c7_142, %c0_143, %c0_144] : memref<9x16x32xf32, #tpu.memory_space<vmem>>, vector<1x16x32xf32>
    %543 = vector.shape_cast %542 : vector<1x16x32xf32> to vector<16x32xf32>
    %c490_i32_145 = arith.constant 490 : i32
    %544 = tpu.dynamic_rotate %505 by %c490_i32_145 dim 1 : vector<32x512xf32>, i32 -> vector<32x512xf32>
    %cst_146 = arith.constant dense<0.000000e+00> : vector<16x512xf32>
    %545 = tpu.matmul %543, %544, %cst_146 {dimension_numbers = #tpu.dot_dimension_numbers<[1], [0], [0], [1], [0, 0, 1, 1], [], []>} : vector<16x32xf32>, vector<32x512xf32>, vector<16x512xf32> -> vector<16x512xf32>
    %546 = arith.addf %541, %545 : vector<16x512xf32>
    %c8_147 = arith.constant 8 : index
    %c0_148 = arith.constant 0 : index
    %c0_149 = arith.constant 0 : index
    %547 = vector.load %arg10[%c8_147, %c0_148, %c0_149] : memref<9x16x32xf32, #tpu.memory_space<vmem>>, vector<1x16x32xf32>
    %548 = vector.shape_cast %547 : vector<1x16x32xf32> to vector<16x32xf32>
    %c489_i32_150 = arith.constant 489 : i32
    %549 = tpu.dynamic_rotate %505 by %c489_i32_150 dim 1 : vector<32x512xf32>, i32 -> vector<32x512xf32>
    %cst_151 = arith.constant dense<0.000000e+00> : vector<16x512xf32>
    %550 = tpu.matmul %548, %549, %cst_151 {dimension_numbers = #tpu.dot_dimension_numbers<[1], [0], [0], [1], [0, 0, 1, 1], [], []>} : vector<16x32xf32>, vector<32x512xf32>, vector<16x512xf32> -> vector<16x512xf32>
    %551 = arith.addf %546, %550 : vector<16x512xf32>
    %c0_152 = arith.constant 0 : index
    %c0_153 = arith.constant 0 : index
    %552 = vector.load %arg12[%c0_152, %c0_153] : memref<16x1xf32, #tpu.memory_space<vmem>>, vector<16x1xf32>
    %553 = vector.broadcast %552 : vector<16x1xf32> to vector<16x512xf32>
    %554 = arith.addf %551, %553 : vector<16x512xf32>
    %c0_154 = arith.constant 0 : index
    %c0_155 = arith.constant 0 : index
    %555 = vector.load %arg13[%c0_154, %c0_155] : memref<16x512xf32, #tpu.memory_space<vmem>>, vector<16x512xf32>
    tpu.vector_store %arg13[%c0_154, %c0_155], %554 {strides = array<i32>} : memref<16x512xf32, #tpu.memory_space<vmem>>, vector<16x512xf32>,
    return
  }
}

</mosaic_0001>

<llo_original>
// kernel: tpu_custom_call.1
$region0: #{tpu_custom_call.1}
  #allocation0 [shape = 'u32[]', space=smem, size = 0x4, offset = 0x4, fixed_abs, tag = 'smem constant byte address 0x4 - core index']
  #allocation1 [shape = 'u32[72,128]{1,0:T(1,128)}', space=vmem, size = 0x9000, scoped, tag = 'internal scratch']
  %s0 = inlined_call_operand.vmem [shape: f32[8,512], index: 0, kind: input, shape index: {}]
  %s1 = inlined_call_operand.vmem [shape: f32[1,512], index: 1, kind: input, shape index: {}]
  %s2 = inlined_call_operand.vmem [shape: f32[8,49], index: 2, kind: input, shape index: {}]
  %s3 = inlined_call_operand.vmem [shape: f32[8,1], index: 3, kind: input, shape index: {}]
  %s4 = inlined_call_operand.vmem [shape: f32[8,1], index: 4, kind: input, shape index: {}]
  %s5 = inlined_call_operand.vmem [shape: f32[8,1], index: 5, kind: input, shape index: {}]
  %s6 = inlined_call_operand.vmem [shape: f32[9,32,8], index: 6, kind: input, shape index: {}]
  %s7 = inlined_call_operand.vmem [shape: f32[32,1], index: 7, kind: input, shape index: {}]
  %s8 = inlined_call_operand.vmem [shape: f32[32,1], index: 8, kind: input, shape index: {}]
  %s9 = inlined_call_operand.vmem [shape: f32[32,1], index: 9, kind: input, shape index: {}]
  %s10 = inlined_call_operand.vmem [shape: f32[9,16,32], index: 10, kind: input, shape index: {}]
  %s11 = inlined_call_operand.vmem [shape: f32[16,8], index: 11, kind: input, shape index: {}]
  %s12 = inlined_call_operand.vmem [shape: f32[16,1], index: 12, kind: input, shape index: {}]
  %s13 = inlined_call_operand.hbm [shape: f32[16,512], index: 13, kind: output, shape index: {}]
  %s14 = sld [smem:[#allocation0]]
  $region62: #{tpu_custom_call.1} parent=0
    _
  %s16 = ssub.s32 1, %s14
  %s17 = scalar_select 0, %s16, %s14
  $region1: #{tpu_custom_call.1} parent=0
    #allocation2 [shape = 'u8[32768]{0}', space=vmem, size = 0x8000, scoped, tag = 'output window, operand 0, single buffered']
    #allocation3 [shape = 's32[1]{0}', space=sflag, size = 0x4, scoped, tag = 'scoped memory for tpu_custom_call.1']
    %18 = vsyncpa [#allocation3], 0
    // Predicated region
    $region2: #{tpu_custom_call.1} parent=1 // pred_check
      _
    $region3: #{tpu_custom_call.1} parent=1 // pred_check_branch
      %20 = sbr.rel (0) target = $region5
    $region4: #{tpu_custom_call.1} parent=1 // pred_region
      _
    $region5: #{tpu_custom_call.1} parent=1 // pred_fallthru
      _
    // Predicated region
    $region6: #{tpu_custom_call.1} parent=1 // pred_check
      _
    $region7: #{tpu_custom_call.1} parent=1 // pred_check_branch
      %22 = sbr.rel (0) target = $region9
    $region8: #{tpu_custom_call.1} parent=1 // pred_region
      _
    $region9: #{tpu_custom_call.1} parent=1 // pred_fallthru
      _
    // Predicated region
    $region10: #{tpu_custom_call.1} parent=1 // pred_check
      _
    $region11: #{tpu_custom_call.1} parent=1 // pred_check_branch
      %24 = sbr.rel (0) target = $region13
    $region12: #{tpu_custom_call.1} parent=1 // pred_region
      _
    $region13: #{tpu_custom_call.1} parent=1 // pred_fallthru
      _
    // Predicated region
    $region14: #{tpu_custom_call.1} parent=1 // pred_check
      _
    $region15: #{tpu_custom_call.1} parent=1 // pred_check_branch
      %26 = sbr.rel (0) target = $region17
    $region16: #{tpu_custom_call.1} parent=1 // pred_region
      _
    $region17: #{tpu_custom_call.1} parent=1 // pred_fallthru
      _
    // Predicated region
    $region18: #{tpu_custom_call.1} parent=1 // pred_check
      _
    $region19: #{tpu_custom_call.1} parent=1 // pred_check_branch
      %28 = sbr.rel (0) target = $region21
    $region20: #{tpu_custom_call.1} parent=1 // pred_region
      _
    $region21: #{tpu_custom_call.1} parent=1 // pred_fallthru
      _
    // Predicated region
    $region22: #{tpu_custom_call.1} parent=1 // pred_check
      _
    $region23: #{tpu_custom_call.1} parent=1 // pred_check_branch
      %30 = sbr.rel (0) target = $region25
    $region24: #{tpu_custom_call.1} parent=1 // pred_region
      _
    $region25: #{tpu_custom_call.1} parent=1 // pred_fallthru
      _
    // Predicated region
    $region26: #{tpu_custom_call.1} parent=1 // pred_check
      _
    $region27: #{tpu_custom_call.1} parent=1 // pred_check_branch
      %32 = sbr.rel (0) target = $region29
    $region28: #{tpu_custom_call.1} parent=1 // pred_region
      _
    $region29: #{tpu_custom_call.1} parent=1 // pred_fallthru
      _
    // Predicated region
    $region30: #{tpu_custom_call.1} parent=1 // pred_check
      _
    $region31: #{tpu_custom_call.1} parent=1 // pred_check_branch
      %34 = sbr.rel (0) target = $region33
    $region32: #{tpu_custom_call.1} parent=1 // pred_region
      _
    $region33: #{tpu_custom_call.1} parent=1 // pred_fallthru
      _
    // Predicated region
    $region34: #{tpu_custom_call.1} parent=1 // pred_check
      _
    $region35: #{tpu_custom_call.1} parent=1 // pred_check_branch
      %36 = sbr.rel (0) target = $region37
    $region36: #{tpu_custom_call.1} parent=1 // pred_region
      _
    $region37: #{tpu_custom_call.1} parent=1 // pred_fallthru
      _
    // Predicated region
    $region38: #{tpu_custom_call.1} parent=1 // pred_check
      _
    $region39: #{tpu_custom_call.1} parent=1 // pred_check_branch
      %38 = sbr.rel (0) target = $region41
    $region40: #{tpu_custom_call.1} parent=1 // pred_region
      _
    $region41: #{tpu_custom_call.1} parent=1 // pred_fallthru
      _
    // Predicated region
    $region42: #{tpu_custom_call.1} parent=1 // pred_check
      _
    $region43: #{tpu_custom_call.1} parent=1 // pred_check_branch
      %40 = sbr.rel (0) target = $region45
    $region44: #{tpu_custom_call.1} parent=1 // pred_region
      _
    $region45: #{tpu_custom_call.1} parent=1 // pred_fallthru
      _
    // Predicated region
    $region46: #{tpu_custom_call.1} parent=1 // pred_check
      _
    $region47: #{tpu_custom_call.1} parent=1 // pred_check_branch
      %42 = sbr.rel (0) target = $region49
    $region48: #{tpu_custom_call.1} parent=1 // pred_region
      _
    $region49: #{tpu_custom_call.1} parent=1 // pred_fallthru
      _
    // Predicated region
    $region50: #{tpu_custom_call.1} parent=1 // pred_check
      _
    $region51: #{tpu_custom_call.1} parent=1 // pred_check_branch
      %44 = sbr.rel (0) target = $region53
    $region52: #{tpu_custom_call.1} parent=1 // pred_region
      _
    $region53: #{tpu_custom_call.1} parent=1 // pred_fallthru
      _
    %v45 = vld [vmem:[%s0] sm:$0xff]
    %v46 = vld [vmem:[%s0 + $0x8] sm:$0xff]
    %v47 = vld [vmem:[%s0 + $0x10] sm:$0xff]
    %v48 = vld [vmem:[%s0 + $0x18] sm:$0xff]
    %v49 = vld [vmem:[%s1] sm:$0xf]
    %v50 = vld [vmem:[%s2] sm:$0xff]
    %51 = vrot.lane.b32.xlu0 %v45, 69
    %v52 = vpop.permute.xlu0 %51
    %53 = vrot.lane.b32.xlu0 %v46, 69
    %v54 = vpop.permute.xlu0 %53
    %55 = vrot.lane.b32.xlu0 %v47, 69
    %v56 = vpop.permute.xlu0 %55
    %57 = vrot.lane.b32.xlu0 %v48, 69
    %v58 = vpop.permute.xlu0 %57
    %v59 = vlaneseq
    %v60 = vand.u32 %v59, 127
    %vm61 = vcmp.lt.s32.totalorder %v60, 69
    %v62 = vsel %vm61, %v56, %v58
    %v63 = vsel %vm61, %v54, %v56
    %v64 = vsel %vm61, %v52, %v54
    %v65 = vsel %vm61, %v58, %v52
    %67 = vset.pattern.permute.xlu0 0
    %68 = vperm.xlu0 %67, %v50
    %v69 = vpop.permute.xlu0 %68
    %v71 = vmul.f32 %v65, %v69
    %v72 = vmul.f32 %v64, %v69
    %v73 = vmul.f32 %v63, %v69
    %v74 = vmul.f32 %v62, %v69
    %v75 = vadd.f32 %v71, 0.0
    %v76 = vadd.f32 %v72, 0.0
    %v77 = vadd.f32 %v73, 0.0
    %v78 = vadd.f32 %v74, 0.0
    %79 = vrot.lane.b32.xlu0 %v45, 68
    %v80 = vpop.permute.xlu0 %79
    %81 = vrot.lane.b32.xlu0 %v46, 68
    %v82 = vpop.permute.xlu0 %81
    %83 = vrot.lane.b32.xlu0 %v47, 68
    %v84 = vpop.permute.xlu0 %83
    %85 = vrot.lane.b32.xlu0 %v48, 68
    %v86 = vpop.permute.xlu0 %85
    %vm87 = vcmp.lt.s32.totalorder %v60, 68
    %v88 = vsel %vm87, %v84, %v86
    %v89 = vsel %vm87, %v82, %v84
    %v90 = vsel %vm87, %v80, %v82
    %v91 = vsel %vm87, %v86, %v80
    %92 = vset.pattern.permute.xlu0 1
    %93 = vperm.xlu0 %92, %v50
    %v94 = vpop.permute.xlu0 %93
    %v96 = vmul.f32 %v91, %v94
    %v97 = vmul.f32 %v90, %v94
    %v98 = vmul.f32 %v89, %v94
    %v99 = vmul.f32 %v88, %v94
    %v100 = vadd.f32 %v96, 0.0
    %v101 = vadd.f32 %v97, 0.0
    %v102 = vadd.f32 %v98, 0.0
    %v103 = vadd.f32 %v99, 0.0
    %104 = vrot.lane.b32.xlu0 %v45, 67
    %v105 = vpop.permute.xlu0 %104
    %106 = vrot.lane.b32.xlu0 %v46, 67
    %v107 = vpop.permute.xlu0 %106
    %108 = vrot.lane.b32.xlu0 %v47, 67
    %v109 = vpop.permute.xlu0 %108
    %110 = vrot.lane.b32.xlu0 %v48, 67
    %v111 = vpop.permute.xlu0 %110
    %vm112 = vcmp.lt.s32.totalorder %v60, 67
    %v113 = vsel %vm112, %v109, %v111
    %v114 = vsel %vm112, %v107, %v109
    %v115 = vsel %vm112, %v105, %v107
    %v116 = vsel %vm112, %v111, %v105
    %117 = vset.pattern.permute.xlu0 2
    %118 = vperm.xlu0 %117, %v50
    %v119 = vpop.permute.xlu0 %118
    %v121 = vmul.f32 %v116, %v119
    %v122 = vmul.f32 %v115, %v119
    %v123 = vmul.f32 %v114, %v119
    %v124 = vmul.f32 %v113, %v119
    %v125 = vadd.f32 %v75, %v121
    %v126 = vadd.f32 %v76, %v122
    %v127 = vadd.f32 %v77, %v123
    %v128 = vadd.f32 %v78, %v124
    %129 = vrot.lane.b32.xlu0 %v45, 66
    %v130 = vpop.permute.xlu0 %129
    %131 = vrot.lane.b32.xlu0 %v46, 66
    %v132 = vpop.permute.xlu0 %131
    %133 = vrot.lane.b32.xlu0 %v47, 66
    %v134 = vpop.permute.xlu0 %133
    %135 = vrot.lane.b32.xlu0 %v48, 66
    %v136 = vpop.permute.xlu0 %135
    %vm137 = vcmp.lt.s32.totalorder %v60, 66
    %v138 = vsel %vm137, %v134, %v136
    %v139 = vsel %vm137, %v132, %v134
    %v140 = vsel %vm137, %v130, %v132
    %v141 = vsel %vm137, %v136, %v130
    %142 = vset.pattern.permute.xlu0 3
    %143 = vperm.xlu0 %142, %v50
    %v144 = vpop.permute.xlu0 %143
    %v146 = vmul.f32 %v141, %v144
    %v147 = vmul.f32 %v140, %v144
    %v148 = vmul.f32 %v139, %v144
    %v149 = vmul.f32 %v138, %v144
    %v150 = vadd.f32 %v100, %v146
    %v151 = vadd.f32 %v101, %v147
    %v152 = vadd.f32 %v102, %v148
    %v153 = vadd.f32 %v103, %v149
    %154 = vrot.lane.b32.xlu0 %v45, 65
    %v155 = vpop.permute.xlu0 %154
    %156 = vrot.lane.b32.xlu0 %v46, 65
    %v157 = vpop.permute.xlu0 %156
    %158 = vrot.lane.b32.xlu0 %v47, 65
    %v159 = vpop.permute.xlu0 %158
    %160 = vrot.lane.b32.xlu0 %v48, 65
    %v161 = vpop.permute.xlu0 %160
    %vm162 = vcmp.lt.s32.totalorder %v60, 65
    %v163 = vsel %vm162, %v159, %v161
    %v164 = vsel %vm162, %v157, %v159
    %v165 = vsel %vm162, %v155, %v157
    %v166 = vsel %vm162, %v161, %v155
    %167 = vset.pattern.permute.xlu0 4
    %168 = vperm.xlu0 %167, %v50
    %v169 = vpop.permute.xlu0 %168
    %v171 = vmul.f32 %v166, %v169
    %v172 = vmul.f32 %v165, %v169
    %v173 = vmul.f32 %v164, %v169
    %v174 = vmul.f32 %v163, %v169
    %v175 = vadd.f32 %v125, %v171
    %v176 = vadd.f32 %v126, %v172
    %v177 = vadd.f32 %v127, %v173
    %v178 = vadd.f32 %v128, %v174
    %179 = vrot.lane.b32.xlu0 %v45, 64
    %v180 = vpop.permute.xlu0 %179
    %181 = vrot.lane.b32.xlu0 %v46, 64
    %v182 = vpop.permute.xlu0 %181
    %183 = vrot.lane.b32.xlu0 %v47, 64
    %v184 = vpop.permute.xlu0 %183
    %185 = vrot.lane.b32.xlu0 %v48, 64
    %v186 = vpop.permute.xlu0 %185
    %vm187 = vcmp.lt.s32.totalorder %v60, 64
    %v188 = vsel %vm187, %v184, %v186
    %v189 = vsel %vm187, %v182, %v184
    %v190 = vsel %vm187, %v180, %v182
    %v191 = vsel %vm187, %v186, %v180
    %192 = vset.pattern.permute.xlu0 5
    %193 = vperm.xlu0 %192, %v50
    %v194 = vpop.permute.xlu0 %193
    %v196 = vmul.f32 %v191, %v194
    %v197 = vmul.f32 %v190, %v194
    %v198 = vmul.f32 %v189, %v194
    %v199 = vmul.f32 %v188, %v194
    %v200 = vadd.f32 %v150, %v196
    %v201 = vadd.f32 %v151, %v197
    %v202 = vadd.f32 %v152, %v198
    %v203 = vadd.f32 %v153, %v199
    %204 = vrot.lane.b32.xlu0 %v45, 63
    %v205 = vpop.permute.xlu0 %204
    %206 = vrot.lane.b32.xlu0 %v46, 63
    %v207 = vpop.permute.xlu0 %206
    %208 = vrot.lane.b32.xlu0 %v47, 63
    %v209 = vpop.permute.xlu0 %208
    %210 = vrot.lane.b32.xlu0 %v48, 63
    %v211 = vpop.permute.xlu0 %210
    %vm212 = vcmp.lt.s32.totalorder %v60, 63
    %v213 = vsel %vm212, %v209, %v211
    %v214 = vsel %vm212, %v207, %v209
    %v215 = vsel %vm212, %v205, %v207
    %v216 = vsel %vm212, %v211, %v205
    %217 = vset.pattern.permute.xlu0 6
    %218 = vperm.xlu0 %217, %v50
    %v219 = vpop.permute.xlu0 %218
    %v221 = vmul.f32 %v216, %v219
    %v222 = vmul.f32 %v215, %v219
    %v223 = vmul.f32 %v214, %v219
    %v224 = vmul.f32 %v213, %v219
    %v225 = vadd.f32 %v175, %v221
    %v226 = vadd.f32 %v176, %v222
    %v227 = vadd.f32 %v177, %v223
    %v228 = vadd.f32 %v178, %v224
    %229 = vrot.lane.b32.xlu0 %v45, 47
    %v230 = vpop.permute.xlu0 %229
    %231 = vrot.lane.b32.xlu0 %v46, 47
    %v232 = vpop.permute.xlu0 %231
    %233 = vrot.lane.b32.xlu0 %v47, 47
    %v234 = vpop.permute.xlu0 %233
    %235 = vrot.lane.b32.xlu0 %v48, 47
    %v236 = vpop.permute.xlu0 %235
    %vm237 = vcmp.lt.s32.totalorder %v60, 47
    %v238 = vsel %vm237, %v234, %v236
    %v239 = vsel %vm237, %v232, %v234
    %v240 = vsel %vm237, %v230, %v232
    %v241 = vsel %vm237, %v236, %v230
    %242 = vset.pattern.permute.xlu0 7
    %243 = vperm.xlu0 %242, %v50
    %v244 = vpop.permute.xlu0 %243
    %v246 = vmul.f32 %v241, %v244
    %v247 = vmul.f32 %v240, %v244
    %v248 = vmul.f32 %v239, %v244
    %v249 = vmul.f32 %v238, %v244
    %v250 = vadd.f32 %v200, %v246
    %v251 = vadd.f32 %v201, %v247
    %v252 = vadd.f32 %v202, %v248
    %v253 = vadd.f32 %v203, %v249
    %254 = vrot.lane.b32.xlu0 %v45, 46
    %v255 = vpop.permute.xlu0 %254
    %256 = vrot.lane.b32.xlu0 %v46, 46
    %v257 = vpop.permute.xlu0 %256
    %258 = vrot.lane.b32.xlu0 %v47, 46
    %v259 = vpop.permute.xlu0 %258
    %260 = vrot.lane.b32.xlu0 %v48, 46
    %v261 = vpop.permute.xlu0 %260
    %vm262 = vcmp.lt.s32.totalorder %v60, 46
    %v263 = vsel %vm262, %v259, %v261
    %v264 = vsel %vm262, %v257, %v259
    %v265 = vsel %vm262, %v255, %v257
    %v266 = vsel %vm262, %v261, %v255
    %267 = vset.pattern.permute.xlu0 8
    %268 = vperm.xlu0 %267, %v50
    %v269 = vpop.permute.xlu0 %268
    %v271 = vmul.f32 %v266, %v269
    %v272 = vmul.f32 %v265, %v269
    %v273 = vmul.f32 %v264, %v269
    %v274 = vmul.f32 %v263, %v269
    %v275 = vadd.f32 %v225, %v271
    %v276 = vadd.f32 %v226, %v272
    %v277 = vadd.f32 %v227, %v273
    %v278 = vadd.f32 %v228, %v274
    %279 = vrot.lane.b32.xlu0 %v45, 45
    %v280 = vpop.permute.xlu0 %279
    %281 = vrot.lane.b32.xlu0 %v46, 45
    %v282 = vpop.permute.xlu0 %281
    %283 = vrot.lane.b32.xlu0 %v47, 45
    %v284 = vpop.permute.xlu0 %283
    %285 = vrot.lane.b32.xlu0 %v48, 45
    %v286 = vpop.permute.xlu0 %285
    %vm287 = vcmp.lt.s32.totalorder %v60, 45
    %v288 = vsel %vm287, %v284, %v286
    %v289 = vsel %vm287, %v282, %v284
    %v290 = vsel %vm287, %v280, %v282
    %v291 = vsel %vm287, %v286, %v280
    %292 = vset.pattern.permute.xlu0 9
    %293 = vperm.xlu0 %292, %v50
    %v294 = vpop.permute.xlu0 %293
    %v296 = vmul.f32 %v291, %v294
    %v297 = vmul.f32 %v290, %v294
    %v298 = vmul.f32 %v289, %v294
    %v299 = vmul.f32 %v288, %v294
    %v300 = vadd.f32 %v250, %v296
    %v301 = vadd.f32 %v251, %v297
    %v302 = vadd.f32 %v252, %v298
    %v303 = vadd.f32 %v253, %v299
    %304 = vrot.lane.b32.xlu0 %v45, 44
    %v305 = vpop.permute.xlu0 %304
    %306 = vrot.lane.b32.xlu0 %v46, 44
    %v307 = vpop.permute.xlu0 %306
    %308 = vrot.lane.b32.xlu0 %v47, 44
    %v309 = vpop.permute.xlu0 %308
    %310 = vrot.lane.b32.xlu0 %v48, 44
    %v311 = vpop.permute.xlu0 %310
    %vm312 = vcmp.lt.s32.totalorder %v60, 44
    %v313 = vsel %vm312, %v309, %v311
    %v314 = vsel %vm312, %v307, %v309
    %v315 = vsel %vm312, %v305, %v307
    %v316 = vsel %vm312, %v311, %v305
    %317 = vset.pattern.permute.xlu0 10
    %318 = vperm.xlu0 %317, %v50
    %v319 = vpop.permute.xlu0 %318
    %v321 = vmul.f32 %v316, %v319
    %v322 = vmul.f32 %v315, %v319
    %v323 = vmul.f32 %v314, %v319
    %v324 = vmul.f32 %v313, %v319
    %v325 = vadd.f32 %v275, %v321
    %v326 = vadd.f32 %v276, %v322
    %v327 = vadd.f32 %v277, %v323
    %v328 = vadd.f32 %v278, %v324
    %329 = vrot.lane.b32.xlu0 %v45, 43
    %v330 = vpop.permute.xlu0 %329
    %331 = vrot.lane.b32.xlu0 %v46, 43
    %v332 = vpop.permute.xlu0 %331
    %333 = vrot.lane.b32.xlu0 %v47, 43
    %v334 = vpop.permute.xlu0 %333
    %335 = vrot.lane.b32.xlu0 %v48, 43
    %v336 = vpop.permute.xlu0 %335
    %vm337 = vcmp.lt.s32.totalorder %v60, 43
    %v338 = vsel %vm337, %v334, %v336
    %v339 = vsel %vm337, %v332, %v334
    %v340 = vsel %vm337, %v330, %v332
    %v341 = vsel %vm337, %v336, %v330
    %342 = vset.pattern.permute.xlu0 11
    %343 = vperm.xlu0 %342, %v50
    %v344 = vpop.permute.xlu0 %343
    %v346 = vmul.f32 %v341, %v344
    %v347 = vmul.f32 %v340, %v344
    %v348 = vmul.f32 %v339, %v344
    %v349 = vmul.f32 %v338, %v344
    %v350 = vadd.f32 %v300, %v346
    %v351 = vadd.f32 %v301, %v347
    %v352 = vadd.f32 %v302, %v348
    %v353 = vadd.f32 %v303, %v349
    %354 = vrot.lane.b32.xlu0 %v45, 42
    %v355 = vpop.permute.xlu0 %354
    %356 = vrot.lane.b32.xlu0 %v46, 42
    %v357 = vpop.permute.xlu0 %356
    %358 = vrot.lane.b32.xlu0 %v47, 42
    %v359 = vpop.permute.xlu0 %358
    %360 = vrot.lane.b32.xlu0 %v48, 42
    %v361 = vpop.permute.xlu0 %360
    %vm362 = vcmp.lt.s32.totalorder %v60, 42
    %v363 = vsel %vm362, %v359, %v361
    %v364 = vsel %vm362, %v357, %v359
    %v365 = vsel %vm362, %v355, %v357
    %v366 = vsel %vm362, %v361, %v355
    %367 = vset.pattern.permute.xlu0 12
    %368 = vperm.xlu0 %367, %v50
    %v369 = vpop.permute.xlu0 %368
    %v371 = vmul.f32 %v366, %v369
    %v372 = vmul.f32 %v365, %v369
    %v373 = vmul.f32 %v364, %v369
    %v374 = vmul.f32 %v363, %v369
    %v375 = vadd.f32 %v325, %v371
    %v376 = vadd.f32 %v326, %v372
    %v377 = vadd.f32 %v327, %v373
    %v378 = vadd.f32 %v328, %v374
    %379 = vrot.lane.b32.xlu0 %v45, 41
    %v380 = vpop.permute.xlu0 %379
    %381 = vrot.lane.b32.xlu0 %v46, 41
    %v382 = vpop.permute.xlu0 %381
    %383 = vrot.lane.b32.xlu0 %v47, 41
    %v384 = vpop.permute.xlu0 %383
    %385 = vrot.lane.b32.xlu0 %v48, 41
    %v386 = vpop.permute.xlu0 %385
    %vm387 = vcmp.lt.s32.totalorder %v60, 41
    %v388 = vsel %vm387, %v384, %v386
    %v389 = vsel %vm387, %v382, %v384
    %v390 = vsel %vm387, %v380, %v382
    %v391 = vsel %vm387, %v386, %v380
    %392 = vset.pattern.permute.xlu0 13
    %393 = vperm.xlu0 %392, %v50
    %v394 = vpop.permute.xlu0 %393
    %v396 = vmul.f32 %v391, %v394
    %v397 = vmul.f32 %v390, %v394
    %v398 = vmul.f32 %v389, %v394
    %v399 = vmul.f32 %v388, %v394
    %v400 = vadd.f32 %v350, %v396
    %v401 = vadd.f32 %v351, %v397
    %v402 = vadd.f32 %v352, %v398
    %v403 = vadd.f32 %v353, %v399
    %404 = vrot.lane.b32.xlu0 %v45, 25
    %v405 = vpop.permute.xlu0 %404
    %406 = vrot.lane.b32.xlu0 %v46, 25
    %v407 = vpop.permute.xlu0 %406
    %408 = vrot.lane.b32.xlu0 %v47, 25
    %v409 = vpop.permute.xlu0 %408
    %410 = vrot.lane.b32.xlu0 %v48, 25
    %v411 = vpop.permute.xlu0 %410
    %vm412 = vcmp.lt.s32.totalorder %v60, 25
    %v413 = vsel %vm412, %v409, %v411
    %v414 = vsel %vm412, %v407, %v409
    %v415 = vsel %vm412, %v405, %v407
    %v416 = vsel %vm412, %v411, %v405
    %417 = vset.pattern.permute.xlu0 14
    %418 = vperm.xlu0 %417, %v50
    %v419 = vpop.permute.xlu0 %418
    %v421 = vmul.f32 %v416, %v419
    %v422 = vmul.f32 %v415, %v419
    %v423 = vmul.f32 %v414, %v419
    %v424 = vmul.f32 %v413, %v419
    %v425 = vadd.f32 %v375, %v421
    %v426 = vadd.f32 %v376, %v422
    %v427 = vadd.f32 %v377, %v423
    %v428 = vadd.f32 %v378, %v424
    %429 = vrot.lane.b32.xlu0 %v45, 24
    %v430 = vpop.permute.xlu0 %429
    %431 = vrot.lane.b32.xlu0 %v46, 24
    %v432 = vpop.permute.xlu0 %431
    %433 = vrot.lane.b32.xlu0 %v47, 24
    %v434 = vpop.permute.xlu0 %433
    %435 = vrot.lane.b32.xlu0 %v48, 24
    %v436 = vpop.permute.xlu0 %435
    %vm437 = vcmp.lt.s32.totalorder %v60, 24
    %v438 = vsel %vm437, %v434, %v436
    %v439 = vsel %vm437, %v432, %v434
    %v440 = vsel %vm437, %v430, %v432
    %v441 = vsel %vm437, %v436, %v430
    %442 = vset.pattern.permute.xlu0 15
    %443 = vperm.xlu0 %442, %v50
    %v444 = vpop.permute.xlu0 %443
    %v446 = vmul.f32 %v441, %v444
    %v447 = vmul.f32 %v440, %v444
    %v448 = vmul.f32 %v439, %v444
    %v449 = vmul.f32 %v438, %v444
    %v450 = vadd.f32 %v400, %v446
    %v451 = vadd.f32 %v401, %v447
    %v452 = vadd.f32 %v402, %v448
    %v453 = vadd.f32 %v403, %v449
    %454 = vrot.lane.b32.xlu0 %v45, 23
    %v455 = vpop.permute.xlu0 %454
    %456 = vrot.lane.b32.xlu0 %v46, 23
    %v457 = vpop.permute.xlu0 %456
    %458 = vrot.lane.b32.xlu0 %v47, 23
    %v459 = vpop.permute.xlu0 %458
    %460 = vrot.lane.b32.xlu0 %v48, 23
    %v461 = vpop.permute.xlu0 %460
    %vm462 = vcmp.lt.s32.totalorder %v60, 23
    %v463 = vsel %vm462, %v459, %v461
    %v464 = vsel %vm462, %v457, %v459
    %v465 = vsel %vm462, %v455, %v457
    %v466 = vsel %vm462, %v461, %v455
    %467 = vset.pattern.permute.xlu0 16
    %468 = vperm.xlu0 %467, %v50
    %v469 = vpop.permute.xlu0 %468
    %v471 = vmul.f32 %v466, %v469
    %v472 = vmul.f32 %v465, %v469
    %v473 = vmul.f32 %v464, %v469
    %v474 = vmul.f32 %v463, %v469
    %v475 = vadd.f32 %v425, %v471
    %v476 = vadd.f32 %v426, %v472
    %v477 = vadd.f32 %v427, %v473
    %v478 = vadd.f32 %v428, %v474
    %479 = vrot.lane.b32.xlu0 %v45, 22
    %v480 = vpop.permute.xlu0 %479
    %481 = vrot.lane.b32.xlu0 %v46, 22
    %v482 = vpop.permute.xlu0 %481
    %483 = vrot.lane.b32.xlu0 %v47, 22
    %v484 = vpop.permute.xlu0 %483
    %485 = vrot.lane.b32.xlu0 %v48, 22
    %v486 = vpop.permute.xlu0 %485
    %vm487 = vcmp.lt.s32.totalorder %v60, 22
    %v488 = vsel %vm487, %v484, %v486
    %v489 = vsel %vm487, %v482, %v484
    %v490 = vsel %vm487, %v480, %v482
    %v491 = vsel %vm487, %v486, %v480
    %492 = vset.pattern.permute.xlu0 17
    %493 = vperm.xlu0 %492, %v50
    %v494 = vpop.permute.xlu0 %493
    %v496 = vmul.f32 %v491, %v494
    %v497 = vmul.f32 %v490, %v494
    %v498 = vmul.f32 %v489, %v494
    %v499 = vmul.f32 %v488, %v494
    %v500 = vadd.f32 %v450, %v496
    %v501 = vadd.f32 %v451, %v497
    %v502 = vadd.f32 %v452, %v498
    %v503 = vadd.f32 %v453, %v499
    %504 = vrot.lane.b32.xlu0 %v45, 21
    %v505 = vpop.permute.xlu0 %504
    %506 = vrot.lane.b32.xlu0 %v46, 21
    %v507 = vpop.permute.xlu0 %506
    %508 = vrot.lane.b32.xlu0 %v47, 21
    %v509 = vpop.permute.xlu0 %508
    %510 = vrot.lane.b32.xlu0 %v48, 21
    %v511 = vpop.permute.xlu0 %510
    %vm512 = vcmp.lt.s32.totalorder %v60, 21
    %v513 = vsel %vm512, %v509, %v511
    %v514 = vsel %vm512, %v507, %v509
    %v515 = vsel %vm512, %v505, %v507
    %v516 = vsel %vm512, %v511, %v505
    %517 = vset.pattern.permute.xlu0 18
    %518 = vperm.xlu0 %517, %v50
    %v519 = vpop.permute.xlu0 %518
    %v521 = vmul.f32 %v516, %v519
    %v522 = vmul.f32 %v515, %v519
    %v523 = vmul.f32 %v514, %v519
    %v524 = vmul.f32 %v513, %v519
    %v525 = vadd.f32 %v475, %v521
    %v526 = vadd.f32 %v476, %v522
    %v527 = vadd.f32 %v477, %v523
    %v528 = vadd.f32 %v478, %v524
    %529 = vrot.lane.b32.xlu0 %v45, 20
    %v530 = vpop.permute.xlu0 %529
    %531 = vrot.lane.b32.xlu0 %v46, 20
    %v532 = vpop.permute.xlu0 %531
    %533 = vrot.lane.b32.xlu0 %v47, 20
    %v534 = vpop.permute.xlu0 %533
    %535 = vrot.lane.b32.xlu0 %v48, 20
    %v536 = vpop.permute.xlu0 %535
    %vm537 = vcmp.lt.s32.totalorder %v60, 20
    %v538 = vsel %vm537, %v534, %v536
    %v539 = vsel %vm537, %v532, %v534
    %v540 = vsel %vm537, %v530, %v532
    %v541 = vsel %vm537, %v536, %v530
    %542 = vset.pattern.permute.xlu0 19
    %543 = vperm.xlu0 %542, %v50
    %v544 = vpop.permute.xlu0 %543
    %v546 = vmul.f32 %v541, %v544
    %v547 = vmul.f32 %v540, %v544
    %v548 = vmul.f32 %v539, %v544
    %v549 = vmul.f32 %v538, %v544
    %v550 = vadd.f32 %v500, %v546
    %v551 = vadd.f32 %v501, %v547
    %v552 = vadd.f32 %v502, %v548
    %v553 = vadd.f32 %v503, %v549
    %554 = vrot.lane.b32.xlu0 %v45, 19
    %v555 = vpop.permute.xlu0 %554
    %556 = vrot.lane.b32.xlu0 %v46, 19
    %v557 = vpop.permute.xlu0 %556
    %558 = vrot.lane.b32.xlu0 %v47, 19
    %v559 = vpop.permute.xlu0 %558
    %560 = vrot.lane.b32.xlu0 %v48, 19
    %v561 = vpop.permute.xlu0 %560
    %vm562 = vcmp.lt.s32.totalorder %v60, 19
    %v563 = vsel %vm562, %v559, %v561
    %v564 = vsel %vm562, %v557, %v559
    %v565 = vsel %vm562, %v555, %v557
    %v566 = vsel %vm562, %v561, %v555
    %567 = vset.pattern.permute.xlu0 20
    %568 = vperm.xlu0 %567, %v50
    %v569 = vpop.permute.xlu0 %568
    %v571 = vmul.f32 %v566, %v569
    %v572 = vmul.f32 %v565, %v569
    %v573 = vmul.f32 %v564, %v569
    %v574 = vmul.f32 %v563, %v569
    %v575 = vadd.f32 %v525, %v571
    %v576 = vadd.f32 %v526, %v572
    %v577 = vadd.f32 %v527, %v573
    %v578 = vadd.f32 %v528, %v574
    %579 = vrot.lane.b32.xlu0 %v45, 3
    %v580 = vpop.permute.xlu0 %579
    %581 = vrot.lane.b32.xlu0 %v46, 3
    %v582 = vpop.permute.xlu0 %581
    %583 = vrot.lane.b32.xlu0 %v47, 3
    %v584 = vpop.permute.xlu0 %583
    %585 = vrot.lane.b32.xlu0 %v48, 3
    %v586 = vpop.permute.xlu0 %585
    %vm587 = vcmp.lt.s32.totalorder %v60, 3
    %v588 = vsel %vm587, %v584, %v586
    %v589 = vsel %vm587, %v582, %v584
    %v590 = vsel %vm587, %v580, %v582
    %v591 = vsel %vm587, %v586, %v580
    %592 = vset.pattern.permute.xlu0 21
    %593 = vperm.xlu0 %592, %v50
    %v594 = vpop.permute.xlu0 %593
    %v596 = vmul.f32 %v591, %v594
    %v597 = vmul.f32 %v590, %v594
    %v598 = vmul.f32 %v589, %v594
    %v599 = vmul.f32 %v588, %v594
    %v600 = vadd.f32 %v550, %v596
    %v601 = vadd.f32 %v551, %v597
    %v602 = vadd.f32 %v552, %v598
    %v603 = vadd.f32 %v553, %v599
    %604 = vrot.lane.b32.xlu0 %v45, 2
    %v605 = vpop.permute.xlu0 %604
    %606 = vrot.lane.b32.xlu0 %v46, 2
    %v607 = vpop.permute.xlu0 %606
    %608 = vrot.lane.b32.xlu0 %v47, 2
    %v609 = vpop.permute.xlu0 %608
    %610 = vrot.lane.b32.xlu0 %v48, 2
    %v611 = vpop.permute.xlu0 %610
    %vm612 = vcmp.lt.s32.totalorder %v60, 2
    %v613 = vsel %vm612, %v609, %v611
    %v614 = vsel %vm612, %v607, %v609
    %v615 = vsel %vm612, %v605, %v607
    %v616 = vsel %vm612, %v611, %v605
    %617 = vset.pattern.permute.xlu0 22
    %618 = vperm.xlu0 %617, %v50
    %v619 = vpop.permute.xlu0 %618
    %v621 = vmul.f32 %v616, %v619
    %v622 = vmul.f32 %v615, %v619
    %v623 = vmul.f32 %v614, %v619
    %v624 = vmul.f32 %v613, %v619
    %v625 = vadd.f32 %v575, %v621
    %v626 = vadd.f32 %v576, %v622
    %v627 = vadd.f32 %v577, %v623
    %v628 = vadd.f32 %v578, %v624
    %629 = vrot.lane.b32.xlu0 %v45, 1
    %v630 = vpop.permute.xlu0 %629
    %631 = vrot.lane.b32.xlu0 %v46, 1
    %v632 = vpop.permute.xlu0 %631
    %633 = vrot.lane.b32.xlu0 %v47, 1
    %v634 = vpop.permute.xlu0 %633
    %635 = vrot.lane.b32.xlu0 %v48, 1
    %v636 = vpop.permute.xlu0 %635
    %vm637 = vcmp.lt.s32.totalorder %v60, 1
    %v638 = vsel %vm637, %v634, %v636
    %v639 = vsel %vm637, %v632, %v634
    %v640 = vsel %vm637, %v630, %v632
    %v641 = vsel %vm637, %v636, %v630
    %642 = vset.pattern.permute.xlu0 23
    %643 = vperm.xlu0 %642, %v50
    %v644 = vpop.permute.xlu0 %643
    %v646 = vmul.f32 %v641, %v644
    %v647 = vmul.f32 %v640, %v644
    %v648 = vmul.f32 %v639, %v644
    %v649 = vmul.f32 %v638, %v644
    %v650 = vadd.f32 %v600, %v646
    %v651 = vadd.f32 %v601, %v647
    %v652 = vadd.f32 %v602, %v648
    %v653 = vadd.f32 %v603, %v649
    %654 = vset.pattern.permute.xlu0 24
    %655 = vperm.xlu0 %654, %v50
    %v656 = vpop.permute.xlu0 %655
    %v658 = vmul.f32 %v45, %v656
    %v659 = vmul.f32 %v46, %v656
    %v660 = vmul.f32 %v47, %v656
    %v661 = vmul.f32 %v48, %v656
    %v662 = vadd.f32 %v625, %v658
    %v663 = vadd.f32 %v626, %v659
    %v664 = vadd.f32 %v627, %v660
    %v665 = vadd.f32 %v628, %v661
    %666 = vrot.lane.b32.xlu0 %v45, 127
    %v667 = vpop.permute.xlu0 %666
    %668 = vrot.lane.b32.xlu0 %v46, 127
    %v669 = vpop.permute.xlu0 %668
    %670 = vrot.lane.b32.xlu0 %v47, 127
    %v671 = vpop.permute.xlu0 %670
    %672 = vrot.lane.b32.xlu0 %v48, 127
    %v673 = vpop.permute.xlu0 %672
    %vm674 = vcmp.lt.s32.totalorder %v60, 127
    %v675 = vsel %vm674, %v671, %v673
    %v676 = vsel %vm674, %v669, %v671
    %v677 = vsel %vm674, %v667, %v669
    %v678 = vsel %vm674, %v673, %v667
    %679 = vset.pattern.permute.xlu0 25
    %680 = vperm.xlu0 %679, %v50
    %v681 = vpop.permute.xlu0 %680
    %v683 = vmul.f32 %v677, %v681
    %v684 = vmul.f32 %v676, %v681
    %v685 = vmul.f32 %v675, %v681
    %v686 = vmul.f32 %v678, %v681
    %v687 = vadd.f32 %v650, %v683
    %v688 = vadd.f32 %v651, %v684
    %v689 = vadd.f32 %v652, %v685
    %v690 = vadd.f32 %v653, %v686
    %691 = vrot.lane.b32.xlu0 %v45, 126
    %v692 = vpop.permute.xlu0 %691
    %693 = vrot.lane.b32.xlu0 %v46, 126
    %v694 = vpop.permute.xlu0 %693
    %695 = vrot.lane.b32.xlu0 %v47, 126
    %v696 = vpop.permute.xlu0 %695
    %697 = vrot.lane.b32.xlu0 %v48, 126
    %v698 = vpop.permute.xlu0 %697
    %vm699 = vcmp.lt.s32.totalorder %v60, 126
    %v700 = vsel %vm699, %v696, %v698
    %v701 = vsel %vm699, %v694, %v696
    %v702 = vsel %vm699, %v692, %v694
    %v703 = vsel %vm699, %v698, %v692
    %704 = vset.pattern.permute.xlu0 26
    %705 = vperm.xlu0 %704, %v50
    %v706 = vpop.permute.xlu0 %705
    %v708 = vmul.f32 %v702, %v706
    %v709 = vmul.f32 %v701, %v706
    %v710 = vmul.f32 %v700, %v706
    %v711 = vmul.f32 %v703, %v706
    %v712 = vadd.f32 %v662, %v708
    %v713 = vadd.f32 %v663, %v709
    %v714 = vadd.f32 %v664, %v710
    %v715 = vadd.f32 %v665, %v711
    %716 = vrot.lane.b32.xlu0 %v45, 125
    %v717 = vpop.permute.xlu0 %716
    %718 = vrot.lane.b32.xlu0 %v46, 125
    %v719 = vpop.permute.xlu0 %718
    %720 = vrot.lane.b32.xlu0 %v47, 125
    %v721 = vpop.permute.xlu0 %720
    %722 = vrot.lane.b32.xlu0 %v48, 125
    %v723 = vpop.permute.xlu0 %722
    %vm724 = vcmp.lt.s32.totalorder %v60, 125
    %v725 = vsel %vm724, %v721, %v723
    %v726 = vsel %vm724, %v719, %v721
    %v727 = vsel %vm724, %v717, %v719
    %v728 = vsel %vm724, %v723, %v717
    %729 = vset.pattern.permute.xlu0 27
    %730 = vperm.xlu0 %729, %v50
    %v731 = vpop.permute.xlu0 %730
    %v733 = vmul.f32 %v727, %v731
    %v734 = vmul.f32 %v726, %v731
    %v735 = vmul.f32 %v725, %v731
    %v736 = vmul.f32 %v728, %v731
    %v737 = vadd.f32 %v687, %v733
    %v738 = vadd.f32 %v688, %v734
    %v739 = vadd.f32 %v689, %v735
    %v740 = vadd.f32 %v690, %v736
    %741 = vrot.lane.b32.xlu0 %v45, 109
    %v742 = vpop.permute.xlu0 %741
    %743 = vrot.lane.b32.xlu0 %v46, 109
    %v744 = vpop.permute.xlu0 %743
    %745 = vrot.lane.b32.xlu0 %v47, 109
    %v746 = vpop.permute.xlu0 %745
    %747 = vrot.lane.b32.xlu0 %v48, 109
    %v748 = vpop.permute.xlu0 %747
    %vm749 = vcmp.lt.s32.totalorder %v60, 109
    %v750 = vsel %vm749, %v746, %v748
    %v751 = vsel %vm749, %v744, %v746
    %v752 = vsel %vm749, %v742, %v744
    %v753 = vsel %vm749, %v748, %v742
    %754 = vset.pattern.permute.xlu0 28
    %755 = vperm.xlu0 %754, %v50
    %v756 = vpop.permute.xlu0 %755
    %v758 = vmul.f32 %v752, %v756
    %v759 = vmul.f32 %v751, %v756
    %v760 = vmul.f32 %v750, %v756
    %v761 = vmul.f32 %v753, %v756
    %v762 = vadd.f32 %v712, %v758
    %v763 = vadd.f32 %v713, %v759
    %v764 = vadd.f32 %v714, %v760
    %v765 = vadd.f32 %v715, %v761
    %766 = vrot.lane.b32.xlu0 %v45, 108
    %v767 = vpop.permute.xlu0 %766
    %768 = vrot.lane.b32.xlu0 %v46, 108
    %v769 = vpop.permute.xlu0 %768
    %770 = vrot.lane.b32.xlu0 %v47, 108
    %v771 = vpop.permute.xlu0 %770
    %772 = vrot.lane.b32.xlu0 %v48, 108
    %v773 = vpop.permute.xlu0 %772
    %vm774 = vcmp.lt.s32.totalorder %v60, 108
    %v775 = vsel %vm774, %v771, %v773
    %v776 = vsel %vm774, %v769, %v771
    %v777 = vsel %vm774, %v767, %v769
    %v778 = vsel %vm774, %v773, %v767
    %779 = vset.pattern.permute.xlu0 29
    %780 = vperm.xlu0 %779, %v50
    %v781 = vpop.permute.xlu0 %780
    %v783 = vmul.f32 %v777, %v781
    %v784 = vmul.f32 %v776, %v781
    %v785 = vmul.f32 %v775, %v781
    %v786 = vmul.f32 %v778, %v781
    %v787 = vadd.f32 %v737, %v783
    %v788 = vadd.f32 %v738, %v784
    %v789 = vadd.f32 %v739, %v785
    %v790 = vadd.f32 %v740, %v786
    %791 = vrot.lane.b32.xlu0 %v45, 107
    %v792 = vpop.permute.xlu0 %791
    %793 = vrot.lane.b32.xlu0 %v46, 107
    %v794 = vpop.permute.xlu0 %793
    %795 = vrot.lane.b32.xlu0 %v47, 107
    %v796 = vpop.permute.xlu0 %795
    %797 = vrot.lane.b32.xlu0 %v48, 107
    %v798 = vpop.permute.xlu0 %797
    %vm799 = vcmp.lt.s32.totalorder %v60, 107
    %v800 = vsel %vm799, %v796, %v798
    %v801 = vsel %vm799, %v794, %v796
    %v802 = vsel %vm799, %v792, %v794
    %v803 = vsel %vm799, %v798, %v792
    %804 = vset.pattern.permute.xlu0 30
    %805 = vperm.xlu0 %804, %v50
    %v806 = vpop.permute.xlu0 %805
    %v808 = vmul.f32 %v802, %v806
    %v809 = vmul.f32 %v801, %v806
    %v810 = vmul.f32 %v800, %v806
    %v811 = vmul.f32 %v803, %v806
    %v812 = vadd.f32 %v762, %v808
    %v813 = vadd.f32 %v763, %v809
    %v814 = vadd.f32 %v764, %v810
    %v815 = vadd.f32 %v765, %v811
    %816 = vrot.lane.b32.xlu0 %v45, 106
    %v817 = vpop.permute.xlu0 %816
    %818 = vrot.lane.b32.xlu0 %v46, 106
    %v819 = vpop.permute.xlu0 %818
    %820 = vrot.lane.b32.xlu0 %v47, 106
    %v821 = vpop.permute.xlu0 %820
    %822 = vrot.lane.b32.xlu0 %v48, 106
    %v823 = vpop.permute.xlu0 %822
    %vm824 = vcmp.lt.s32.totalorder %v60, 106
    %v825 = vsel %vm824, %v821, %v823
    %v826 = vsel %vm824, %v819, %v821
    %v827 = vsel %vm824, %v817, %v819
    %v828 = vsel %vm824, %v823, %v817
    %829 = vset.pattern.permute.xlu0 31
    %830 = vperm.xlu0 %829, %v50
    %v831 = vpop.permute.xlu0 %830
    %v833 = vmul.f32 %v827, %v831
    %v834 = vmul.f32 %v826, %v831
    %v835 = vmul.f32 %v825, %v831
    %v836 = vmul.f32 %v828, %v831
    %v837 = vadd.f32 %v787, %v833
    %v838 = vadd.f32 %v788, %v834
    %v839 = vadd.f32 %v789, %v835
    %v840 = vadd.f32 %v790, %v836
    %841 = vrot.lane.b32.xlu0 %v45, 105
    %v842 = vpop.permute.xlu0 %841
    %843 = vrot.lane.b32.xlu0 %v46, 105
    %v844 = vpop.permute.xlu0 %843
    %845 = vrot.lane.b32.xlu0 %v47, 105
    %v846 = vpop.permute.xlu0 %845
    %847 = vrot.lane.b32.xlu0 %v48, 105
    %v848 = vpop.permute.xlu0 %847
    %vm849 = vcmp.lt.s32.totalorder %v60, 105
    %v850 = vsel %vm849, %v846, %v848
    %v851 = vsel %vm849, %v844, %v846
    %v852 = vsel %vm849, %v842, %v844
    %v853 = vsel %vm849, %v848, %v842
    %854 = vset.pattern.permute.xlu0 32
    %855 = vperm.xlu0 %854, %v50
    %v856 = vpop.permute.xlu0 %855
    %v858 = vmul.f32 %v852, %v856
    %v859 = vmul.f32 %v851, %v856
    %v860 = vmul.f32 %v850, %v856
    %v861 = vmul.f32 %v853, %v856
    %v862 = vadd.f32 %v812, %v858
    %v863 = vadd.f32 %v813, %v859
    %v864 = vadd.f32 %v814, %v860
    %v865 = vadd.f32 %v815, %v861
    %866 = vrot.lane.b32.xlu0 %v45, 104
    %v867 = vpop.permute.xlu0 %866
    %868 = vrot.lane.b32.xlu0 %v46, 104
    %v869 = vpop.permute.xlu0 %868
    %870 = vrot.lane.b32.xlu0 %v47, 104
    %v871 = vpop.permute.xlu0 %870
    %872 = vrot.lane.b32.xlu0 %v48, 104
    %v873 = vpop.permute.xlu0 %872
    %vm874 = vcmp.lt.s32.totalorder %v60, 104
    %v875 = vsel %vm874, %v871, %v873
    %v876 = vsel %vm874, %v869, %v871
    %v877 = vsel %vm874, %v867, %v869
    %v878 = vsel %vm874, %v873, %v867
    %879 = vset.pattern.permute.xlu0 33
    %880 = vperm.xlu0 %879, %v50
    %v881 = vpop.permute.xlu0 %880
    %v883 = vmul.f32 %v877, %v881
    %v884 = vmul.f32 %v876, %v881
    %v885 = vmul.f32 %v875, %v881
    %v886 = vmul.f32 %v878, %v881
    %v887 = vadd.f32 %v837, %v883
    %v888 = vadd.f32 %v838, %v884
    %v889 = vadd.f32 %v839, %v885
    %v890 = vadd.f32 %v840, %v886
    %891 = vrot.lane.b32.xlu0 %v45, 103
    %v892 = vpop.permute.xlu0 %891
    %893 = vrot.lane.b32.xlu0 %v46, 103
    %v894 = vpop.permute.xlu0 %893
    %895 = vrot.lane.b32.xlu0 %v47, 103
    %v896 = vpop.permute.xlu0 %895
    %897 = vrot.lane.b32.xlu0 %v48, 103
    %v898 = vpop.permute.xlu0 %897
    %vm899 = vcmp.lt.s32.totalorder %v60, 103
    %v900 = vsel %vm899, %v896, %v898
    %v901 = vsel %vm899, %v894, %v896
    %v902 = vsel %vm899, %v892, %v894
    %v903 = vsel %vm899, %v898, %v892
    %904 = vset.pattern.permute.xlu0 34
    %905 = vperm.xlu0 %904, %v50
    %v906 = vpop.permute.xlu0 %905
    %v908 = vmul.f32 %v902, %v906
    %v909 = vmul.f32 %v901, %v906
    %v910 = vmul.f32 %v900, %v906
    %v911 = vmul.f32 %v903, %v906
    %v912 = vadd.f32 %v862, %v908
    %v913 = vadd.f32 %v863, %v909
    %v914 = vadd.f32 %v864, %v910
    %v915 = vadd.f32 %v865, %v911
    %916 = vrot.lane.b32.xlu0 %v45, 87
    %v917 = vpop.permute.xlu0 %916
    %918 = vrot.lane.b32.xlu0 %v46, 87
    %v919 = vpop.permute.xlu0 %918
    %920 = vrot.lane.b32.xlu0 %v47, 87
    %v921 = vpop.permute.xlu0 %920
    %922 = vrot.lane.b32.xlu0 %v48, 87
    %v923 = vpop.permute.xlu0 %922
    %vm924 = vcmp.lt.s32.totalorder %v60, 87
    %v925 = vsel %vm924, %v921, %v923
    %v926 = vsel %vm924, %v919, %v921
    %v927 = vsel %vm924, %v917, %v919
    %v928 = vsel %vm924, %v923, %v917
    %929 = vset.pattern.permute.xlu0 35
    %930 = vperm.xlu0 %929, %v50
    %v931 = vpop.permute.xlu0 %930
    %v933 = vmul.f32 %v927, %v931
    %v934 = vmul.f32 %v926, %v931
    %v935 = vmul.f32 %v925, %v931
    %v936 = vmul.f32 %v928, %v931
    %v937 = vadd.f32 %v887, %v933
    %v938 = vadd.f32 %v888, %v934
    %v939 = vadd.f32 %v889, %v935
    %v940 = vadd.f32 %v890, %v936
    %941 = vrot.lane.b32.xlu0 %v45, 86
    %v942 = vpop.permute.xlu0 %941
    %943 = vrot.lane.b32.xlu0 %v46, 86
    %v944 = vpop.permute.xlu0 %943
    %945 = vrot.lane.b32.xlu0 %v47, 86
    %v946 = vpop.permute.xlu0 %945
    %947 = vrot.lane.b32.xlu0 %v48, 86
    %v948 = vpop.permute.xlu0 %947
    %vm949 = vcmp.lt.s32.totalorder %v60, 86
    %v950 = vsel %vm949, %v946, %v948
    %v951 = vsel %vm949, %v944, %v946
    %v952 = vsel %vm949, %v942, %v944
    %v953 = vsel %vm949, %v948, %v942
    %954 = vset.pattern.permute.xlu0 36
    %955 = vperm.xlu0 %954, %v50
    %v956 = vpop.permute.xlu0 %955
    %v958 = vmul.f32 %v952, %v956
    %v959 = vmul.f32 %v951, %v956
    %v960 = vmul.f32 %v950, %v956
    %v961 = vmul.f32 %v953, %v956
    %v962 = vadd.f32 %v912, %v958
    %v963 = vadd.f32 %v913, %v959
    %v964 = vadd.f32 %v914, %v960
    %v965 = vadd.f32 %v915, %v961
    %966 = vrot.lane.b32.xlu0 %v45, 85
    %v967 = vpop.permute.xlu0 %966
    %968 = vrot.lane.b32.xlu0 %v46, 85
    %v969 = vpop.permute.xlu0 %968
    %970 = vrot.lane.b32.xlu0 %v47, 85
    %v971 = vpop.permute.xlu0 %970
    %972 = vrot.lane.b32.xlu0 %v48, 85
    %v973 = vpop.permute.xlu0 %972
    %vm974 = vcmp.lt.s32.totalorder %v60, 85
    %v975 = vsel %vm974, %v971, %v973
    %v976 = vsel %vm974, %v969, %v971
    %v977 = vsel %vm974, %v967, %v969
    %v978 = vsel %vm974, %v973, %v967
    %979 = vset.pattern.permute.xlu0 37
    %980 = vperm.xlu0 %979, %v50
    %v981 = vpop.permute.xlu0 %980
    %v983 = vmul.f32 %v977, %v981
    %v984 = vmul.f32 %v976, %v981
    %v985 = vmul.f32 %v975, %v981
    %v986 = vmul.f32 %v978, %v981
    %v987 = vadd.f32 %v937, %v983
    %v988 = vadd.f32 %v938, %v984
    %v989 = vadd.f32 %v939, %v985
    %v990 = vadd.f32 %v940, %v986
    %991 = vrot.lane.b32.xlu0 %v45, 84
    %v992 = vpop.permute.xlu0 %991
    %993 = vrot.lane.b32.xlu0 %v46, 84
    %v994 = vpop.permute.xlu0 %993
    %995 = vrot.lane.b32.xlu0 %v47, 84
    %v996 = vpop.permute.xlu0 %995
    %997 = vrot.lane.b32.xlu0 %v48, 84
    %v998 = vpop.permute.xlu0 %997
    %vm999 = vcmp.lt.s32.totalorder %v60, 84
    %v1000 = vsel %vm999, %v996, %v998
    %v1001 = vsel %vm999, %v994, %v996
    %v1002 = vsel %vm999, %v992, %v994
    %v1003 = vsel %vm999, %v998, %v992
    %1004 = vset.pattern.permute.xlu0 38
    %1005 = vperm.xlu0 %1004, %v50
    %v1006 = vpop.permute.xlu0 %1005
    %v1008 = vmul.f32 %v1002, %v1006
    %v1009 = vmul.f32 %v1001, %v1006
    %v1010 = vmul.f32 %v1000, %v1006
    %v1011 = vmul.f32 %v1003, %v1006
    %v1012 = vadd.f32 %v962, %v1008
    %v1013 = vadd.f32 %v963, %v1009
    %v1014 = vadd.f32 %v964, %v1010
    %v1015 = vadd.f32 %v965, %v1011
    %1016 = vrot.lane.b32.xlu0 %v45, 83
    %v1017 = vpop.permute.xlu0 %1016
    %1018 = vrot.lane.b32.xlu0 %v46, 83
    %v1019 = vpop.permute.xlu0 %1018
    %1020 = vrot.lane.b32.xlu0 %v47, 83
    %v1021 = vpop.permute.xlu0 %1020
    %1022 = vrot.lane.b32.xlu0 %v48, 83
    %v1023 = vpop.permute.xlu0 %1022
    %vm1024 = vcmp.lt.s32.totalorder %v60, 83
    %v1025 = vsel %vm1024, %v1021, %v1023
    %v1026 = vsel %vm1024, %v1019, %v1021
    %v1027 = vsel %vm1024, %v1017, %v1019
    %v1028 = vsel %vm1024, %v1023, %v1017
    %1029 = vset.pattern.permute.xlu0 39
    %1030 = vperm.xlu0 %1029, %v50
    %v1031 = vpop.permute.xlu0 %1030
    %v1033 = vmul.f32 %v1027, %v1031
    %v1034 = vmul.f32 %v1026, %v1031
    %v1035 = vmul.f32 %v1025, %v1031
    %v1036 = vmul.f32 %v1028, %v1031
    %v1037 = vadd.f32 %v987, %v1033
    %v1038 = vadd.f32 %v988, %v1034
    %v1039 = vadd.f32 %v989, %v1035
    %v1040 = vadd.f32 %v990, %v1036
    %1041 = vrot.lane.b32.xlu0 %v45, 82
    %v1042 = vpop.permute.xlu0 %1041
    %1043 = vrot.lane.b32.xlu0 %v46, 82
    %v1044 = vpop.permute.xlu0 %1043
    %1045 = vrot.lane.b32.xlu0 %v47, 82
    %v1046 = vpop.permute.xlu0 %1045
    %1047 = vrot.lane.b32.xlu0 %v48, 82
    %v1048 = vpop.permute.xlu0 %1047
    %vm1049 = vcmp.lt.s32.totalorder %v60, 82
    %v1050 = vsel %vm1049, %v1046, %v1048
    %v1051 = vsel %vm1049, %v1044, %v1046
    %v1052 = vsel %vm1049, %v1042, %v1044
    %v1053 = vsel %vm1049, %v1048, %v1042
    %1054 = vset.pattern.permute.xlu0 40
    %1055 = vperm.xlu0 %1054, %v50
    %v1056 = vpop.permute.xlu0 %1055
    %v1058 = vmul.f32 %v1052, %v1056
    %v1059 = vmul.f32 %v1051, %v1056
    %v1060 = vmul.f32 %v1050, %v1056
    %v1061 = vmul.f32 %v1053, %v1056
    %v1062 = vadd.f32 %v1012, %v1058
    %v1063 = vadd.f32 %v1013, %v1059
    %v1064 = vadd.f32 %v1014, %v1060
    %v1065 = vadd.f32 %v1015, %v1061
    %1066 = vrot.lane.b32.xlu0 %v45, 81
    %v1067 = vpop.permute.xlu0 %1066
    %1068 = vrot.lane.b32.xlu0 %v46, 81
    %v1069 = vpop.permute.xlu0 %1068
    %1070 = vrot.lane.b32.xlu0 %v47, 81
    %v1071 = vpop.permute.xlu0 %1070
    %1072 = vrot.lane.b32.xlu0 %v48, 81
    %v1073 = vpop.permute.xlu0 %1072
    %vm1074 = vcmp.lt.s32.totalorder %v60, 81
    %v1075 = vsel %vm1074, %v1071, %v1073
    %v1076 = vsel %vm1074, %v1069, %v1071
    %v1077 = vsel %vm1074, %v1067, %v1069
    %v1078 = vsel %vm1074, %v1073, %v1067
    %1079 = vset.pattern.permute.xlu0 41
    %1080 = vperm.xlu0 %1079, %v50
    %v1081 = vpop.permute.xlu0 %1080
    %v1083 = vmul.f32 %v1077, %v1081
    %v1084 = vmul.f32 %v1076, %v1081
    %v1085 = vmul.f32 %v1075, %v1081
    %v1086 = vmul.f32 %v1078, %v1081
    %v1087 = vadd.f32 %v1037, %v1083
    %v1088 = vadd.f32 %v1038, %v1084
    %v1089 = vadd.f32 %v1039, %v1085
    %v1090 = vadd.f32 %v1040, %v1086
    %1091 = vset.pattern.permute.xlu0 42
    %1092 = vperm.xlu0 %1091, %v50
    %v1093 = vpop.permute.xlu0 %1092
    %v1095 = vmul.f32 %v165, %v1093
    %v1096 = vmul.f32 %v164, %v1093
    %v1097 = vmul.f32 %v163, %v1093
    %v1098 = vmul.f32 %v166, %v1093
    %v1099 = vadd.f32 %v1062, %v1095
    %v1100 = vadd.f32 %v1063, %v1096
    %v1101 = vadd.f32 %v1064, %v1097
    %v1102 = vadd.f32 %v1065, %v1098
    %1103 = vset.pattern.permute.xlu0 43
    %1104 = vperm.xlu0 %1103, %v50
    %v1105 = vpop.permute.xlu0 %1104
    %v1107 = vmul.f32 %v190, %v1105
    %v1108 = vmul.f32 %v189, %v1105
    %v1109 = vmul.f32 %v188, %v1105
    %v1110 = vmul.f32 %v191, %v1105
    %v1111 = vadd.f32 %v1087, %v1107
    %v1112 = vadd.f32 %v1088, %v1108
    %v1113 = vadd.f32 %v1089, %v1109
    %v1114 = vadd.f32 %v1090, %v1110
    %1115 = vset.pattern.permute.xlu0 44
    %1116 = vperm.xlu0 %1115, %v50
    %v1117 = vpop.permute.xlu0 %1116
    %v1119 = vmul.f32 %v215, %v1117
    %v1120 = vmul.f32 %v214, %v1117
    %v1121 = vmul.f32 %v213, %v1117
    %v1122 = vmul.f32 %v216, %v1117
    %v1123 = vadd.f32 %v1099, %v1119
    %v1124 = vadd.f32 %v1100, %v1120
    %v1125 = vadd.f32 %v1101, %v1121
    %v1126 = vadd.f32 %v1102, %v1122
    %1127 = vrot.lane.b32.xlu0 %v45, 62
    %v1128 = vpop.permute.xlu0 %1127
    %1129 = vrot.lane.b32.xlu0 %v46, 62
    %v1130 = vpop.permute.xlu0 %1129
    %1131 = vrot.lane.b32.xlu0 %v47, 62
    %v1132 = vpop.permute.xlu0 %1131
    %1133 = vrot.lane.b32.xlu0 %v48, 62
    %v1134 = vpop.permute.xlu0 %1133
    %vm1135 = vcmp.lt.s32.totalorder %v60, 62
    %v1136 = vsel %vm1135, %v1132, %v1134
    %v1137 = vsel %vm1135, %v1130, %v1132
    %v1138 = vsel %vm1135, %v1128, %v1130
    %v1139 = vsel %vm1135, %v1134, %v1128
    %1140 = vset.pattern.permute.xlu0 45
    %1141 = vperm.xlu0 %1140, %v50
    %v1142 = vpop.permute.xlu0 %1141
    %v1144 = vmul.f32 %v1138, %v1142
    %v1145 = vmul.f32 %v1137, %v1142
    %v1146 = vmul.f32 %v1136, %v1142
    %v1147 = vmul.f32 %v1139, %v1142
    %v1148 = vadd.f32 %v1111, %v1144
    %v1149 = vadd.f32 %v1112, %v1145
    %v1150 = vadd.f32 %v1113, %v1146
    %v1151 = vadd.f32 %v1114, %v1147
    %1152 = vrot.lane.b32.xlu0 %v45, 61
    %v1153 = vpop.permute.xlu0 %1152
    %1154 = vrot.lane.b32.xlu0 %v46, 61
    %v1155 = vpop.permute.xlu0 %1154
    %1156 = vrot.lane.b32.xlu0 %v47, 61
    %v1157 = vpop.permute.xlu0 %1156
    %1158 = vrot.lane.b32.xlu0 %v48, 61
    %v1159 = vpop.permute.xlu0 %1158
    %vm1160 = vcmp.lt.s32.totalorder %v60, 61
    %v1161 = vsel %vm1160, %v1157, %v1159
    %v1162 = vsel %vm1160, %v1155, %v1157
    %v1163 = vsel %vm1160, %v1153, %v1155
    %v1164 = vsel %vm1160, %v1159, %v1153
    %1165 = vset.pattern.permute.xlu0 46
    %1166 = vperm.xlu0 %1165, %v50
    %v1167 = vpop.permute.xlu0 %1166
    %v1169 = vmul.f32 %v1163, %v1167
    %v1170 = vmul.f32 %v1162, %v1167
    %v1171 = vmul.f32 %v1161, %v1167
    %v1172 = vmul.f32 %v1164, %v1167
    %v1173 = vadd.f32 %v1123, %v1169
    %v1174 = vadd.f32 %v1124, %v1170
    %v1175 = vadd.f32 %v1125, %v1171
    %v1176 = vadd.f32 %v1126, %v1172
    %1177 = vrot.lane.b32.xlu0 %v45, 60
    %v1178 = vpop.permute.xlu0 %1177
    %1179 = vrot.lane.b32.xlu0 %v46, 60
    %v1180 = vpop.permute.xlu0 %1179
    %1181 = vrot.lane.b32.xlu0 %v47, 60
    %v1182 = vpop.permute.xlu0 %1181
    %1183 = vrot.lane.b32.xlu0 %v48, 60
    %v1184 = vpop.permute.xlu0 %1183
    %vm1185 = vcmp.lt.s32.totalorder %v60, 60
    %v1186 = vsel %vm1185, %v1182, %v1184
    %v1187 = vsel %vm1185, %v1180, %v1182
    %v1188 = vsel %vm1185, %v1178, %v1180
    %v1189 = vsel %vm1185, %v1184, %v1178
    %1190 = vset.pattern.permute.xlu0 47
    %1191 = vperm.xlu0 %1190, %v50
    %v1192 = vpop.permute.xlu0 %1191
    %v1194 = vmul.f32 %v1188, %v1192
    %v1195 = vmul.f32 %v1187, %v1192
    %v1196 = vmul.f32 %v1186, %v1192
    %v1197 = vmul.f32 %v1189, %v1192
    %v1198 = vadd.f32 %v1148, %v1194
    %v1199 = vadd.f32 %v1149, %v1195
    %v1200 = vadd.f32 %v1150, %v1196
    %v1201 = vadd.f32 %v1151, %v1197
    %1202 = vrot.lane.b32.xlu0 %v45, 59
    %v1203 = vpop.permute.xlu0 %1202
    %1204 = vrot.lane.b32.xlu0 %v46, 59
    %v1205 = vpop.permute.xlu0 %1204
    %1206 = vrot.lane.b32.xlu0 %v47, 59
    %v1207 = vpop.permute.xlu0 %1206
    %1208 = vrot.lane.b32.xlu0 %v48, 59
    %v1209 = vpop.permute.xlu0 %1208
    %vm1210 = vcmp.lt.s32.totalorder %v60, 59
    %v1211 = vsel %vm1210, %v1207, %v1209
    %v1212 = vsel %vm1210, %v1205, %v1207
    %v1213 = vsel %vm1210, %v1203, %v1205
    %v1214 = vsel %vm1210, %v1209, %v1203
    %1215 = vset.pattern.permute.xlu0 48
    %1216 = vperm.xlu0 %1215, %v50
    %v1217 = vpop.permute.xlu0 %1216
    %v1219 = vmul.f32 %v1213, %v1217
    %v1220 = vmul.f32 %v1212, %v1217
    %v1221 = vmul.f32 %v1211, %v1217
    %v1222 = vmul.f32 %v1214, %v1217
    %v1223 = vadd.f32 %v1173, %v1219
    %v1224 = vadd.f32 %v1174, %v1220
    %v1225 = vadd.f32 %v1175, %v1221
    %v1226 = vadd.f32 %v1176, %v1222
    %v1227 = vadd.f32 %v1223, %v1198
    %v1228 = vadd.f32 %v1224, %v1199
    %v1229 = vadd.f32 %v1225, %v1200
    %v1230 = vadd.f32 %v1226, %v1201
    %v1231 = vld [vmem:[%s3] sm:$0xff]
    %1233 = vset.pattern.permute.xlu0 0
    %1234 = vperm.xlu0 %1233, %v1231
    %v1235 = vpop.permute.xlu0 %1234
    %v1237 = vadd.f32 %v1227, %v1235
    %v1238 = vadd.f32 %v1228, %v1235
    %v1239 = vadd.f32 %v1229, %v1235
    %v1240 = vadd.f32 %v1230, %v1235
    %v1241 = vld [vmem:[%s4] sm:$0xff]
    %v1242 = vld [vmem:[%s5] sm:$0xff]
    %v1244 = vperm.slane %v49, 0
    %v1245 = vperm.slane %v49, 1
    %v1246 = vperm.slane %v49, 2
    %v1247 = vperm.slane %v49, 3
    %v1252 = vmul.f32 %v1237, %v1244
    %v1253 = vmul.f32 %v1238, %v1245
    %v1254 = vmul.f32 %v1239, %v1246
    %v1255 = vmul.f32 %v1240, %v1247
    %v1256 = vadd.f32 %v1252, %v1253
    %v1257 = vadd.f32 %v1256, %v1254
    %v1258 = vadd.f32 %v1257, %v1255
    %1259 = vadd.xlane.f32.xlu0 %v1258
    %v1260 = vpop.xlane.xlu0 %1259
    %v1261 = vmul.f32 %v1252, %v1252
    %v1262 = vmul.f32 %v1253, %v1253
    %v1263 = vmul.f32 %v1254, %v1254
    %v1264 = vmul.f32 %v1255, %v1255
    %v1265 = vadd.f32 %v1261, %v1262
    %v1266 = vadd.f32 %v1265, %v1263
    %v1267 = vadd.f32 %v1266, %v1264
    %1268 = vadd.xlane.f32.xlu0 %v1267
    %v1269 = vpop.xlane.xlu0 %1268
    %v1270 = vlaneseq
    %v1271 = vshrl.u32 %v1270, 7
    %vm1272 = vcmp.ge.s32.totalorder %v1271, 0
    %vm1273 = vcmp.lt.s32.totalorder %v1271, 4
    %vm1274 = vmand %vm1272, %vm1273
    %v1275 = vsel %vm1274, 1, 0
    %v1276 = vcvt.s32.f32 %v1275
    %v1277 = vmul.f32 %v1260, %v1276
    %vm1278 = vcmask 7168
    %v1279 = vsel %vm1278, %v1277, 0.0
    %1280 = vadd.xlane.f32.xlu0 %v1279
    %v1281 = vpop.xlane.xlu0 %1280
    %v1282 = vrot.slane %v1281, 4
    %v1283 = vadd.f32 %v1281, %v1282
    %v1284 = vrot.slane %v1283, 2
    %v1285 = vadd.f32 %v1283, %v1284
    %v1286 = vrot.slane %v1285, 1
    %v1287 = vadd.f32 %v1285, %v1286
    %s1288 = vtos %v1287
    %v1289 = vmul.f32 %v1269, %v1276
    %v1290 = vsel %vm1278, %v1289, 0.0
    %1291 = vadd.xlane.f32.xlu0 %v1290
    %v1292 = vpop.xlane.xlu0 %1291
    %v1293 = vrot.slane %v1292, 4
    %v1294 = vadd.f32 %v1292, %v1293
    %v1295 = vrot.slane %v1294, 2
    %v1296 = vadd.f32 %v1294, %v1295
    %v1297 = vrot.slane %v1296, 1
    %v1298 = vadd.f32 %v1296, %v1297
    %s1299 = vtos %v1298
    %s1300 = smul.f32 %s1288, 0.0009765625
    %s1301 = smul.f32 %s1299, 0.0009765625
    %s1302 = smul.f32 %s1300, %s1300
    %s1303 = ssub.f32 %s1301, %s1302
    %s1304 = sadd.f32 %s1303, 1e-05
    %v1305 = vstv %s1304
    %v1306 = vrsqrt.pop %v1305
    %v1307 = vmul.f32 %v1306, %v1305
    %v1308 = vmul.f32 %v1307, %v1306
    %v1309 = vmul.f32 0.5, %v1308
    %v1310 = vsub.f32 1.5, %v1309
    %v1311 = vmul.f32 %v1306, %v1310
    %vm1312 = vweird.f32 %v1305
    %vm1313 = vweird.f32 %v1306
    %vm1314 = vmor %vm1312, %vm1313
    %v1315 = vsel %vm1314, %v1306, %v1311
    %s1316 = vtos %v1315
    %v1317 = vstv %s1316
    %v1318 = vmul.f32 %v1276, %v1317
    %v1319 = vadd.f32 %v1318, 0.0
    %s1320 = ssub.f32 0.0, %s1300
    %s1321 = smul.f32 %s1320, %s1316
    %v1322 = vstv %s1321
    %v1323 = vmul.f32 %v1276, %v1322
    %v1324 = vadd.f32 %v1323, 0.0
    %vm1325 = vcmp.ge.s32.totalorder %v1271, 4
    %vm1326 = vcmp.lt.s32.totalorder %v1271, 8
    %vm1327 = vmand %vm1325, %vm1326
    %v1328 = vsel %vm1327, 1, 0
    %v1329 = vcvt.s32.f32 %v1328
    %v1330 = vmul.f32 %v1260, %v1329
    %v1331 = vsel %vm1278, %v1330, 0.0
    %1332 = vadd.xlane.f32.xlu0 %v1331
    %v1333 = vpop.xlane.xlu0 %1332
    %v1334 = vrot.slane %v1333, 4
    %v1335 = vadd.f32 %v1333, %v1334
    %v1336 = vrot.slane %v1335, 2
    %v1337 = vadd.f32 %v1335, %v1336
    %v1338 = vrot.slane %v1337, 1
    %v1339 = vadd.f32 %v1337, %v1338
    %s1340 = vtos %v1339
    %v1341 = vmul.f32 %v1269, %v1329
    %v1342 = vsel %vm1278, %v1341, 0.0
    %1343 = vadd.xlane.f32.xlu0 %v1342
    %v1344 = vpop.xlane.xlu0 %1343
    %v1345 = vrot.slane %v1344, 4
    %v1346 = vadd.f32 %v1344, %v1345
    %v1347 = vrot.slane %v1346, 2
    %v1348 = vadd.f32 %v1346, %v1347
    %v1349 = vrot.slane %v1348, 1
    %v1350 = vadd.f32 %v1348, %v1349
    %s1351 = vtos %v1350
    %s1352 = smul.f32 %s1340, 0.0009765625
    %s1353 = smul.f32 %s1351, 0.0009765625
    %s1354 = smul.f32 %s1352, %s1352
    %s1355 = ssub.f32 %s1353, %s1354
    %s1356 = sadd.f32 %s1355, 1e-05
    %v1357 = vstv %s1356
    %v1358 = vrsqrt.pop %v1357
    %v1359 = vmul.f32 %v1358, %v1357
    %v1360 = vmul.f32 %v1359, %v1358
    %v1361 = vmul.f32 0.5, %v1360
    %v1362 = vsub.f32 1.5, %v1361
    %v1363 = vmul.f32 %v1358, %v1362
    %vm1364 = vweird.f32 %v1357
    %vm1365 = vweird.f32 %v1358
    %vm1366 = vmor %vm1364, %vm1365
    %v1367 = vsel %vm1366, %v1358, %v1363
    %s1368 = vtos %v1367
    %v1369 = vstv %s1368
    %v1370 = vmul.f32 %v1329, %v1369
    %v1371 = vadd.f32 %v1319, %v1370
    %s1372 = ssub.f32 0.0, %s1352
    %s1373 = smul.f32 %s1372, %s1368
    %v1374 = vstv %s1373
    %v1375 = vmul.f32 %v1329, %v1374
    %v1376 = vadd.f32 %v1324, %v1375
    %v1377 = vmul.f32 %v1371, %v1241
    %v1378 = vmul.f32 %v1376, %v1241
    %v1379 = vadd.f32 %v1378, %v1242
    %1381 = vset.pattern.permute.xlu0 0
    %1382 = vperm.xlu0 %1381, %v1377
    %v1383 = vpop.permute.xlu0 %1382
    %v1385 = vmul.f32 %v1237, %v1383
    %v1386 = vmul.f32 %v1238, %v1383
    %v1387 = vmul.f32 %v1239, %v1383
    %v1388 = vmul.f32 %v1240, %v1383
    %1390 = vset.pattern.permute.xlu0 0
    %1391 = vperm.xlu0 %1390, %v1379
    %v1392 = vpop.permute.xlu0 %1391
    %v1394 = vadd.f32 %v1385, %v1392
    %v1395 = vadd.f32 %v1386, %v1392
    %v1396 = vadd.f32 %v1387, %v1392
    %v1397 = vadd.f32 %v1388, %v1392
    %v1398 = vmul.f32 %v1394, %v1244
    %v1399 = vmul.f32 %v1395, %v1245
    %v1400 = vmul.f32 %v1396, %v1246
    %v1401 = vmul.f32 %v1397, %v1247
    %v1402 = vld [vmem:[%s6] sm:$0xff]
    %v1403 = vld [vmem:[%s6 + $0x8] sm:$0xff]
    %v1404 = vld [vmem:[%s6 + $0x10] sm:$0xff]
    %v1405 = vld [vmem:[%s6 + $0x18] sm:$0xff]
    %1406 = vrot.lane.b32.xlu0 %v1398, 23
    %v1407 = vpop.permute.xlu0 %1406
    %1408 = vrot.lane.b32.xlu0 %v1399, 23
    %v1409 = vpop.permute.xlu0 %1408
    %1410 = vrot.lane.b32.xlu0 %v1400, 23
    %v1411 = vpop.permute.xlu0 %1410
    %1412 = vrot.lane.b32.xlu0 %v1401, 23
    %v1413 = vpop.permute.xlu0 %1412
    %v1414 = vsel %vm462, %v1411, %v1413
    %v1415 = vsel %vm462, %v1409, %v1411
    %v1416 = vsel %vm462, %v1407, %v1409
    %v1417 = vsel %vm462, %v1413, %v1407
    %s1418 = scalar_lea.vmem %s6, 32
    %v1419 = vld [vmem:[%s1418] sm:$0xff]
    %v1420 = vld [vmem:[%s1418 + $0x8] sm:$0xff]
    %v1421 = vld [vmem:[%s1418 + $0x10] sm:$0xff]
    %v1422 = vld [vmem:[%s1418 + $0x18] sm:$0xff]
    %1423 = vrot.lane.b32.xlu0 %v1398, 22
    %v1424 = vpop.permute.xlu0 %1423
    %1425 = vrot.lane.b32.xlu0 %v1399, 22
    %v1426 = vpop.permute.xlu0 %1425
    %1427 = vrot.lane.b32.xlu0 %v1400, 22
    %v1428 = vpop.permute.xlu0 %1427
    %1429 = vrot.lane.b32.xlu0 %v1401, 22
    %v1430 = vpop.permute.xlu0 %1429
    %v1431 = vsel %vm487, %v1428, %v1430
    %v1432 = vsel %vm487, %v1426, %v1428
    %v1433 = vsel %vm487, %v1424, %v1426
    %v1434 = vsel %vm487, %v1430, %v1424
    %vm1435 = vcmask 64512
    %v1437 = vsel %vm1435, %v1419, 0
    %v1440 = vsel %vm1435, %v1420, 0
    %v1443 = vsel %vm1435, %v1421, 0
    %v1446 = vsel %vm1435, %v1422, 0
    %1448 = vmatpush.msra.mxu0 0.0
    %1449 = vmatpush.msra.mxu0 0.0
    %1450 = vmatpush.msra.mxu0 0.0
    %1451 = vmatpush.msra.mxu0 0.0
    %1452 = vmatpush.msra.mxu0 0.0
    %1453 = vmatpush.msra.mxu0 0.0
    %1454 = vmatpush.msra.mxu0 0.0
    %1455 = vmatpush.msra.mxu0 0.0
    %1456 = vmatpush.msra.mxu0 0.0
    %1457 = vmatpush.msra.mxu0 0.0
    %1458 = vmatpush.msra.mxu0 0.0
    %1459 = vmatpush.msra.mxu0 0.0
    %1460 = vmatpush.msra.mxu0 0.0
    %1461 = vmatpush.msra.mxu0 0.0
    %1462 = vmatpush.msra.mxu0 0.0
    %1463 = vmatpush.msra.mxu0 %v1434
    %1464 = vmatmul.f32.gmra.mxu0 %v1437
    %v1465 = vpop.f32.mrf.mxu0
    %v1466 = vadd.f32 0.0, %v1465
    %1467 = vmatmul.f32.gmra.mxu0 %v1440
    %v1468 = vpop.f32.mrf.mxu0
    %v1469 = vadd.f32 0.0, %v1468
    %1470 = vmatmul.f32.gmra.mxu0 %v1443
    %v1471 = vpop.f32.mrf.mxu0
    %v1472 = vadd.f32 0.0, %v1471
    %1473 = vmatmul.f32.gmra.mxu0 %v1446
    %v1474 = vpop.f32.mrf.mxu0
    %v1475 = vadd.f32 0.0, %v1474
    %1476 = vdwg.mxu0
    %1477 = vmatpush.msra.mxu0 0.0
    %1478 = vmatpush.msra.mxu0 0.0
    %1479 = vmatpush.msra.mxu0 0.0
    %1480 = vmatpush.msra.mxu0 0.0
    %1481 = vmatpush.msra.mxu0 0.0
    %1482 = vmatpush.msra.mxu0 0.0
    %1483 = vmatpush.msra.mxu0 0.0
    %1484 = vmatpush.msra.mxu0 0.0
    %1485 = vmatpush.msra.mxu0 0.0
    %1486 = vmatpush.msra.mxu0 0.0
    %1487 = vmatpush.msra.mxu0 0.0
    %1488 = vmatpush.msra.mxu0 0.0
    %1489 = vmatpush.msra.mxu0 0.0
    %1490 = vmatpush.msra.mxu0 0.0
    %1491 = vmatpush.msra.mxu0 0.0
    %1492 = vmatpush.msra.mxu0 %v1433
    %1493 = vmatmul.f32.gmra.mxu0 %v1437
    %v1494 = vpop.f32.mrf.mxu0
    %v1495 = vadd.f32 0.0, %v1494
    %1496 = vmatmul.f32.gmra.mxu0 %v1440
    %v1497 = vpop.f32.mrf.mxu0
    %v1498 = vadd.f32 0.0, %v1497
    %1499 = vmatmul.f32.gmra.mxu0 %v1443
    %v1500 = vpop.f32.mrf.mxu0
    %v1501 = vadd.f32 0.0, %v1500
    %1502 = vmatmul.f32.gmra.mxu0 %v1446
    %v1503 = vpop.f32.mrf.mxu0
    %v1504 = vadd.f32 0.0, %v1503
    %1505 = vdwg.mxu0
    %1506 = vmatpush.msra.mxu0 0.0
    %1507 = vmatpush.msra.mxu0 0.0
    %1508 = vmatpush.msra.mxu0 0.0
    %1509 = vmatpush.msra.mxu0 0.0
    %1510 = vmatpush.msra.mxu0 0.0
    %1511 = vmatpush.msra.mxu0 0.0
    %1512 = vmatpush.msra.mxu0 0.0
    %1513 = vmatpush.msra.mxu0 0.0
    %1514 = vmatpush.msra.mxu0 0.0
    %1515 = vmatpush.msra.mxu0 0.0
    %1516 = vmatpush.msra.mxu0 0.0
    %1517 = vmatpush.msra.mxu0 0.0
    %1518 = vmatpush.msra.mxu0 0.0
    %1519 = vmatpush.msra.mxu0 0.0
    %1520 = vmatpush.msra.mxu0 0.0
    %1521 = vmatpush.msra.mxu0 %v1432
    %1522 = vmatmul.f32.gmra.mxu0 %v1437
    %v1523 = vpop.f32.mrf.mxu0
    %v1524 = vadd.f32 0.0, %v1523
    %1525 = vmatmul.f32.gmra.mxu0 %v1440
    %v1526 = vpop.f32.mrf.mxu0
    %v1527 = vadd.f32 0.0, %v1526
    %1528 = vmatmul.f32.gmra.mxu0 %v1443
    %v1529 = vpop.f32.mrf.mxu0
    %v1530 = vadd.f32 0.0, %v1529
    %1531 = vmatmul.f32.gmra.mxu0 %v1446
    %v1532 = vpop.f32.mrf.mxu0
    %v1533 = vadd.f32 0.0, %v1532
    %1534 = vdwg.mxu0
    %1535 = vmatpush.msra.mxu0 0.0
    %1536 = vmatpush.msra.mxu0 0.0
    %1537 = vmatpush.msra.mxu0 0.0
    %1538 = vmatpush.msra.mxu0 0.0
    %1539 = vmatpush.msra.mxu0 0.0
    %1540 = vmatpush.msra.mxu0 0.0
    %1541 = vmatpush.msra.mxu0 0.0
    %1542 = vmatpush.msra.mxu0 0.0
    %1543 = vmatpush.msra.mxu0 0.0
    %1544 = vmatpush.msra.mxu0 0.0
    %1545 = vmatpush.msra.mxu0 0.0
    %1546 = vmatpush.msra.mxu0 0.0
    %1547 = vmatpush.msra.mxu0 0.0
    %1548 = vmatpush.msra.mxu0 0.0
    %1549 = vmatpush.msra.mxu0 0.0
    %1550 = vmatpush.msra.mxu0 %v1431
    %1551 = vmatmul.f32.gmra.mxu0 %v1437
    %v1552 = vpop.f32.mrf.mxu0
    %v1553 = vadd.f32 0.0, %v1552
    %1554 = vmatmul.f32.gmra.mxu0 %v1440
    %v1555 = vpop.f32.mrf.mxu0
    %v1556 = vadd.f32 0.0, %v1555
    %1557 = vmatmul.f32.gmra.mxu0 %v1443
    %v1558 = vpop.f32.mrf.mxu0
    %v1559 = vadd.f32 0.0, %v1558
    %1560 = vmatmul.f32.gmra.mxu0 %v1446
    %v1561 = vpop.f32.mrf.mxu0
    %v1562 = vadd.f32 0.0, %v1561
    %1563 = vdwg.mxu0
    %v1565 = vsel %vm1435, %v1402, 0
    %v1568 = vsel %vm1435, %v1403, 0
    %v1571 = vsel %vm1435, %v1404, 0
    %v1574 = vsel %vm1435, %v1405, 0
    %1576 = vmatpush.msra.mxu0 0.0
    %1577 = vmatpush.msra.mxu0 0.0
    %1578 = vmatpush.msra.mxu0 0.0
    %1579 = vmatpush.msra.mxu0 0.0
    %1580 = vmatpush.msra.mxu0 0.0
    %1581 = vmatpush.msra.mxu0 0.0
    %1582 = vmatpush.msra.mxu0 0.0
    %1583 = vmatpush.msra.mxu0 0.0
    %1584 = vmatpush.msra.mxu0 0.0
    %1585 = vmatpush.msra.mxu0 0.0
    %1586 = vmatpush.msra.mxu0 0.0
    %1587 = vmatpush.msra.mxu0 0.0
    %1588 = vmatpush.msra.mxu0 0.0
    %1589 = vmatpush.msra.mxu0 0.0
    %1590 = vmatpush.msra.mxu0 0.0
    %1591 = vmatpush.msra.mxu0 %v1417
    %1592 = vmatmul.f32.gmra.mxu0 %v1565
    %v1593 = vpop.f32.mrf.mxu0
    %v1594 = vadd.f32 %v1466, %v1593
    %1595 = vmatmul.f32.gmra.mxu0 %v1568
    %v1596 = vpop.f32.mrf.mxu0
    %v1597 = vadd.f32 %v1469, %v1596
    %1598 = vmatmul.f32.gmra.mxu0 %v1571
    %v1599 = vpop.f32.mrf.mxu0
    %v1600 = vadd.f32 %v1472, %v1599
    %1601 = vmatmul.f32.gmra.mxu0 %v1574
    %v1602 = vpop.f32.mrf.mxu0
    %v1603 = vadd.f32 %v1475, %v1602
    %1604 = vdwg.mxu0
    %1605 = vmatpush.msra.mxu0 0.0
    %1606 = vmatpush.msra.mxu0 0.0
    %1607 = vmatpush.msra.mxu0 0.0
    %1608 = vmatpush.msra.mxu0 0.0
    %1609 = vmatpush.msra.mxu0 0.0
    %1610 = vmatpush.msra.mxu0 0.0
    %1611 = vmatpush.msra.mxu0 0.0
    %1612 = vmatpush.msra.mxu0 0.0
    %1613 = vmatpush.msra.mxu0 0.0
    %1614 = vmatpush.msra.mxu0 0.0
    %1615 = vmatpush.msra.mxu0 0.0
    %1616 = vmatpush.msra.mxu0 0.0
    %1617 = vmatpush.msra.mxu0 0.0
    %1618 = vmatpush.msra.mxu0 0.0
    %1619 = vmatpush.msra.mxu0 0.0
    %1620 = vmatpush.msra.mxu0 %v1416
    %1621 = vmatmul.f32.gmra.mxu0 %v1565
    %v1622 = vpop.f32.mrf.mxu0
    %v1623 = vadd.f32 %v1495, %v1622
    %1624 = vmatmul.f32.gmra.mxu0 %v1568
    %v1625 = vpop.f32.mrf.mxu0
    %v1626 = vadd.f32 %v1498, %v1625
    %1627 = vmatmul.f32.gmra.mxu0 %v1571
    %v1628 = vpop.f32.mrf.mxu0
    %v1629 = vadd.f32 %v1501, %v1628
    %1630 = vmatmul.f32.gmra.mxu0 %v1574
    %v1631 = vpop.f32.mrf.mxu0
    %v1632 = vadd.f32 %v1504, %v1631
    %1633 = vdwg.mxu0
    %1634 = vmatpush.msra.mxu0 0.0
    %1635 = vmatpush.msra.mxu0 0.0
    %1636 = vmatpush.msra.mxu0 0.0
    %1637 = vmatpush.msra.mxu0 0.0
    %1638 = vmatpush.msra.mxu0 0.0
    %1639 = vmatpush.msra.mxu0 0.0
    %1640 = vmatpush.msra.mxu0 0.0
    %1641 = vmatpush.msra.mxu0 0.0
    %1642 = vmatpush.msra.mxu0 0.0
    %1643 = vmatpush.msra.mxu0 0.0
    %1644 = vmatpush.msra.mxu0 0.0
    %1645 = vmatpush.msra.mxu0 0.0
    %1646 = vmatpush.msra.mxu0 0.0
    %1647 = vmatpush.msra.mxu0 0.0
    %1648 = vmatpush.msra.mxu0 0.0
    %1649 = vmatpush.msra.mxu0 %v1415
    %1650 = vmatmul.f32.gmra.mxu0 %v1565
    %v1651 = vpop.f32.mrf.mxu0
    %v1652 = vadd.f32 %v1524, %v1651
    %1653 = vmatmul.f32.gmra.mxu0 %v1568
    %v1654 = vpop.f32.mrf.mxu0
    %v1655 = vadd.f32 %v1527, %v1654
    %1656 = vmatmul.f32.gmra.mxu0 %v1571
    %v1657 = vpop.f32.mrf.mxu0
    %v1658 = vadd.f32 %v1530, %v1657
    %1659 = vmatmul.f32.gmra.mxu0 %v1574
    %v1660 = vpop.f32.mrf.mxu0
    %v1661 = vadd.f32 %v1533, %v1660
    %1662 = vdwg.mxu0
    %1663 = vmatpush.msra.mxu0 0.0
    %1664 = vmatpush.msra.mxu0 0.0
    %1665 = vmatpush.msra.mxu0 0.0
    %1666 = vmatpush.msra.mxu0 0.0
    %1667 = vmatpush.msra.mxu0 0.0
    %1668 = vmatpush.msra.mxu0 0.0
    %1669 = vmatpush.msra.mxu0 0.0
    %1670 = vmatpush.msra.mxu0 0.0
    %1671 = vmatpush.msra.mxu0 0.0
    %1672 = vmatpush.msra.mxu0 0.0
    %1673 = vmatpush.msra.mxu0 0.0
    %1674 = vmatpush.msra.mxu0 0.0
    %1675 = vmatpush.msra.mxu0 0.0
    %1676 = vmatpush.msra.mxu0 0.0
    %1677 = vmatpush.msra.mxu0 0.0
    %1678 = vmatpush.msra.mxu0 %v1414
    %1679 = vmatmul.f32.gmra.mxu0 %v1565
    %v1680 = vpop.f32.mrf.mxu0
    %v1681 = vadd.f32 %v1553, %v1680
    %1682 = vmatmul.f32.gmra.mxu0 %v1568
    %v1683 = vpop.f32.mrf.mxu0
    %v1684 = vadd.f32 %v1556, %v1683
    %1685 = vmatmul.f32.gmra.mxu0 %v1571
    %v1686 = vpop.f32.mrf.mxu0
    %v1687 = vadd.f32 %v1559, %v1686
    %1688 = vmatmul.f32.gmra.mxu0 %v1574
    %v1689 = vpop.f32.mrf.mxu0
    %v1690 = vadd.f32 %v1562, %v1689
    %1691 = vdwg.mxu0
    %s1692 = scalar_lea.vmem %s6, 64
    %v1693 = vld [vmem:[%s1692] sm:$0xff]
    %v1694 = vld [vmem:[%s1692 + $0x8] sm:$0xff]
    %v1695 = vld [vmem:[%s1692 + $0x10] sm:$0xff]
    %v1696 = vld [vmem:[%s1692 + $0x18] sm:$0xff]
    %1697 = vrot.lane.b32.xlu0 %v1398, 21
    %v1698 = vpop.permute.xlu0 %1697
    %1699 = vrot.lane.b32.xlu0 %v1399, 21
    %v1700 = vpop.permute.xlu0 %1699
    %1701 = vrot.lane.b32.xlu0 %v1400, 21
    %v1702 = vpop.permute.xlu0 %1701
    %1703 = vrot.lane.b32.xlu0 %v1401, 21
    %v1704 = vpop.permute.xlu0 %1703
    %v1705 = vsel %vm512, %v1702, %v1704
    %v1706 = vsel %vm512, %v1700, %v1702
    %v1707 = vsel %vm512, %v1698, %v1700
    %v1708 = vsel %vm512, %v1704, %v1698
    %v1710 = vsel %vm1435, %v1693, 0
    %v1713 = vsel %vm1435, %v1694, 0
    %v1716 = vsel %vm1435, %v1695, 0
    %v1719 = vsel %vm1435, %v1696, 0
    %1721 = vmatpush.msra.mxu0 0.0
    %1722 = vmatpush.msra.mxu0 0.0
    %1723 = vmatpush.msra.mxu0 0.0
    %1724 = vmatpush.msra.mxu0 0.0
    %1725 = vmatpush.msra.mxu0 0.0
    %1726 = vmatpush.msra.mxu0 0.0
    %1727 = vmatpush.msra.mxu0 0.0
    %1728 = vmatpush.msra.mxu0 0.0
    %1729 = vmatpush.msra.mxu0 0.0
    %1730 = vmatpush.msra.mxu0 0.0
    %1731 = vmatpush.msra.mxu0 0.0
    %1732 = vmatpush.msra.mxu0 0.0
    %1733 = vmatpush.msra.mxu0 0.0
    %1734 = vmatpush.msra.mxu0 0.0
    %1735 = vmatpush.msra.mxu0 0.0
    %1736 = vmatpush.msra.mxu0 %v1708
    %1737 = vmatmul.f32.gmra.mxu0 %v1710
    %v1738 = vpop.f32.mrf.mxu0
    %v1739 = vadd.f32 0.0, %v1738
    %1740 = vmatmul.f32.gmra.mxu0 %v1713
    %v1741 = vpop.f32.mrf.mxu0
    %v1742 = vadd.f32 0.0, %v1741
    %1743 = vmatmul.f32.gmra.mxu0 %v1716
    %v1744 = vpop.f32.mrf.mxu0
    %v1745 = vadd.f32 0.0, %v1744
    %1746 = vmatmul.f32.gmra.mxu0 %v1719
    %v1747 = vpop.f32.mrf.mxu0
    %v1748 = vadd.f32 0.0, %v1747
    %1749 = vdwg.mxu0
    %1750 = vmatpush.msra.mxu0 0.0
    %1751 = vmatpush.msra.mxu0 0.0
    %1752 = vmatpush.msra.mxu0 0.0
    %1753 = vmatpush.msra.mxu0 0.0
    %1754 = vmatpush.msra.mxu0 0.0
    %1755 = vmatpush.msra.mxu0 0.0
    %1756 = vmatpush.msra.mxu0 0.0
    %1757 = vmatpush.msra.mxu0 0.0
    %1758 = vmatpush.msra.mxu0 0.0
    %1759 = vmatpush.msra.mxu0 0.0
    %1760 = vmatpush.msra.mxu0 0.0
    %1761 = vmatpush.msra.mxu0 0.0
    %1762 = vmatpush.msra.mxu0 0.0
    %1763 = vmatpush.msra.mxu0 0.0
    %1764 = vmatpush.msra.mxu0 0.0
    %1765 = vmatpush.msra.mxu0 %v1707
    %1766 = vmatmul.f32.gmra.mxu0 %v1710
    %v1767 = vpop.f32.mrf.mxu0
    %v1768 = vadd.f32 0.0, %v1767
    %1769 = vmatmul.f32.gmra.mxu0 %v1713
    %v1770 = vpop.f32.mrf.mxu0
    %v1771 = vadd.f32 0.0, %v1770
    %1772 = vmatmul.f32.gmra.mxu0 %v1716
    %v1773 = vpop.f32.mrf.mxu0
    %v1774 = vadd.f32 0.0, %v1773
    %1775 = vmatmul.f32.gmra.mxu0 %v1719
    %v1776 = vpop.f32.mrf.mxu0
    %v1777 = vadd.f32 0.0, %v1776
    %1778 = vdwg.mxu0
    %1779 = vmatpush.msra.mxu0 0.0
    %1780 = vmatpush.msra.mxu0 0.0
    %1781 = vmatpush.msra.mxu0 0.0
    %1782 = vmatpush.msra.mxu0 0.0
    %1783 = vmatpush.msra.mxu0 0.0
    %1784 = vmatpush.msra.mxu0 0.0
    %1785 = vmatpush.msra.mxu0 0.0
    %1786 = vmatpush.msra.mxu0 0.0
    %1787 = vmatpush.msra.mxu0 0.0
    %1788 = vmatpush.msra.mxu0 0.0
    %1789 = vmatpush.msra.mxu0 0.0
    %1790 = vmatpush.msra.mxu0 0.0
    %1791 = vmatpush.msra.mxu0 0.0
    %1792 = vmatpush.msra.mxu0 0.0
    %1793 = vmatpush.msra.mxu0 0.0
    %1794 = vmatpush.msra.mxu0 %v1706
    %1795 = vmatmul.f32.gmra.mxu0 %v1710
    %v1796 = vpop.f32.mrf.mxu0
    %v1797 = vadd.f32 0.0, %v1796
    %1798 = vmatmul.f32.gmra.mxu0 %v1713
    %v1799 = vpop.f32.mrf.mxu0
    %v1800 = vadd.f32 0.0, %v1799
    %1801 = vmatmul.f32.gmra.mxu0 %v1716
    %v1802 = vpop.f32.mrf.mxu0
    %v1803 = vadd.f32 0.0, %v1802
    %1804 = vmatmul.f32.gmra.mxu0 %v1719
    %v1805 = vpop.f32.mrf.mxu0
    %v1806 = vadd.f32 0.0, %v1805
    %1807 = vdwg.mxu0
    %1808 = vmatpush.msra.mxu0 0.0
    %1809 = vmatpush.msra.mxu0 0.0
    %1810 = vmatpush.msra.mxu0 0.0
    %1811 = vmatpush.msra.mxu0 0.0
    %1812 = vmatpush.msra.mxu0 0.0
    %1813 = vmatpush.msra.mxu0 0.0
    %1814 = vmatpush.msra.mxu0 0.0
    %1815 = vmatpush.msra.mxu0 0.0
    %1816 = vmatpush.msra.mxu0 0.0
    %1817 = vmatpush.msra.mxu0 0.0
    %1818 = vmatpush.msra.mxu0 0.0
    %1819 = vmatpush.msra.mxu0 0.0
    %1820 = vmatpush.msra.mxu0 0.0
    %1821 = vmatpush.msra.mxu0 0.0
    %1822 = vmatpush.msra.mxu0 0.0
    %1823 = vmatpush.msra.mxu0 %v1705
    %1824 = vmatmul.f32.gmra.mxu0 %v1710
    %v1825 = vpop.f32.mrf.mxu0
    %v1826 = vadd.f32 0.0, %v1825
    %1827 = vmatmul.f32.gmra.mxu0 %v1713
    %v1828 = vpop.f32.mrf.mxu0
    %v1829 = vadd.f32 0.0, %v1828
    %1830 = vmatmul.f32.gmra.mxu0 %v1716
    %v1831 = vpop.f32.mrf.mxu0
    %v1832 = vadd.f32 0.0, %v1831
    %1833 = vmatmul.f32.gmra.mxu0 %v1719
    %v1834 = vpop.f32.mrf.mxu0
    %v1835 = vadd.f32 0.0, %v1834
    %1836 = vdwg.mxu0
    %v1837 = vadd.f32 %v1594, %v1739
    %v1838 = vadd.f32 %v1623, %v1768
    %v1839 = vadd.f32 %v1652, %v1797
    %v1840 = vadd.f32 %v1681, %v1826
    %v1841 = vadd.f32 %v1597, %v1742
    %v1842 = vadd.f32 %v1626, %v1771
    %v1843 = vadd.f32 %v1655, %v1800
    %v1844 = vadd.f32 %v1684, %v1829
    %v1845 = vadd.f32 %v1600, %v1745
    %v1846 = vadd.f32 %v1629, %v1774
    %v1847 = vadd.f32 %v1658, %v1803
    %v1848 = vadd.f32 %v1687, %v1832
    %v1849 = vadd.f32 %v1603, %v1748
    %v1850 = vadd.f32 %v1632, %v1777
    %v1851 = vadd.f32 %v1661, %v1806
    %v1852 = vadd.f32 %v1690, %v1835
    %s1853 = scalar_lea.vmem %s6, 96
    %v1854 = vld [vmem:[%s1853] sm:$0xff]
    %v1855 = vld [vmem:[%s1853 + $0x8] sm:$0xff]
    %v1856 = vld [vmem:[%s1853 + $0x10] sm:$0xff]
    %v1857 = vld [vmem:[%s1853 + $0x18] sm:$0xff]
    %1858 = vrot.lane.b32.xlu0 %v1398, 1
    %v1859 = vpop.permute.xlu0 %1858
    %1860 = vrot.lane.b32.xlu0 %v1399, 1
    %v1861 = vpop.permute.xlu0 %1860
    %1862 = vrot.lane.b32.xlu0 %v1400, 1
    %v1863 = vpop.permute.xlu0 %1862
    %1864 = vrot.lane.b32.xlu0 %v1401, 1
    %v1865 = vpop.permute.xlu0 %1864
    %v1866 = vsel %vm637, %v1863, %v1865
    %v1867 = vsel %vm637, %v1861, %v1863
    %v1868 = vsel %vm637, %v1859, %v1861
    %v1869 = vsel %vm637, %v1865, %v1859
    %v1871 = vsel %vm1435, %v1854, 0
    %v1874 = vsel %vm1435, %v1855, 0
    %v1877 = vsel %vm1435, %v1856, 0
    %v1880 = vsel %vm1435, %v1857, 0
    %1882 = vmatpush.msra.mxu0 0.0
    %1883 = vmatpush.msra.mxu0 0.0
    %1884 = vmatpush.msra.mxu0 0.0
    %1885 = vmatpush.msra.mxu0 0.0
    %1886 = vmatpush.msra.mxu0 0.0
    %1887 = vmatpush.msra.mxu0 0.0
    %1888 = vmatpush.msra.mxu0 0.0
    %1889 = vmatpush.msra.mxu0 0.0
    %1890 = vmatpush.msra.mxu0 0.0
    %1891 = vmatpush.msra.mxu0 0.0
    %1892 = vmatpush.msra.mxu0 0.0
    %1893 = vmatpush.msra.mxu0 0.0
    %1894 = vmatpush.msra.mxu0 0.0
    %1895 = vmatpush.msra.mxu0 0.0
    %1896 = vmatpush.msra.mxu0 0.0
    %1897 = vmatpush.msra.mxu0 %v1869
    %1898 = vmatmul.f32.gmra.mxu0 %v1871
    %v1899 = vpop.f32.mrf.mxu0
    %v1900 = vadd.f32 0.0, %v1899
    %1901 = vmatmul.f32.gmra.mxu0 %v1874
    %v1902 = vpop.f32.mrf.mxu0
    %v1903 = vadd.f32 0.0, %v1902
    %1904 = vmatmul.f32.gmra.mxu0 %v1877
    %v1905 = vpop.f32.mrf.mxu0
    %v1906 = vadd.f32 0.0, %v1905
    %1907 = vmatmul.f32.gmra.mxu0 %v1880
    %v1908 = vpop.f32.mrf.mxu0
    %v1909 = vadd.f32 0.0, %v1908
    %1910 = vdwg.mxu0
    %1911 = vmatpush.msra.mxu0 0.0
    %1912 = vmatpush.msra.mxu0 0.0
    %1913 = vmatpush.msra.mxu0 0.0
    %1914 = vmatpush.msra.mxu0 0.0
    %1915 = vmatpush.msra.mxu0 0.0
    %1916 = vmatpush.msra.mxu0 0.0
    %1917 = vmatpush.msra.mxu0 0.0
    %1918 = vmatpush.msra.mxu0 0.0
    %1919 = vmatpush.msra.mxu0 0.0
    %1920 = vmatpush.msra.mxu0 0.0
    %1921 = vmatpush.msra.mxu0 0.0
    %1922 = vmatpush.msra.mxu0 0.0
    %1923 = vmatpush.msra.mxu0 0.0
    %1924 = vmatpush.msra.mxu0 0.0
    %1925 = vmatpush.msra.mxu0 0.0
    %1926 = vmatpush.msra.mxu0 %v1868
    %1927 = vmatmul.f32.gmra.mxu0 %v1871
    %v1928 = vpop.f32.mrf.mxu0
    %v1929 = vadd.f32 0.0, %v1928
    %1930 = vmatmul.f32.gmra.mxu0 %v1874
    %v1931 = vpop.f32.mrf.mxu0
    %v1932 = vadd.f32 0.0, %v1931
    %1933 = vmatmul.f32.gmra.mxu0 %v1877
    %v1934 = vpop.f32.mrf.mxu0
    %v1935 = vadd.f32 0.0, %v1934
    %1936 = vmatmul.f32.gmra.mxu0 %v1880
    %v1937 = vpop.f32.mrf.mxu0
    %v1938 = vadd.f32 0.0, %v1937
    %1939 = vdwg.mxu0
    %1940 = vmatpush.msra.mxu0 0.0
    %1941 = vmatpush.msra.mxu0 0.0
    %1942 = vmatpush.msra.mxu0 0.0
    %1943 = vmatpush.msra.mxu0 0.0
    %1944 = vmatpush.msra.mxu0 0.0
    %1945 = vmatpush.msra.mxu0 0.0
    %1946 = vmatpush.msra.mxu0 0.0
    %1947 = vmatpush.msra.mxu0 0.0
    %1948 = vmatpush.msra.mxu0 0.0
    %1949 = vmatpush.msra.mxu0 0.0
    %1950 = vmatpush.msra.mxu0 0.0
    %1951 = vmatpush.msra.mxu0 0.0
    %1952 = vmatpush.msra.mxu0 0.0
    %1953 = vmatpush.msra.mxu0 0.0
    %1954 = vmatpush.msra.mxu0 0.0
    %1955 = vmatpush.msra.mxu0 %v1867
    %1956 = vmatmul.f32.gmra.mxu0 %v1871
    %v1957 = vpop.f32.mrf.mxu0
    %v1958 = vadd.f32 0.0, %v1957
    %1959 = vmatmul.f32.gmra.mxu0 %v1874
    %v1960 = vpop.f32.mrf.mxu0
    %v1961 = vadd.f32 0.0, %v1960
    %1962 = vmatmul.f32.gmra.mxu0 %v1877
    %v1963 = vpop.f32.mrf.mxu0
    %v1964 = vadd.f32 0.0, %v1963
    %1965 = vmatmul.f32.gmra.mxu0 %v1880
    %v1966 = vpop.f32.mrf.mxu0
    %v1967 = vadd.f32 0.0, %v1966
    %1968 = vdwg.mxu0
    %1969 = vmatpush.msra.mxu0 0.0
    %1970 = vmatpush.msra.mxu0 0.0
    %1971 = vmatpush.msra.mxu0 0.0
    %1972 = vmatpush.msra.mxu0 0.0
    %1973 = vmatpush.msra.mxu0 0.0
    %1974 = vmatpush.msra.mxu0 0.0
    %1975 = vmatpush.msra.mxu0 0.0
    %1976 = vmatpush.msra.mxu0 0.0
    %1977 = vmatpush.msra.mxu0 0.0
    %1978 = vmatpush.msra.mxu0 0.0
    %1979 = vmatpush.msra.mxu0 0.0
    %1980 = vmatpush.msra.mxu0 0.0
    %1981 = vmatpush.msra.mxu0 0.0
    %1982 = vmatpush.msra.mxu0 0.0
    %1983 = vmatpush.msra.mxu0 0.0
    %1984 = vmatpush.msra.mxu0 %v1866
    %1985 = vmatmul.f32.gmra.mxu0 %v1871
    %v1986 = vpop.f32.mrf.mxu0
    %v1987 = vadd.f32 0.0, %v1986
    %1988 = vmatmul.f32.gmra.mxu0 %v1874
    %v1989 = vpop.f32.mrf.mxu0
    %v1990 = vadd.f32 0.0, %v1989
    %1991 = vmatmul.f32.gmra.mxu0 %v1877
    %v1992 = vpop.f32.mrf.mxu0
    %v1993 = vadd.f32 0.0, %v1992
    %1994 = vmatmul.f32.gmra.mxu0 %v1880
    %v1995 = vpop.f32.mrf.mxu0
    %v1996 = vadd.f32 0.0, %v1995
    %1997 = vdwg.mxu0
    %v1998 = vadd.f32 %v1837, %v1900
    %v1999 = vadd.f32 %v1838, %v1929
    %v2000 = vadd.f32 %v1839, %v1958
    %v2001 = vadd.f32 %v1840, %v1987
    %v2002 = vadd.f32 %v1841, %v1903
    %v2003 = vadd.f32 %v1842, %v1932
    %v2004 = vadd.f32 %v1843, %v1961
    %v2005 = vadd.f32 %v1844, %v1990
    %v2006 = vadd.f32 %v1845, %v1906
    %v2007 = vadd.f32 %v1846, %v1935
    %v2008 = vadd.f32 %v1847, %v1964
    %v2009 = vadd.f32 %v1848, %v1993
    %v2010 = vadd.f32 %v1849, %v1909
    %v2011 = vadd.f32 %v1850, %v1938
    %v2012 = vadd.f32 %v1851, %v1967
    %v2013 = vadd.f32 %v1852, %v1996
    %s2014 = scalar_lea.vmem %s6, 128
    %v2015 = vld [vmem:[%s2014] sm:$0xff]
    %v2016 = vld [vmem:[%s2014 + $0x8] sm:$0xff]
    %v2017 = vld [vmem:[%s2014 + $0x10] sm:$0xff]
    %v2018 = vld [vmem:[%s2014 + $0x18] sm:$0xff]
    %v2020 = vsel %vm1435, %v2015, 0
    %v2023 = vsel %vm1435, %v2016, 0
    %v2026 = vsel %vm1435, %v2017, 0
    %v2029 = vsel %vm1435, %v2018, 0
    %2031 = vmatpush.msra.mxu0 0.0
    %2032 = vmatpush.msra.mxu0 0.0
    %2033 = vmatpush.msra.mxu0 0.0
    %2034 = vmatpush.msra.mxu0 0.0
    %2035 = vmatpush.msra.mxu0 0.0
    %2036 = vmatpush.msra.mxu0 0.0
    %2037 = vmatpush.msra.mxu0 0.0
    %2038 = vmatpush.msra.mxu0 0.0
    %2039 = vmatpush.msra.mxu0 0.0
    %2040 = vmatpush.msra.mxu0 0.0
    %2041 = vmatpush.msra.mxu0 0.0
    %2042 = vmatpush.msra.mxu0 0.0
    %2043 = vmatpush.msra.mxu0 0.0
    %2044 = vmatpush.msra.mxu0 0.0
    %2045 = vmatpush.msra.mxu0 0.0
    %2046 = vmatpush.msra.mxu0 %v1398
    %2047 = vmatmul.f32.gmra.mxu0 %v2020
    %v2048 = vpop.f32.mrf.mxu0
    %v2049 = vadd.f32 0.0, %v2048
    %2050 = vmatmul.f32.gmra.mxu0 %v2023
    %v2051 = vpop.f32.mrf.mxu0
    %v2052 = vadd.f32 0.0, %v2051
    %2053 = vmatmul.f32.gmra.mxu0 %v2026
    %v2054 = vpop.f32.mrf.mxu0
    %v2055 = vadd.f32 0.0, %v2054
    %2056 = vmatmul.f32.gmra.mxu0 %v2029
    %v2057 = vpop.f32.mrf.mxu0
    %v2058 = vadd.f32 0.0, %v2057
    %2059 = vdwg.mxu0
    %2060 = vmatpush.msra.mxu0 0.0
    %2061 = vmatpush.msra.mxu0 0.0
    %2062 = vmatpush.msra.mxu0 0.0
    %2063 = vmatpush.msra.mxu0 0.0
    %2064 = vmatpush.msra.mxu0 0.0
    %2065 = vmatpush.msra.mxu0 0.0
    %2066 = vmatpush.msra.mxu0 0.0
    %2067 = vmatpush.msra.mxu0 0.0
    %2068 = vmatpush.msra.mxu0 0.0
    %2069 = vmatpush.msra.mxu0 0.0
    %2070 = vmatpush.msra.mxu0 0.0
    %2071 = vmatpush.msra.mxu0 0.0
    %2072 = vmatpush.msra.mxu0 0.0
    %2073 = vmatpush.msra.mxu0 0.0
    %2074 = vmatpush.msra.mxu0 0.0
    %2075 = vmatpush.msra.mxu0 %v1399
    %2076 = vmatmul.f32.gmra.mxu0 %v2020
    %v2077 = vpop.f32.mrf.mxu0
    %v2078 = vadd.f32 0.0, %v2077
    %2079 = vmatmul.f32.gmra.mxu0 %v2023
    %v2080 = vpop.f32.mrf.mxu0
    %v2081 = vadd.f32 0.0, %v2080
    %2082 = vmatmul.f32.gmra.mxu0 %v2026
    %v2083 = vpop.f32.mrf.mxu0
    %v2084 = vadd.f32 0.0, %v2083
    %2085 = vmatmul.f32.gmra.mxu0 %v2029
    %v2086 = vpop.f32.mrf.mxu0
    %v2087 = vadd.f32 0.0, %v2086
    %2088 = vdwg.mxu0
    %2089 = vmatpush.msra.mxu0 0.0
    %2090 = vmatpush.msra.mxu0 0.0
    %2091 = vmatpush.msra.mxu0 0.0
    %2092 = vmatpush.msra.mxu0 0.0
    %2093 = vmatpush.msra.mxu0 0.0
    %2094 = vmatpush.msra.mxu0 0.0
    %2095 = vmatpush.msra.mxu0 0.0
    %2096 = vmatpush.msra.mxu0 0.0
    %2097 = vmatpush.msra.mxu0 0.0
    %2098 = vmatpush.msra.mxu0 0.0
    %2099 = vmatpush.msra.mxu0 0.0
    %2100 = vmatpush.msra.mxu0 0.0
    %2101 = vmatpush.msra.mxu0 0.0
    %2102 = vmatpush.msra.mxu0 0.0
    %2103 = vmatpush.msra.mxu0 0.0
    %2104 = vmatpush.msra.mxu0 %v1400
    %2105 = vmatmul.f32.gmra.mxu0 %v2020
    %v2106 = vpop.f32.mrf.mxu0
    %v2107 = vadd.f32 0.0, %v2106
    %2108 = vmatmul.f32.gmra.mxu0 %v2023
    %v2109 = vpop.f32.mrf.mxu0
    %v2110 = vadd.f32 0.0, %v2109
    %2111 = vmatmul.f32.gmra.mxu0 %v2026
    %v2112 = vpop.f32.mrf.mxu0
    %v2113 = vadd.f32 0.0, %v2112
    %2114 = vmatmul.f32.gmra.mxu0 %v2029
    %v2115 = vpop.f32.mrf.mxu0
    %v2116 = vadd.f32 0.0, %v2115
    %2117 = vdwg.mxu0
    %2118 = vmatpush.msra.mxu0 0.0
    %2119 = vmatpush.msra.mxu0 0.0
    %2120 = vmatpush.msra.mxu0 0.0
    %2121 = vmatpush.msra.mxu0 0.0
    %2122 = vmatpush.msra.mxu0 0.0
    %2123 = vmatpush.msra.mxu0 0.0
    %2124 = vmatpush.msra.mxu0 0.0
    %2125 = vmatpush.msra.mxu0 0.0
    %2126 = vmatpush.msra.mxu0 0.0
    %2127 = vmatpush.msra.mxu0 0.0
    %2128 = vmatpush.msra.mxu0 0.0
    %2129 = vmatpush.msra.mxu0 0.0
    %2130 = vmatpush.msra.mxu0 0.0
    %2131 = vmatpush.msra.mxu0 0.0
    %2132 = vmatpush.msra.mxu0 0.0
    %2133 = vmatpush.msra.mxu0 %v1401
    %2134 = vmatmul.f32.gmra.mxu0 %v2020
    %v2135 = vpop.f32.mrf.mxu0
    %v2136 = vadd.f32 0.0, %v2135
    %2137 = vmatmul.f32.gmra.mxu0 %v2023
    %v2138 = vpop.f32.mrf.mxu0
    %v2139 = vadd.f32 0.0, %v2138
    %2140 = vmatmul.f32.gmra.mxu0 %v2026
    %v2141 = vpop.f32.mrf.mxu0
    %v2142 = vadd.f32 0.0, %v2141
    %2143 = vmatmul.f32.gmra.mxu0 %v2029
    %v2144 = vpop.f32.mrf.mxu0
    %v2145 = vadd.f32 0.0, %v2144
    %2146 = vdwg.mxu0
    %v2147 = vadd.f32 %v1998, %v2049
    %v2148 = vadd.f32 %v1999, %v2078
    %v2149 = vadd.f32 %v2000, %v2107
    %v2150 = vadd.f32 %v2001, %v2136
    %v2151 = vadd.f32 %v2002, %v2052
    %v2152 = vadd.f32 %v2003, %v2081
    %v2153 = vadd.f32 %v2004, %v2110
    %v2154 = vadd.f32 %v2005, %v2139
    %v2155 = vadd.f32 %v2006, %v2055
    %v2156 = vadd.f32 %v2007, %v2084
    %v2157 = vadd.f32 %v2008, %v2113
    %v2158 = vadd.f32 %v2009, %v2142
    %v2159 = vadd.f32 %v2010, %v2058
    %v2160 = vadd.f32 %v2011, %v2087
    %v2161 = vadd.f32 %v2012, %v2116
    %v2162 = vadd.f32 %v2013, %v2145
    %s2163 = scalar_lea.vmem %s6, 160
    %v2164 = vld [vmem:[%s2163] sm:$0xff]
    %v2165 = vld [vmem:[%s2163 + $0x8] sm:$0xff]
    %v2166 = vld [vmem:[%s2163 + $0x10] sm:$0xff]
    %v2167 = vld [vmem:[%s2163 + $0x18] sm:$0xff]
    %2168 = vrot.lane.b32.xlu0 %v1398, 127
    %v2169 = vpop.permute.xlu0 %2168
    %2170 = vrot.lane.b32.xlu0 %v1399, 127
    %v2171 = vpop.permute.xlu0 %2170
    %2172 = vrot.lane.b32.xlu0 %v1400, 127
    %v2173 = vpop.permute.xlu0 %2172
    %2174 = vrot.lane.b32.xlu0 %v1401, 127
    %v2175 = vpop.permute.xlu0 %2174
    %v2176 = vsel %vm674, %v2173, %v2175
    %v2177 = vsel %vm674, %v2171, %v2173
    %v2178 = vsel %vm674, %v2169, %v2171
    %v2179 = vsel %vm674, %v2175, %v2169
    %v2181 = vsel %vm1435, %v2164, 0
    %v2184 = vsel %vm1435, %v2165, 0
    %v2187 = vsel %vm1435, %v2166, 0
    %v2190 = vsel %vm1435, %v2167, 0
    %2192 = vmatpush.msra.mxu0 0.0
    %2193 = vmatpush.msra.mxu0 0.0
    %2194 = vmatpush.msra.mxu0 0.0
    %2195 = vmatpush.msra.mxu0 0.0
    %2196 = vmatpush.msra.mxu0 0.0
    %2197 = vmatpush.msra.mxu0 0.0
    %2198 = vmatpush.msra.mxu0 0.0
    %2199 = vmatpush.msra.mxu0 0.0
    %2200 = vmatpush.msra.mxu0 0.0
    %2201 = vmatpush.msra.mxu0 0.0
    %2202 = vmatpush.msra.mxu0 0.0
    %2203 = vmatpush.msra.mxu0 0.0
    %2204 = vmatpush.msra.mxu0 0.0
    %2205 = vmatpush.msra.mxu0 0.0
    %2206 = vmatpush.msra.mxu0 0.0
    %2207 = vmatpush.msra.mxu0 %v2178
    %2208 = vmatmul.f32.gmra.mxu0 %v2181
    %v2209 = vpop.f32.mrf.mxu0
    %v2210 = vadd.f32 0.0, %v2209
    %2211 = vmatmul.f32.gmra.mxu0 %v2184
    %v2212 = vpop.f32.mrf.mxu0
    %v2213 = vadd.f32 0.0, %v2212
    %2214 = vmatmul.f32.gmra.mxu0 %v2187
    %v2215 = vpop.f32.mrf.mxu0
    %v2216 = vadd.f32 0.0, %v2215
    %2217 = vmatmul.f32.gmra.mxu0 %v2190
    %v2218 = vpop.f32.mrf.mxu0
    %v2219 = vadd.f32 0.0, %v2218
    %2220 = vdwg.mxu0
    %2221 = vmatpush.msra.mxu0 0.0
    %2222 = vmatpush.msra.mxu0 0.0
    %2223 = vmatpush.msra.mxu0 0.0
    %2224 = vmatpush.msra.mxu0 0.0
    %2225 = vmatpush.msra.mxu0 0.0
    %2226 = vmatpush.msra.mxu0 0.0
    %2227 = vmatpush.msra.mxu0 0.0
    %2228 = vmatpush.msra.mxu0 0.0
    %2229 = vmatpush.msra.mxu0 0.0
    %2230 = vmatpush.msra.mxu0 0.0
    %2231 = vmatpush.msra.mxu0 0.0
    %2232 = vmatpush.msra.mxu0 0.0
    %2233 = vmatpush.msra.mxu0 0.0
    %2234 = vmatpush.msra.mxu0 0.0
    %2235 = vmatpush.msra.mxu0 0.0
    %2236 = vmatpush.msra.mxu0 %v2177
    %2237 = vmatmul.f32.gmra.mxu0 %v2181
    %v2238 = vpop.f32.mrf.mxu0
    %v2239 = vadd.f32 0.0, %v2238
    %2240 = vmatmul.f32.gmra.mxu0 %v2184
    %v2241 = vpop.f32.mrf.mxu0
    %v2242 = vadd.f32 0.0, %v2241
    %2243 = vmatmul.f32.gmra.mxu0 %v2187
    %v2244 = vpop.f32.mrf.mxu0
    %v2245 = vadd.f32 0.0, %v2244
    %2246 = vmatmul.f32.gmra.mxu0 %v2190
    %v2247 = vpop.f32.mrf.mxu0
    %v2248 = vadd.f32 0.0, %v2247
    %2249 = vdwg.mxu0
    %2250 = vmatpush.msra.mxu0 0.0
    %2251 = vmatpush.msra.mxu0 0.0
    %2252 = vmatpush.msra.mxu0 0.0
    %2253 = vmatpush.msra.mxu0 0.0
    %2254 = vmatpush.msra.mxu0 0.0
    %2255 = vmatpush.msra.mxu0 0.0
    %2256 = vmatpush.msra.mxu0 0.0
    %2257 = vmatpush.msra.mxu0 0.0
    %2258 = vmatpush.msra.mxu0 0.0
    %2259 = vmatpush.msra.mxu0 0.0
    %2260 = vmatpush.msra.mxu0 0.0
    %2261 = vmatpush.msra.mxu0 0.0
    %2262 = vmatpush.msra.mxu0 0.0
    %2263 = vmatpush.msra.mxu0 0.0
    %2264 = vmatpush.msra.mxu0 0.0
    %2265 = vmatpush.msra.mxu0 %v2176
    %2266 = vmatmul.f32.gmra.mxu0 %v2181
    %v2267 = vpop.f32.mrf.mxu0
    %v2268 = vadd.f32 0.0, %v2267
    %2269 = vmatmul.f32.gmra.mxu0 %v2184
    %v2270 = vpop.f32.mrf.mxu0
    %v2271 = vadd.f32 0.0, %v2270
    %2272 = vmatmul.f32.gmra.mxu0 %v2187
    %v2273 = vpop.f32.mrf.mxu0
    %v2274 = vadd.f32 0.0, %v2273
    %2275 = vmatmul.f32.gmra.mxu0 %v2190
    %v2276 = vpop.f32.mrf.mxu0
    %v2277 = vadd.f32 0.0, %v2276
    %2278 = vdwg.mxu0
    %2279 = vmatpush.msra.mxu0 0.0
    %2280 = vmatpush.msra.mxu0 0.0
    %2281 = vmatpush.msra.mxu0 0.0
    %2282 = vmatpush.msra.mxu0 0.0
    %2283 = vmatpush.msra.mxu0 0.0
    %2284 = vmatpush.msra.mxu0 0.0
    %2285 = vmatpush.msra.mxu0 0.0
    %2286 = vmatpush.msra.mxu0 0.0
    %2287 = vmatpush.msra.mxu0 0.0
    %2288 = vmatpush.msra.mxu0 0.0
    %2289 = vmatpush.msra.mxu0 0.0
    %2290 = vmatpush.msra.mxu0 0.0
    %2291 = vmatpush.msra.mxu0 0.0
    %2292 = vmatpush.msra.mxu0 0.0
    %2293 = vmatpush.msra.mxu0 0.0
    %2294 = vmatpush.msra.mxu0 %v2179
    %2295 = vmatmul.f32.gmra.mxu0 %v2181
    %v2296 = vpop.f32.mrf.mxu0
    %v2297 = vadd.f32 0.0, %v2296
    %2298 = vmatmul.f32.gmra.mxu0 %v2184
    %v2299 = vpop.f32.mrf.mxu0
    %v2300 = vadd.f32 0.0, %v2299
    %2301 = vmatmul.f32.gmra.mxu0 %v2187
    %v2302 = vpop.f32.mrf.mxu0
    %v2303 = vadd.f32 0.0, %v2302
    %2304 = vmatmul.f32.gmra.mxu0 %v2190
    %v2305 = vpop.f32.mrf.mxu0
    %v2306 = vadd.f32 0.0, %v2305
    %2307 = vdwg.mxu0
    %v2308 = vadd.f32 %v2147, %v2210
    %v2309 = vadd.f32 %v2148, %v2239
    %v2310 = vadd.f32 %v2149, %v2268
    %v2311 = vadd.f32 %v2150, %v2297
    %v2312 = vadd.f32 %v2151, %v2213
    %v2313 = vadd.f32 %v2152, %v2242
    %v2314 = vadd.f32 %v2153, %v2271
    %v2315 = vadd.f32 %v2154, %v2300
    %v2316 = vadd.f32 %v2155, %v2216
    %v2317 = vadd.f32 %v2156, %v2245
    %v2318 = vadd.f32 %v2157, %v2274
    %v2319 = vadd.f32 %v2158, %v2303
    %v2320 = vadd.f32 %v2159, %v2219
    %v2321 = vadd.f32 %v2160, %v2248
    %v2322 = vadd.f32 %v2161, %v2277
    %v2323 = vadd.f32 %v2162, %v2306
    %s2324 = scalar_lea.vmem %s6, 192
    %v2325 = vld [vmem:[%s2324] sm:$0xff]
    %v2326 = vld [vmem:[%s2324 + $0x8] sm:$0xff]
    %v2327 = vld [vmem:[%s2324 + $0x10] sm:$0xff]
    %v2328 = vld [vmem:[%s2324 + $0x18] sm:$0xff]
    %2329 = vrot.lane.b32.xlu0 %v1398, 107
    %v2330 = vpop.permute.xlu0 %2329
    %2331 = vrot.lane.b32.xlu0 %v1399, 107
    %v2332 = vpop.permute.xlu0 %2331
    %2333 = vrot.lane.b32.xlu0 %v1400, 107
    %v2334 = vpop.permute.xlu0 %2333
    %2335 = vrot.lane.b32.xlu0 %v1401, 107
    %v2336 = vpop.permute.xlu0 %2335
    %v2337 = vsel %vm799, %v2334, %v2336
    %v2338 = vsel %vm799, %v2332, %v2334
    %v2339 = vsel %vm799, %v2330, %v2332
    %v2340 = vsel %vm799, %v2336, %v2330
    %v2342 = vsel %vm1435, %v2325, 0
    %v2345 = vsel %vm1435, %v2326, 0
    %v2348 = vsel %vm1435, %v2327, 0
    %v2351 = vsel %vm1435, %v2328, 0
    %2353 = vmatpush.msra.mxu0 0.0
    %2354 = vmatpush.msra.mxu0 0.0
    %2355 = vmatpush.msra.mxu0 0.0
    %2356 = vmatpush.msra.mxu0 0.0
    %2357 = vmatpush.msra.mxu0 0.0
    %2358 = vmatpush.msra.mxu0 0.0
    %2359 = vmatpush.msra.mxu0 0.0
    %2360 = vmatpush.msra.mxu0 0.0
    %2361 = vmatpush.msra.mxu0 0.0
    %2362 = vmatpush.msra.mxu0 0.0
    %2363 = vmatpush.msra.mxu0 0.0
    %2364 = vmatpush.msra.mxu0 0.0
    %2365 = vmatpush.msra.mxu0 0.0
    %2366 = vmatpush.msra.mxu0 0.0
    %2367 = vmatpush.msra.mxu0 0.0
    %2368 = vmatpush.msra.mxu0 %v2339
    %2369 = vmatmul.f32.gmra.mxu0 %v2342
    %v2370 = vpop.f32.mrf.mxu0
    %v2371 = vadd.f32 0.0, %v2370
    %2372 = vmatmul.f32.gmra.mxu0 %v2345
    %v2373 = vpop.f32.mrf.mxu0
    %v2374 = vadd.f32 0.0, %v2373
    %2375 = vmatmul.f32.gmra.mxu0 %v2348
    %v2376 = vpop.f32.mrf.mxu0
    %v2377 = vadd.f32 0.0, %v2376
    %2378 = vmatmul.f32.gmra.mxu0 %v2351
    %v2379 = vpop.f32.mrf.mxu0
    %v2380 = vadd.f32 0.0, %v2379
    %2381 = vdwg.mxu0
    %2382 = vmatpush.msra.mxu0 0.0
    %2383 = vmatpush.msra.mxu0 0.0
    %2384 = vmatpush.msra.mxu0 0.0
    %2385 = vmatpush.msra.mxu0 0.0
    %2386 = vmatpush.msra.mxu0 0.0
    %2387 = vmatpush.msra.mxu0 0.0
    %2388 = vmatpush.msra.mxu0 0.0
    %2389 = vmatpush.msra.mxu0 0.0
    %2390 = vmatpush.msra.mxu0 0.0
    %2391 = vmatpush.msra.mxu0 0.0
    %2392 = vmatpush.msra.mxu0 0.0
    %2393 = vmatpush.msra.mxu0 0.0
    %2394 = vmatpush.msra.mxu0 0.0
    %2395 = vmatpush.msra.mxu0 0.0
    %2396 = vmatpush.msra.mxu0 0.0
    %2397 = vmatpush.msra.mxu0 %v2338
    %2398 = vmatmul.f32.gmra.mxu0 %v2342
    %v2399 = vpop.f32.mrf.mxu0
    %v2400 = vadd.f32 0.0, %v2399
    %2401 = vmatmul.f32.gmra.mxu0 %v2345
    %v2402 = vpop.f32.mrf.mxu0
    %v2403 = vadd.f32 0.0, %v2402
    %2404 = vmatmul.f32.gmra.mxu0 %v2348
    %v2405 = vpop.f32.mrf.mxu0
    %v2406 = vadd.f32 0.0, %v2405
    %2407 = vmatmul.f32.gmra.mxu0 %v2351
    %v2408 = vpop.f32.mrf.mxu0
    %v2409 = vadd.f32 0.0, %v2408
    %2410 = vdwg.mxu0
    %2411 = vmatpush.msra.mxu0 0.0
    %2412 = vmatpush.msra.mxu0 0.0
    %2413 = vmatpush.msra.mxu0 0.0
    %2414 = vmatpush.msra.mxu0 0.0
    %2415 = vmatpush.msra.mxu0 0.0
    %2416 = vmatpush.msra.mxu0 0.0
    %2417 = vmatpush.msra.mxu0 0.0
    %2418 = vmatpush.msra.mxu0 0.0
    %2419 = vmatpush.msra.mxu0 0.0
    %2420 = vmatpush.msra.mxu0 0.0
    %2421 = vmatpush.msra.mxu0 0.0
    %2422 = vmatpush.msra.mxu0 0.0
    %2423 = vmatpush.msra.mxu0 0.0
    %2424 = vmatpush.msra.mxu0 0.0
    %2425 = vmatpush.msra.mxu0 0.0
    %2426 = vmatpush.msra.mxu0 %v2337
    %2427 = vmatmul.f32.gmra.mxu0 %v2342
    %v2428 = vpop.f32.mrf.mxu0
    %v2429 = vadd.f32 0.0, %v2428
    %2430 = vmatmul.f32.gmra.mxu0 %v2345
    %v2431 = vpop.f32.mrf.mxu0
    %v2432 = vadd.f32 0.0, %v2431
    %2433 = vmatmul.f32.gmra.mxu0 %v2348
    %v2434 = vpop.f32.mrf.mxu0
    %v2435 = vadd.f32 0.0, %v2434
    %2436 = vmatmul.f32.gmra.mxu0 %v2351
    %v2437 = vpop.f32.mrf.mxu0
    %v2438 = vadd.f32 0.0, %v2437
    %2439 = vdwg.mxu0
    %2440 = vmatpush.msra.mxu0 0.0
    %2441 = vmatpush.msra.mxu0 0.0
    %2442 = vmatpush.msra.mxu0 0.0
    %2443 = vmatpush.msra.mxu0 0.0
    %2444 = vmatpush.msra.mxu0 0.0
    %2445 = vmatpush.msra.mxu0 0.0
    %2446 = vmatpush.msra.mxu0 0.0
    %2447 = vmatpush.msra.mxu0 0.0
    %2448 = vmatpush.msra.mxu0 0.0
    %2449 = vmatpush.msra.mxu0 0.0
    %2450 = vmatpush.msra.mxu0 0.0
    %2451 = vmatpush.msra.mxu0 0.0
    %2452 = vmatpush.msra.mxu0 0.0
    %2453 = vmatpush.msra.mxu0 0.0
    %2454 = vmatpush.msra.mxu0 0.0
    %2455 = vmatpush.msra.mxu0 %v2340
    %2456 = vmatmul.f32.gmra.mxu0 %v2342
    %v2457 = vpop.f32.mrf.mxu0
    %v2458 = vadd.f32 0.0, %v2457
    %2459 = vmatmul.f32.gmra.mxu0 %v2345
    %v2460 = vpop.f32.mrf.mxu0
    %v2461 = vadd.f32 0.0, %v2460
    %2462 = vmatmul.f32.gmra.mxu0 %v2348
    %v2463 = vpop.f32.mrf.mxu0
    %v2464 = vadd.f32 0.0, %v2463
    %2465 = vmatmul.f32.gmra.mxu0 %v2351
    %v2466 = vpop.f32.mrf.mxu0
    %v2467 = vadd.f32 0.0, %v2466
    %2468 = vdwg.mxu0
    %v2469 = vadd.f32 %v2308, %v2371
    %v2470 = vadd.f32 %v2309, %v2400
    %v2471 = vadd.f32 %v2310, %v2429
    %v2472 = vadd.f32 %v2311, %v2458
    %v2473 = vadd.f32 %v2312, %v2374
    %v2474 = vadd.f32 %v2313, %v2403
    %v2475 = vadd.f32 %v2314, %v2432
    %v2476 = vadd.f32 %v2315, %v2461
    %v2477 = vadd.f32 %v2316, %v2377
    %v2478 = vadd.f32 %v2317, %v2406
    %v2479 = vadd.f32 %v2318, %v2435
    %v2480 = vadd.f32 %v2319, %v2464
    %v2481 = vadd.f32 %v2320, %v2380
    %v2482 = vadd.f32 %v2321, %v2409
    %v2483 = vadd.f32 %v2322, %v2438
    %v2484 = vadd.f32 %v2323, %v2467
    %s2485 = scalar_lea.vmem %s6, 224
    %v2486 = vld [vmem:[%s2485] sm:$0xff]
    %v2487 = vld [vmem:[%s2485 + $0x8] sm:$0xff]
    %v2488 = vld [vmem:[%s2485 + $0x10] sm:$0xff]
    %v2489 = vld [vmem:[%s2485 + $0x18] sm:$0xff]
    %2490 = vrot.lane.b32.xlu0 %v1398, 106
    %v2491 = vpop.permute.xlu0 %2490
    %2492 = vrot.lane.b32.xlu0 %v1399, 106
    %v2493 = vpop.permute.xlu0 %2492
    %2494 = vrot.lane.b32.xlu0 %v1400, 106
    %v2495 = vpop.permute.xlu0 %2494
    %2496 = vrot.lane.b32.xlu0 %v1401, 106
    %v2497 = vpop.permute.xlu0 %2496
    %v2498 = vsel %vm824, %v2495, %v2497
    %v2499 = vsel %vm824, %v2493, %v2495
    %v2500 = vsel %vm824, %v2491, %v2493
    %v2501 = vsel %vm824, %v2497, %v2491
    %v2503 = vsel %vm1435, %v2486, 0
    %v2506 = vsel %vm1435, %v2487, 0
    %v2509 = vsel %vm1435, %v2488, 0
    %v2512 = vsel %vm1435, %v2489, 0
    %2514 = vmatpush.msra.mxu0 0.0
    %2515 = vmatpush.msra.mxu0 0.0
    %2516 = vmatpush.msra.mxu0 0.0
    %2517 = vmatpush.msra.mxu0 0.0
    %2518 = vmatpush.msra.mxu0 0.0
    %2519 = vmatpush.msra.mxu0 0.0
    %2520 = vmatpush.msra.mxu0 0.0
    %2521 = vmatpush.msra.mxu0 0.0
    %2522 = vmatpush.msra.mxu0 0.0
    %2523 = vmatpush.msra.mxu0 0.0
    %2524 = vmatpush.msra.mxu0 0.0
    %2525 = vmatpush.msra.mxu0 0.0
    %2526 = vmatpush.msra.mxu0 0.0
    %2527 = vmatpush.msra.mxu0 0.0
    %2528 = vmatpush.msra.mxu0 0.0
    %2529 = vmatpush.msra.mxu0 %v2500
    %2530 = vmatmul.f32.gmra.mxu0 %v2503
    %v2531 = vpop.f32.mrf.mxu0
    %v2532 = vadd.f32 0.0, %v2531
    %2533 = vmatmul.f32.gmra.mxu0 %v2506
    %v2534 = vpop.f32.mrf.mxu0
    %v2535 = vadd.f32 0.0, %v2534
    %2536 = vmatmul.f32.gmra.mxu0 %v2509
    %v2537 = vpop.f32.mrf.mxu0
    %v2538 = vadd.f32 0.0, %v2537
    %2539 = vmatmul.f32.gmra.mxu0 %v2512
    %v2540 = vpop.f32.mrf.mxu0
    %v2541 = vadd.f32 0.0, %v2540
    %2542 = vdwg.mxu0
    %2543 = vmatpush.msra.mxu0 0.0
    %2544 = vmatpush.msra.mxu0 0.0
    %2545 = vmatpush.msra.mxu0 0.0
    %2546 = vmatpush.msra.mxu0 0.0
    %2547 = vmatpush.msra.mxu0 0.0
    %2548 = vmatpush.msra.mxu0 0.0
    %2549 = vmatpush.msra.mxu0 0.0
    %2550 = vmatpush.msra.mxu0 0.0
    %2551 = vmatpush.msra.mxu0 0.0
    %2552 = vmatpush.msra.mxu0 0.0
    %2553 = vmatpush.msra.mxu0 0.0
    %2554 = vmatpush.msra.mxu0 0.0
    %2555 = vmatpush.msra.mxu0 0.0
    %2556 = vmatpush.msra.mxu0 0.0
    %2557 = vmatpush.msra.mxu0 0.0
    %2558 = vmatpush.msra.mxu0 %v2499
    %2559 = vmatmul.f32.gmra.mxu0 %v2503
    %v2560 = vpop.f32.mrf.mxu0
    %v2561 = vadd.f32 0.0, %v2560
    %2562 = vmatmul.f32.gmra.mxu0 %v2506
    %v2563 = vpop.f32.mrf.mxu0
    %v2564 = vadd.f32 0.0, %v2563
    %2565 = vmatmul.f32.gmra.mxu0 %v2509
    %v2566 = vpop.f32.mrf.mxu0
    %v2567 = vadd.f32 0.0, %v2566
    %2568 = vmatmul.f32.gmra.mxu0 %v2512
    %v2569 = vpop.f32.mrf.mxu0
    %v2570 = vadd.f32 0.0, %v2569
    %2571 = vdwg.mxu0
    %2572 = vmatpush.msra.mxu0 0.0
    %2573 = vmatpush.msra.mxu0 0.0
    %2574 = vmatpush.msra.mxu0 0.0
    %2575 = vmatpush.msra.mxu0 0.0
    %2576 = vmatpush.msra.mxu0 0.0
    %2577 = vmatpush.msra.mxu0 0.0
    %2578 = vmatpush.msra.mxu0 0.0
    %2579 = vmatpush.msra.mxu0 0.0
    %2580 = vmatpush.msra.mxu0 0.0
    %2581 = vmatpush.msra.mxu0 0.0
    %2582 = vmatpush.msra.mxu0 0.0
    %2583 = vmatpush.msra.mxu0 0.0
    %2584 = vmatpush.msra.mxu0 0.0
    %2585 = vmatpush.msra.mxu0 0.0
    %2586 = vmatpush.msra.mxu0 0.0
    %2587 = vmatpush.msra.mxu0 %v2498
    %2588 = vmatmul.f32.gmra.mxu0 %v2503
    %v2589 = vpop.f32.mrf.mxu0
    %v2590 = vadd.f32 0.0, %v2589
    %2591 = vmatmul.f32.gmra.mxu0 %v2506
    %v2592 = vpop.f32.mrf.mxu0
    %v2593 = vadd.f32 0.0, %v2592
    %2594 = vmatmul.f32.gmra.mxu0 %v2509
    %v2595 = vpop.f32.mrf.mxu0
    %v2596 = vadd.f32 0.0, %v2595
    %2597 = vmatmul.f32.gmra.mxu0 %v2512
    %v2598 = vpop.f32.mrf.mxu0
    %v2599 = vadd.f32 0.0, %v2598
    %2600 = vdwg.mxu0
    %2601 = vmatpush.msra.mxu0 0.0
    %2602 = vmatpush.msra.mxu0 0.0
    %2603 = vmatpush.msra.mxu0 0.0
    %2604 = vmatpush.msra.mxu0 0.0
    %2605 = vmatpush.msra.mxu0 0.0
    %2606 = vmatpush.msra.mxu0 0.0
    %2607 = vmatpush.msra.mxu0 0.0
    %2608 = vmatpush.msra.mxu0 0.0
    %2609 = vmatpush.msra.mxu0 0.0
    %2610 = vmatpush.msra.mxu0 0.0
    %2611 = vmatpush.msra.mxu0 0.0
    %2612 = vmatpush.msra.mxu0 0.0
    %2613 = vmatpush.msra.mxu0 0.0
    %2614 = vmatpush.msra.mxu0 0.0
    %2615 = vmatpush.msra.mxu0 0.0
    %2616 = vmatpush.msra.mxu0 %v2501
    %2617 = vmatmul.f32.gmra.mxu0 %v2503
    %v2618 = vpop.f32.mrf.mxu0
    %v2619 = vadd.f32 0.0, %v2618
    %2620 = vmatmul.f32.gmra.mxu0 %v2506
    %v2621 = vpop.f32.mrf.mxu0
    %v2622 = vadd.f32 0.0, %v2621
    %2623 = vmatmul.f32.gmra.mxu0 %v2509
    %v2624 = vpop.f32.mrf.mxu0
    %v2625 = vadd.f32 0.0, %v2624
    %2626 = vmatmul.f32.gmra.mxu0 %v2512
    %v2627 = vpop.f32.mrf.mxu0
    %v2628 = vadd.f32 0.0, %v2627
    %2629 = vdwg.mxu0
    %v2630 = vadd.f32 %v2469, %v2532
    %v2631 = vadd.f32 %v2470, %v2561
    %v2632 = vadd.f32 %v2471, %v2590
    %v2633 = vadd.f32 %v2472, %v2619
    %v2634 = vadd.f32 %v2473, %v2535
    %v2635 = vadd.f32 %v2474, %v2564
    %v2636 = vadd.f32 %v2475, %v2593
    %v2637 = vadd.f32 %v2476, %v2622
    %v2638 = vadd.f32 %v2477, %v2538
    %v2639 = vadd.f32 %v2478, %v2567
    %v2640 = vadd.f32 %v2479, %v2596
    %v2641 = vadd.f32 %v2480, %v2625
    %v2642 = vadd.f32 %v2481, %v2541
    %v2643 = vadd.f32 %v2482, %v2570
    %v2644 = vadd.f32 %v2483, %v2599
    %v2645 = vadd.f32 %v2484, %v2628
    %s2646 = scalar_lea.vmem %s6, 256
    %v2647 = vld [vmem:[%s2646] sm:$0xff]
    %v2648 = vld [vmem:[%s2646 + $0x8] sm:$0xff]
    %v2649 = vld [vmem:[%s2646 + $0x10] sm:$0xff]
    %v2650 = vld [vmem:[%s2646 + $0x18] sm:$0xff]
    %2651 = vrot.lane.b32.xlu0 %v1398, 105
    %v2652 = vpop.permute.xlu0 %2651
    %2653 = vrot.lane.b32.xlu0 %v1399, 105
    %v2654 = vpop.permute.xlu0 %2653
    %2655 = vrot.lane.b32.xlu0 %v1400, 105
    %v2656 = vpop.permute.xlu0 %2655
    %2657 = vrot.lane.b32.xlu0 %v1401, 105
    %v2658 = vpop.permute.xlu0 %2657
    %v2659 = vsel %vm849, %v2656, %v2658
    %v2660 = vsel %vm849, %v2654, %v2656
    %v2661 = vsel %vm849, %v2652, %v2654
    %v2662 = vsel %vm849, %v2658, %v2652
    %v2664 = vsel %vm1435, %v2647, 0
    %v2667 = vsel %vm1435, %v2648, 0
    %v2670 = vsel %vm1435, %v2649, 0
    %v2673 = vsel %vm1435, %v2650, 0
    %2675 = vmatpush.msra.mxu0 0.0
    %2676 = vmatpush.msra.mxu0 0.0
    %2677 = vmatpush.msra.mxu0 0.0
    %2678 = vmatpush.msra.mxu0 0.0
    %2679 = vmatpush.msra.mxu0 0.0
    %2680 = vmatpush.msra.mxu0 0.0
    %2681 = vmatpush.msra.mxu0 0.0
    %2682 = vmatpush.msra.mxu0 0.0
    %2683 = vmatpush.msra.mxu0 0.0
    %2684 = vmatpush.msra.mxu0 0.0
    %2685 = vmatpush.msra.mxu0 0.0
    %2686 = vmatpush.msra.mxu0 0.0
    %2687 = vmatpush.msra.mxu0 0.0
    %2688 = vmatpush.msra.mxu0 0.0
    %2689 = vmatpush.msra.mxu0 0.0
    %2690 = vmatpush.msra.mxu0 %v2661
    %2691 = vmatmul.f32.gmra.mxu0 %v2664
    %v2692 = vpop.f32.mrf.mxu0
    %v2693 = vadd.f32 0.0, %v2692
    %2694 = vmatmul.f32.gmra.mxu0 %v2667
    %v2695 = vpop.f32.mrf.mxu0
    %v2696 = vadd.f32 0.0, %v2695
    %2697 = vmatmul.f32.gmra.mxu0 %v2670
    %v2698 = vpop.f32.mrf.mxu0
    %v2699 = vadd.f32 0.0, %v2698
    %2700 = vmatmul.f32.gmra.mxu0 %v2673
    %v2701 = vpop.f32.mrf.mxu0
    %v2702 = vadd.f32 0.0, %v2701
    %2703 = vdwg.mxu0
    %2704 = vmatpush.msra.mxu0 0.0
    %2705 = vmatpush.msra.mxu0 0.0
    %2706 = vmatpush.msra.mxu0 0.0
    %2707 = vmatpush.msra.mxu0 0.0
    %2708 = vmatpush.msra.mxu0 0.0
    %2709 = vmatpush.msra.mxu0 0.0
    %2710 = vmatpush.msra.mxu0 0.0
    %2711 = vmatpush.msra.mxu0 0.0
    %2712 = vmatpush.msra.mxu0 0.0
    %2713 = vmatpush.msra.mxu0 0.0
    %2714 = vmatpush.msra.mxu0 0.0
    %2715 = vmatpush.msra.mxu0 0.0
    %2716 = vmatpush.msra.mxu0 0.0
    %2717 = vmatpush.msra.mxu0 0.0
    %2718 = vmatpush.msra.mxu0 0.0
    %2719 = vmatpush.msra.mxu0 %v2660
    %2720 = vmatmul.f32.gmra.mxu0 %v2664
    %v2721 = vpop.f32.mrf.mxu0
    %v2722 = vadd.f32 0.0, %v2721
    %2723 = vmatmul.f32.gmra.mxu0 %v2667
    %v2724 = vpop.f32.mrf.mxu0
    %v2725 = vadd.f32 0.0, %v2724
    %2726 = vmatmul.f32.gmra.mxu0 %v2670
    %v2727 = vpop.f32.mrf.mxu0
    %v2728 = vadd.f32 0.0, %v2727
    %2729 = vmatmul.f32.gmra.mxu0 %v2673
    %v2730 = vpop.f32.mrf.mxu0
    %v2731 = vadd.f32 0.0, %v2730
    %2732 = vdwg.mxu0
    %2733 = vmatpush.msra.mxu0 0.0
    %2734 = vmatpush.msra.mxu0 0.0
    %2735 = vmatpush.msra.mxu0 0.0
    %2736 = vmatpush.msra.mxu0 0.0
    %2737 = vmatpush.msra.mxu0 0.0
    %2738 = vmatpush.msra.mxu0 0.0
    %2739 = vmatpush.msra.mxu0 0.0
    %2740 = vmatpush.msra.mxu0 0.0
    %2741 = vmatpush.msra.mxu0 0.0
    %2742 = vmatpush.msra.mxu0 0.0
    %2743 = vmatpush.msra.mxu0 0.0
    %2744 = vmatpush.msra.mxu0 0.0
    %2745 = vmatpush.msra.mxu0 0.0
    %2746 = vmatpush.msra.mxu0 0.0
    %2747 = vmatpush.msra.mxu0 0.0
    %2748 = vmatpush.msra.mxu0 %v2659
    %2749 = vmatmul.f32.gmra.mxu0 %v2664
    %v2750 = vpop.f32.mrf.mxu0
    %v2751 = vadd.f32 0.0, %v2750
    %2752 = vmatmul.f32.gmra.mxu0 %v2667
    %v2753 = vpop.f32.mrf.mxu0
    %v2754 = vadd.f32 0.0, %v2753
    %2755 = vmatmul.f32.gmra.mxu0 %v2670
    %v2756 = vpop.f32.mrf.mxu0
    %v2757 = vadd.f32 0.0, %v2756
    %2758 = vmatmul.f32.gmra.mxu0 %v2673
    %v2759 = vpop.f32.mrf.mxu0
    %v2760 = vadd.f32 0.0, %v2759
    %2761 = vdwg.mxu0
    %2762 = vmatpush.msra.mxu0 0.0
    %2763 = vmatpush.msra.mxu0 0.0
    %2764 = vmatpush.msra.mxu0 0.0
    %2765 = vmatpush.msra.mxu0 0.0
    %2766 = vmatpush.msra.mxu0 0.0
    %2767 = vmatpush.msra.mxu0 0.0
    %2768 = vmatpush.msra.mxu0 0.0
    %2769 = vmatpush.msra.mxu0 0.0
    %2770 = vmatpush.msra.mxu0 0.0
    %2771 = vmatpush.msra.mxu0 0.0
    %2772 = vmatpush.msra.mxu0 0.0
    %2773 = vmatpush.msra.mxu0 0.0
    %2774 = vmatpush.msra.mxu0 0.0
    %2775 = vmatpush.msra.mxu0 0.0
    %2776 = vmatpush.msra.mxu0 0.0
    %2777 = vmatpush.msra.mxu0 %v2662
    %2778 = vmatmul.f32.gmra.mxu0 %v2664
    %v2779 = vpop.f32.mrf.mxu0
    %v2780 = vadd.f32 0.0, %v2779
    %2781 = vmatmul.f32.gmra.mxu0 %v2667
    %v2782 = vpop.f32.mrf.mxu0
    %v2783 = vadd.f32 0.0, %v2782
    %2784 = vmatmul.f32.gmra.mxu0 %v2670
    %v2785 = vpop.f32.mrf.mxu0
    %v2786 = vadd.f32 0.0, %v2785
    %2787 = vmatmul.f32.gmra.mxu0 %v2673
    %v2788 = vpop.f32.mrf.mxu0
    %v2789 = vadd.f32 0.0, %v2788
    %2790 = vdwg.mxu0
    %v2791 = vadd.f32 %v2630, %v2693
    %v2792 = vadd.f32 %v2631, %v2722
    %v2793 = vadd.f32 %v2632, %v2751
    %v2794 = vadd.f32 %v2633, %v2780
    %v2795 = vadd.f32 %v2634, %v2696
    %v2796 = vadd.f32 %v2635, %v2725
    %v2797 = vadd.f32 %v2636, %v2754
    %v2798 = vadd.f32 %v2637, %v2783
    %v2799 = vadd.f32 %v2638, %v2699
    %v2800 = vadd.f32 %v2639, %v2728
    %v2801 = vadd.f32 %v2640, %v2757
    %v2802 = vadd.f32 %v2641, %v2786
    %v2803 = vadd.f32 %v2642, %v2702
    %v2804 = vadd.f32 %v2643, %v2731
    %v2805 = vadd.f32 %v2644, %v2760
    %v2806 = vadd.f32 %v2645, %v2789
    %v2807 = vld [vmem:[%s7] sm:$0xff]
    %v2808 = vld [vmem:[%s7 + $0x8] sm:$0xff]
    %v2809 = vld [vmem:[%s7 + $0x10] sm:$0xff]
    %v2810 = vld [vmem:[%s7 + $0x18] sm:$0xff]
    %2812 = vset.pattern.permute.xlu0 0
    %2813 = vperm.xlu0 %2812, %v2807
    %v2814 = vpop.permute.xlu0 %2813
    %2817 = vset.pattern.permute.xlu0 0
    %2818 = vperm.xlu0 %2817, %v2808
    %v2819 = vpop.permute.xlu0 %2818
    %2822 = vset.pattern.permute.xlu0 0
    %2823 = vperm.xlu0 %2822, %v2809
    %v2824 = vpop.permute.xlu0 %2823
    %2827 = vset.pattern.permute.xlu0 0
    %2828 = vperm.xlu0 %2827, %v2810
    %v2829 = vpop.permute.xlu0 %2828
    %v2831 = vadd.f32 %v2791, %v2814
    %v2832 = vadd.f32 %v2792, %v2814
    %v2833 = vadd.f32 %v2793, %v2814
    %v2834 = vadd.f32 %v2794, %v2814
    %v2835 = vadd.f32 %v2795, %v2819
    %v2836 = vadd.f32 %v2796, %v2819
    %v2837 = vadd.f32 %v2797, %v2819
    %v2838 = vadd.f32 %v2798, %v2819
    %v2839 = vadd.f32 %v2799, %v2824
    %v2840 = vadd.f32 %v2800, %v2824
    %v2841 = vadd.f32 %v2801, %v2824
    %v2842 = vadd.f32 %v2802, %v2824
    %v2843 = vadd.f32 %v2803, %v2829
    %v2844 = vadd.f32 %v2804, %v2829
    %v2845 = vadd.f32 %v2805, %v2829
    %v2846 = vadd.f32 %v2806, %v2829
    %v2847 = vmul.f32 %v2831, 0.5
    %v2848 = vmul.f32 %v2832, 0.5
    %v2849 = vmul.f32 %v2833, 0.5
    %v2850 = vmul.f32 %v2834, 0.5
    %v2851 = vmul.f32 %v2835, 0.5
    %v2852 = vmul.f32 %v2836, 0.5
    %v2853 = vmul.f32 %v2837, 0.5
    %v2854 = vmul.f32 %v2838, 0.5
    %v2855 = vmul.f32 %v2839, 0.5
    %v2856 = vmul.f32 %v2840, 0.5
    %v2857 = vmul.f32 %v2841, 0.5
    %v2858 = vmul.f32 %v2842, 0.5
    %v2859 = vmul.f32 %v2843, 0.5
    %v2860 = vmul.f32 %v2844, 0.5
    %v2861 = vmul.f32 %v2845, 0.5
    %v2862 = vmul.f32 %v2846, 0.5
    %v2863 = vmul.f32 %v2831, 0.70710677
    %v2864 = vmul.f32 %v2832, 0.70710677
    %v2865 = vmul.f32 %v2833, 0.70710677
    %v2866 = vmul.f32 %v2834, 0.70710677
    %v2867 = vmul.f32 %v2835, 0.70710677
    %v2868 = vmul.f32 %v2836, 0.70710677
    %v2869 = vmul.f32 %v2837, 0.70710677
    %v2870 = vmul.f32 %v2838, 0.70710677
    %v2871 = vmul.f32 %v2839, 0.70710677
    %v2872 = vmul.f32 %v2840, 0.70710677
    %v2873 = vmul.f32 %v2841, 0.70710677
    %v2874 = vmul.f32 %v2842, 0.70710677
    %v2875 = vmul.f32 %v2843, 0.70710677
    %v2876 = vmul.f32 %v2844, 0.70710677
    %v2877 = vmul.f32 %v2845, 0.70710677
    %v2878 = vmul.f32 %v2846, 0.70710677
    %vm2879 = vcmp.ge.f32.partialorder %v2863, 0.0
    %vm2880 = vcmp.ge.f32.partialorder %v2864, 0.0
    %vm2881 = vcmp.ge.f32.partialorder %v2865, 0.0
    %vm2882 = vcmp.ge.f32.partialorder %v2866, 0.0
    %vm2883 = vcmp.ge.f32.partialorder %v2867, 0.0
    %vm2884 = vcmp.ge.f32.partialorder %v2868, 0.0
    %vm2885 = vcmp.ge.f32.partialorder %v2869, 0.0
    %vm2886 = vcmp.ge.f32.partialorder %v2870, 0.0
    %vm2887 = vcmp.ge.f32.partialorder %v2871, 0.0
    %vm2888 = vcmp.ge.f32.partialorder %v2872, 0.0
    %vm2889 = vcmp.ge.f32.partialorder %v2873, 0.0
    %vm2890 = vcmp.ge.f32.partialorder %v2874, 0.0
    %vm2891 = vcmp.ge.f32.partialorder %v2875, 0.0
    %vm2892 = vcmp.ge.f32.partialorder %v2876, 0.0
    %vm2893 = vcmp.ge.f32.partialorder %v2877, 0.0
    %vm2894 = vcmp.ge.f32.partialorder %v2878, 0.0
    %v2895 = vsel %vm2879, 1.0, -1.0
    %v2896 = vsel %vm2880, 1.0, -1.0
    %v2897 = vsel %vm2881, 1.0, -1.0
    %v2898 = vsel %vm2882, 1.0, -1.0
    %v2899 = vsel %vm2883, 1.0, -1.0
    %v2900 = vsel %vm2884, 1.0, -1.0
    %v2901 = vsel %vm2885, 1.0, -1.0
    %v2902 = vsel %vm2886, 1.0, -1.0
    %v2903 = vsel %vm2887, 1.0, -1.0
    %v2904 = vsel %vm2888, 1.0, -1.0
    %v2905 = vsel %vm2889, 1.0, -1.0
    %v2906 = vsel %vm2890, 1.0, -1.0
    %v2907 = vsel %vm2891, 1.0, -1.0
    %v2908 = vsel %vm2892, 1.0, -1.0
    %v2909 = vsel %vm2893, 1.0, -1.0
    %v2910 = vsel %vm2894, 1.0, -1.0
    %v2911 = vand.u32 2147483647, %v2863
    %v2912 = vand.u32 2147483647, %v2864
    %v2913 = vand.u32 2147483647, %v2865
    %v2914 = vand.u32 2147483647, %v2866
    %v2915 = vand.u32 2147483647, %v2867
    %v2916 = vand.u32 2147483647, %v2868
    %v2917 = vand.u32 2147483647, %v2869
    %v2918 = vand.u32 2147483647, %v2870
    %v2919 = vand.u32 2147483647, %v2871
    %v2920 = vand.u32 2147483647, %v2872
    %v2921 = vand.u32 2147483647, %v2873
    %v2922 = vand.u32 2147483647, %v2874
    %v2923 = vand.u32 2147483647, %v2875
    %v2924 = vand.u32 2147483647, %v2876
    %v2925 = vand.u32 2147483647, %v2877
    %v2926 = vand.u32 2147483647, %v2878
    %v2927 = vmul.f32 %v2911, 0.3275911
    %v2928 = vmul.f32 %v2912, 0.3275911
    %v2929 = vmul.f32 %v2913, 0.3275911
    %v2930 = vmul.f32 %v2914, 0.3275911
    %v2931 = vmul.f32 %v2915, 0.3275911
    %v2932 = vmul.f32 %v2916, 0.3275911
    %v2933 = vmul.f32 %v2917, 0.3275911
    %v2934 = vmul.f32 %v2918, 0.3275911
    %v2935 = vmul.f32 %v2919, 0.3275911
    %v2936 = vmul.f32 %v2920, 0.3275911
    %v2937 = vmul.f32 %v2921, 0.3275911
    %v2938 = vmul.f32 %v2922, 0.3275911
    %v2939 = vmul.f32 %v2923, 0.3275911
    %v2940 = vmul.f32 %v2924, 0.3275911
    %v2941 = vmul.f32 %v2925, 0.3275911
    %v2942 = vmul.f32 %v2926, 0.3275911
    %v2943 = vadd.f32 %v2927, 1.0
    %v2944 = vadd.f32 %v2928, 1.0
    %v2945 = vadd.f32 %v2929, 1.0
    %v2946 = vadd.f32 %v2930, 1.0
    %v2947 = vadd.f32 %v2931, 1.0
    %v2948 = vadd.f32 %v2932, 1.0
    %v2949 = vadd.f32 %v2933, 1.0
    %v2950 = vadd.f32 %v2934, 1.0
    %v2951 = vadd.f32 %v2935, 1.0
    %v2952 = vadd.f32 %v2936, 1.0
    %v2953 = vadd.f32 %v2937, 1.0
    %v2954 = vadd.f32 %v2938, 1.0
    %v2955 = vadd.f32 %v2939, 1.0
    %v2956 = vadd.f32 %v2940, 1.0
    %v2957 = vadd.f32 %v2941, 1.0
    %v2958 = vadd.f32 %v2942, 1.0
    %v2959 = vrcp.pop %v2943
    %v2960 = vmul.f32 %v2943, %v2959
    %v2961 = vsub.f32 1.0, %v2960
    %v2962 = vmul.f32 %v2959, %v2961
    %v2963 = vadd.f32 %v2959, %v2962
    %vm2964 = vweird.f32 %v2943
    %vm2965 = vweird.f32 %v2959
    %vm2966 = vmor %vm2964, %vm2965
    %v2967 = vsel %vm2966, %v2959, %v2963
    %v2968 = vand.u32 2147483647, %v2943
    %vm2969 = vcmp.eq.f32.partialorder %v2968, 8.507059e+37
    %v2970 = vand.u32 %v2943, 2147483648
    %v2971 = vor.u32 1.1754944e-38, %v2970
    %v2972 = vsel %vm2969, %v2971, %v2967
    %v2973 = vmul.f32 1.0, %v2972
    %v2974 = vrcp.pop %v2944
    %v2975 = vmul.f32 %v2944, %v2974
    %v2976 = vsub.f32 1.0, %v2975
    %v2977 = vmul.f32 %v2974, %v2976
    %v2978 = vadd.f32 %v2974, %v2977
    %vm2979 = vweird.f32 %v2944
    %vm2980 = vweird.f32 %v2974
    %vm2981 = vmor %vm2979, %vm2980
    %v2982 = vsel %vm2981, %v2974, %v2978
    %v2983 = vand.u32 2147483647, %v2944
    %vm2984 = vcmp.eq.f32.partialorder %v2983, 8.507059e+37
    %v2985 = vand.u32 %v2944, 2147483648
    %v2986 = vor.u32 1.1754944e-38, %v2985
    %v2987 = vsel %vm2984, %v2986, %v2982
    %v2988 = vmul.f32 1.0, %v2987
    %v2989 = vrcp.pop %v2945
    %v2990 = vmul.f32 %v2945, %v2989
    %v2991 = vsub.f32 1.0, %v2990
    %v2992 = vmul.f32 %v2989, %v2991
    %v2993 = vadd.f32 %v2989, %v2992
    %vm2994 = vweird.f32 %v2945
    %vm2995 = vweird.f32 %v2989
    %vm2996 = vmor %vm2994, %vm2995
    %v2997 = vsel %vm2996, %v2989, %v2993
    %v2998 = vand.u32 2147483647, %v2945
    %vm2999 = vcmp.eq.f32.partialorder %v2998, 8.507059e+37
    %v3000 = vand.u32 %v2945, 2147483648
    %v3001 = vor.u32 1.1754944e-38, %v3000
    %v3002 = vsel %vm2999, %v3001, %v2997
    %v3003 = vmul.f32 1.0, %v3002
    %v3004 = vrcp.pop %v2946
    %v3005 = vmul.f32 %v2946, %v3004
    %v3006 = vsub.f32 1.0, %v3005
    %v3007 = vmul.f32 %v3004, %v3006
    %v3008 = vadd.f32 %v3004, %v3007
    %vm3009 = vweird.f32 %v2946
    %vm3010 = vweird.f32 %v3004
    %vm3011 = vmor %vm3009, %vm3010
    %v3012 = vsel %vm3011, %v3004, %v3008
    %v3013 = vand.u32 2147483647, %v2946
    %vm3014 = vcmp.eq.f32.partialorder %v3013, 8.507059e+37
    %v3015 = vand.u32 %v2946, 2147483648
    %v3016 = vor.u32 1.1754944e-38, %v3015
    %v3017 = vsel %vm3014, %v3016, %v3012
    %v3018 = vmul.f32 1.0, %v3017
    %v3019 = vrcp.pop %v2947
    %v3020 = vmul.f32 %v2947, %v3019
    %v3021 = vsub.f32 1.0, %v3020
    %v3022 = vmul.f32 %v3019, %v3021
    %v3023 = vadd.f32 %v3019, %v3022
    %vm3024 = vweird.f32 %v2947
    %vm3025 = vweird.f32 %v3019
    %vm3026 = vmor %vm3024, %vm3025
    %v3027 = vsel %vm3026, %v3019, %v3023
    %v3028 = vand.u32 2147483647, %v2947
    %vm3029 = vcmp.eq.f32.partialorder %v3028, 8.507059e+37
    %v3030 = vand.u32 %v2947, 2147483648
    %v3031 = vor.u32 1.1754944e-38, %v3030
    %v3032 = vsel %vm3029, %v3031, %v3027
    %v3033 = vmul.f32 1.0, %v3032
    %v3034 = vrcp.pop %v2948
    %v3035 = vmul.f32 %v2948, %v3034
    %v3036 = vsub.f32 1.0, %v3035
    %v3037 = vmul.f32 %v3034, %v3036
    %v3038 = vadd.f32 %v3034, %v3037
    %vm3039 = vweird.f32 %v2948
    %vm3040 = vweird.f32 %v3034
    %vm3041 = vmor %vm3039, %vm3040
    %v3042 = vsel %vm3041, %v3034, %v3038
    %v3043 = vand.u32 2147483647, %v2948
    %vm3044 = vcmp.eq.f32.partialorder %v3043, 8.507059e+37
    %v3045 = vand.u32 %v2948, 2147483648
    %v3046 = vor.u32 1.1754944e-38, %v3045
    %v3047 = vsel %vm3044, %v3046, %v3042
    %v3048 = vmul.f32 1.0, %v3047
    %v3049 = vrcp.pop %v2949
    %v3050 = vmul.f32 %v2949, %v3049
    %v3051 = vsub.f32 1.0, %v3050
    %v3052 = vmul.f32 %v3049, %v3051
    %v3053 = vadd.f32 %v3049, %v3052
    %vm3054 = vweird.f32 %v2949
    %vm3055 = vweird.f32 %v3049
    %vm3056 = vmor %vm3054, %vm3055
    %v3057 = vsel %vm3056, %v3049, %v3053
    %v3058 = vand.u32 2147483647, %v2949
    %vm3059 = vcmp.eq.f32.partialorder %v3058, 8.507059e+37
    %v3060 = vand.u32 %v2949, 2147483648
    %v3061 = vor.u32 1.1754944e-38, %v3060
    %v3062 = vsel %vm3059, %v3061, %v3057
    %v3063 = vmul.f32 1.0, %v3062
    %v3064 = vrcp.pop %v2950
    %v3065 = vmul.f32 %v2950, %v3064
    %v3066 = vsub.f32 1.0, %v3065
    %v3067 = vmul.f32 %v3064, %v3066
    %v3068 = vadd.f32 %v3064, %v3067
    %vm3069 = vweird.f32 %v2950
    %vm3070 = vweird.f32 %v3064
    %vm3071 = vmor %vm3069, %vm3070
    %v3072 = vsel %vm3071, %v3064, %v3068
    %v3073 = vand.u32 2147483647, %v2950
    %vm3074 = vcmp.eq.f32.partialorder %v3073, 8.507059e+37
    %v3075 = vand.u32 %v2950, 2147483648
    %v3076 = vor.u32 1.1754944e-38, %v3075
    %v3077 = vsel %vm3074, %v3076, %v3072
    %v3078 = vmul.f32 1.0, %v3077
    %v3079 = vrcp.pop %v2951
    %v3080 = vmul.f32 %v2951, %v3079
    %v3081 = vsub.f32 1.0, %v3080
    %v3082 = vmul.f32 %v3079, %v3081
    %v3083 = vadd.f32 %v3079, %v3082
    %vm3084 = vweird.f32 %v2951
    %vm3085 = vweird.f32 %v3079
    %vm3086 = vmor %vm3084, %vm3085
    %v3087 = vsel %vm3086, %v3079, %v3083
    %v3088 = vand.u32 2147483647, %v2951
    %vm3089 = vcmp.eq.f32.partialorder %v3088, 8.507059e+37
    %v3090 = vand.u32 %v2951, 2147483648
    %v3091 = vor.u32 1.1754944e-38, %v3090
    %v3092 = vsel %vm3089, %v3091, %v3087
    %v3093 = vmul.f32 1.0, %v3092
    %v3094 = vrcp.pop %v2952
    %v3095 = vmul.f32 %v2952, %v3094
    %v3096 = vsub.f32 1.0, %v3095
    %v3097 = vmul.f32 %v3094, %v3096
    %v3098 = vadd.f32 %v3094, %v3097
    %vm3099 = vweird.f32 %v2952
    %vm3100 = vweird.f32 %v3094
    %vm3101 = vmor %vm3099, %vm3100
    %v3102 = vsel %vm3101, %v3094, %v3098
    %v3103 = vand.u32 2147483647, %v2952
    %vm3104 = vcmp.eq.f32.partialorder %v3103, 8.507059e+37
    %v3105 = vand.u32 %v2952, 2147483648
    %v3106 = vor.u32 1.1754944e-38, %v3105
    %v3107 = vsel %vm3104, %v3106, %v3102
    %v3108 = vmul.f32 1.0, %v3107
    %v3109 = vrcp.pop %v2953
    %v3110 = vmul.f32 %v2953, %v3109
    %v3111 = vsub.f32 1.0, %v3110
    %v3112 = vmul.f32 %v3109, %v3111
    %v3113 = vadd.f32 %v3109, %v3112
    %vm3114 = vweird.f32 %v2953
    %vm3115 = vweird.f32 %v3109
    %vm3116 = vmor %vm3114, %vm3115
    %v3117 = vsel %vm3116, %v3109, %v3113
    %v3118 = vand.u32 2147483647, %v2953
    %vm3119 = vcmp.eq.f32.partialorder %v3118, 8.507059e+37
    %v3120 = vand.u32 %v2953, 2147483648
    %v3121 = vor.u32 1.1754944e-38, %v3120
    %v3122 = vsel %vm3119, %v3121, %v3117
    %v3123 = vmul.f32 1.0, %v3122
    %v3124 = vrcp.pop %v2954
    %v3125 = vmul.f32 %v2954, %v3124
    %v3126 = vsub.f32 1.0, %v3125
    %v3127 = vmul.f32 %v3124, %v3126
    %v3128 = vadd.f32 %v3124, %v3127
    %vm3129 = vweird.f32 %v2954
    %vm3130 = vweird.f32 %v3124
    %vm3131 = vmor %vm3129, %vm3130
    %v3132 = vsel %vm3131, %v3124, %v3128
    %v3133 = vand.u32 2147483647, %v2954
    %vm3134 = vcmp.eq.f32.partialorder %v3133, 8.507059e+37
    %v3135 = vand.u32 %v2954, 2147483648
    %v3136 = vor.u32 1.1754944e-38, %v3135
    %v3137 = vsel %vm3134, %v3136, %v3132
    %v3138 = vmul.f32 1.0, %v3137
    %v3139 = vrcp.pop %v2955
    %v3140 = vmul.f32 %v2955, %v3139
    %v3141 = vsub.f32 1.0, %v3140
    %v3142 = vmul.f32 %v3139, %v3141
    %v3143 = vadd.f32 %v3139, %v3142
    %vm3144 = vweird.f32 %v2955
    %vm3145 = vweird.f32 %v3139
    %vm3146 = vmor %vm3144, %vm3145
    %v3147 = vsel %vm3146, %v3139, %v3143
    %v3148 = vand.u32 2147483647, %v2955
    %vm3149 = vcmp.eq.f32.partialorder %v3148, 8.507059e+37
    %v3150 = vand.u32 %v2955, 2147483648
    %v3151 = vor.u32 1.1754944e-38, %v3150
    %v3152 = vsel %vm3149, %v3151, %v3147
    %v3153 = vmul.f32 1.0, %v3152
    %v3154 = vrcp.pop %v2956
    %v3155 = vmul.f32 %v2956, %v3154
    %v3156 = vsub.f32 1.0, %v3155
    %v3157 = vmul.f32 %v3154, %v3156
    %v3158 = vadd.f32 %v3154, %v3157
    %vm3159 = vweird.f32 %v2956
    %vm3160 = vweird.f32 %v3154
    %vm3161 = vmor %vm3159, %vm3160
    %v3162 = vsel %vm3161, %v3154, %v3158
    %v3163 = vand.u32 2147483647, %v2956
    %vm3164 = vcmp.eq.f32.partialorder %v3163, 8.507059e+37
    %v3165 = vand.u32 %v2956, 2147483648
    %v3166 = vor.u32 1.1754944e-38, %v3165
    %v3167 = vsel %vm3164, %v3166, %v3162
    %v3168 = vmul.f32 1.0, %v3167
    %v3169 = vrcp.pop %v2957
    %v3170 = vmul.f32 %v2957, %v3169
    %v3171 = vsub.f32 1.0, %v3170
    %v3172 = vmul.f32 %v3169, %v3171
    %v3173 = vadd.f32 %v3169, %v3172
    %vm3174 = vweird.f32 %v2957
    %vm3175 = vweird.f32 %v3169
    %vm3176 = vmor %vm3174, %vm3175
    %v3177 = vsel %vm3176, %v3169, %v3173
    %v3178 = vand.u32 2147483647, %v2957
    %vm3179 = vcmp.eq.f32.partialorder %v3178, 8.507059e+37
    %v3180 = vand.u32 %v2957, 2147483648
    %v3181 = vor.u32 1.1754944e-38, %v3180
    %v3182 = vsel %vm3179, %v3181, %v3177
    %v3183 = vmul.f32 1.0, %v3182
    %v3184 = vrcp.pop %v2958
    %v3185 = vmul.f32 %v2958, %v3184
    %v3186 = vsub.f32 1.0, %v3185
    %v3187 = vmul.f32 %v3184, %v3186
    %v3188 = vadd.f32 %v3184, %v3187
    %vm3189 = vweird.f32 %v2958
    %vm3190 = vweird.f32 %v3184
    %vm3191 = vmor %vm3189, %vm3190
    %v3192 = vsel %vm3191, %v3184, %v3188
    %v3193 = vand.u32 2147483647, %v2958
    %vm3194 = vcmp.eq.f32.partialorder %v3193, 8.507059e+37
    %v3195 = vand.u32 %v2958, 2147483648
    %v3196 = vor.u32 1.1754944e-38, %v3195
    %v3197 = vsel %vm3194, %v3196, %v3192
    %v3198 = vmul.f32 1.0, %v3197
    %v3199 = vmul.f32 %v2973, 1.0614054
    %v3200 = vmul.f32 %v2988, 1.0614054
    %v3201 = vmul.f32 %v3003, 1.0614054
    %v3202 = vmul.f32 %v3018, 1.0614054
    %v3203 = vmul.f32 %v3033, 1.0614054
    %v3204 = vmul.f32 %v3048, 1.0614054
    %v3205 = vmul.f32 %v3063, 1.0614054
    %v3206 = vmul.f32 %v3078, 1.0614054
    %v3207 = vmul.f32 %v3093, 1.0614054
    %v3208 = vmul.f32 %v3108, 1.0614054
    %v3209 = vmul.f32 %v3123, 1.0614054
    %v3210 = vmul.f32 %v3138, 1.0614054
    %v3211 = vmul.f32 %v3153, 1.0614054
    %v3212 = vmul.f32 %v3168, 1.0614054
    %v3213 = vmul.f32 %v3183, 1.0614054
    %v3214 = vmul.f32 %v3198, 1.0614054
    %v3215 = vadd.f32 %v3199, -1.4531521
    %v3216 = vadd.f32 %v3200, -1.4531521
    %v3217 = vadd.f32 %v3201, -1.4531521
    %v3218 = vadd.f32 %v3202, -1.4531521
    %v3219 = vadd.f32 %v3203, -1.4531521
    %v3220 = vadd.f32 %v3204, -1.4531521
    %v3221 = vadd.f32 %v3205, -1.4531521
    %v3222 = vadd.f32 %v3206, -1.4531521
    %v3223 = vadd.f32 %v3207, -1.4531521
    %v3224 = vadd.f32 %v3208, -1.4531521
    %v3225 = vadd.f32 %v3209, -1.4531521
    %v3226 = vadd.f32 %v3210, -1.4531521
    %v3227 = vadd.f32 %v3211, -1.4531521
    %v3228 = vadd.f32 %v3212, -1.4531521
    %v3229 = vadd.f32 %v3213, -1.4531521
    %v3230 = vadd.f32 %v3214, -1.4531521
    %v3231 = vmul.f32 %v3215, %v2973
    %v3232 = vmul.f32 %v3216, %v2988
    %v3233 = vmul.f32 %v3217, %v3003
    %v3234 = vmul.f32 %v3218, %v3018
    %v3235 = vmul.f32 %v3219, %v3033
    %v3236 = vmul.f32 %v3220, %v3048
    %v3237 = vmul.f32 %v3221, %v3063
    %v3238 = vmul.f32 %v3222, %v3078
    %v3239 = vmul.f32 %v3223, %v3093
    %v3240 = vmul.f32 %v3224, %v3108
    %v3241 = vmul.f32 %v3225, %v3123
    %v3242 = vmul.f32 %v3226, %v3138
    %v3243 = vmul.f32 %v3227, %v3153
    %v3244 = vmul.f32 %v3228, %v3168
    %v3245 = vmul.f32 %v3229, %v3183
    %v3246 = vmul.f32 %v3230, %v3198
    %v3247 = vadd.f32 %v3231, 1.4214138
    %v3248 = vadd.f32 %v3232, 1.4214138
    %v3249 = vadd.f32 %v3233, 1.4214138
    %v3250 = vadd.f32 %v3234, 1.4214138
    %v3251 = vadd.f32 %v3235, 1.4214138
    %v3252 = vadd.f32 %v3236, 1.4214138
    %v3253 = vadd.f32 %v3237, 1.4214138
    %v3254 = vadd.f32 %v3238, 1.4214138
    %v3255 = vadd.f32 %v3239, 1.4214138
    %v3256 = vadd.f32 %v3240, 1.4214138
    %v3257 = vadd.f32 %v3241, 1.4214138
    %v3258 = vadd.f32 %v3242, 1.4214138
    %v3259 = vadd.f32 %v3243, 1.4214138
    %v3260 = vadd.f32 %v3244, 1.4214138
    %v3261 = vadd.f32 %v3245, 1.4214138
    %v3262 = vadd.f32 %v3246, 1.4214138
    %v3263 = vmul.f32 %v3247, %v2973
    %v3264 = vmul.f32 %v3248, %v2988
    %v3265 = vmul.f32 %v3249, %v3003
    %v3266 = vmul.f32 %v3250, %v3018
    %v3267 = vmul.f32 %v3251, %v3033
    %v3268 = vmul.f32 %v3252, %v3048
    %v3269 = vmul.f32 %v3253, %v3063
    %v3270 = vmul.f32 %v3254, %v3078
    %v3271 = vmul.f32 %v3255, %v3093
    %v3272 = vmul.f32 %v3256, %v3108
    %v3273 = vmul.f32 %v3257, %v3123
    %v3274 = vmul.f32 %v3258, %v3138
    %v3275 = vmul.f32 %v3259, %v3153
    %v3276 = vmul.f32 %v3260, %v3168
    %v3277 = vmul.f32 %v3261, %v3183
    %v3278 = vmul.f32 %v3262, %v3198
    %v3279 = vadd.f32 %v3263, -0.28449672
    %v3280 = vadd.f32 %v3264, -0.28449672
    %v3281 = vadd.f32 %v3265, -0.28449672
    %v3282 = vadd.f32 %v3266, -0.28449672
    %v3283 = vadd.f32 %v3267, -0.28449672
    %v3284 = vadd.f32 %v3268, -0.28449672
    %v3285 = vadd.f32 %v3269, -0.28449672
    %v3286 = vadd.f32 %v3270, -0.28449672
    %v3287 = vadd.f32 %v3271, -0.28449672
    %v3288 = vadd.f32 %v3272, -0.28449672
    %v3289 = vadd.f32 %v3273, -0.28449672
    %v3290 = vadd.f32 %v3274, -0.28449672
    %v3291 = vadd.f32 %v3275, -0.28449672
    %v3292 = vadd.f32 %v3276, -0.28449672
    %v3293 = vadd.f32 %v3277, -0.28449672
    %v3294 = vadd.f32 %v3278, -0.28449672
    %v3295 = vmul.f32 %v3279, %v2973
    %v3296 = vmul.f32 %v3280, %v2988
    %v3297 = vmul.f32 %v3281, %v3003
    %v3298 = vmul.f32 %v3282, %v3018
    %v3299 = vmul.f32 %v3283, %v3033
    %v3300 = vmul.f32 %v3284, %v3048
    %v3301 = vmul.f32 %v3285, %v3063
    %v3302 = vmul.f32 %v3286, %v3078
    %v3303 = vmul.f32 %v3287, %v3093
    %v3304 = vmul.f32 %v3288, %v3108
    %v3305 = vmul.f32 %v3289, %v3123
    %v3306 = vmul.f32 %v3290, %v3138
    %v3307 = vmul.f32 %v3291, %v3153
    %v3308 = vmul.f32 %v3292, %v3168
    %v3309 = vmul.f32 %v3293, %v3183
    %v3310 = vmul.f32 %v3294, %v3198
    %v3311 = vadd.f32 %v3295, 0.2548296
    %v3312 = vadd.f32 %v3296, 0.2548296
    %v3313 = vadd.f32 %v3297, 0.2548296
    %v3314 = vadd.f32 %v3298, 0.2548296
    %v3315 = vadd.f32 %v3299, 0.2548296
    %v3316 = vadd.f32 %v3300, 0.2548296
    %v3317 = vadd.f32 %v3301, 0.2548296
    %v3318 = vadd.f32 %v3302, 0.2548296
    %v3319 = vadd.f32 %v3303, 0.2548296
    %v3320 = vadd.f32 %v3304, 0.2548296
    %v3321 = vadd.f32 %v3305, 0.2548296
    %v3322 = vadd.f32 %v3306, 0.2548296
    %v3323 = vadd.f32 %v3307, 0.2548296
    %v3324 = vadd.f32 %v3308, 0.2548296
    %v3325 = vadd.f32 %v3309, 0.2548296
    %v3326 = vadd.f32 %v3310, 0.2548296
    %v3327 = vmul.f32 %v3311, %v2973
    %v3328 = vmul.f32 %v3312, %v2988
    %v3329 = vmul.f32 %v3313, %v3003
    %v3330 = vmul.f32 %v3314, %v3018
    %v3331 = vmul.f32 %v3315, %v3033
    %v3332 = vmul.f32 %v3316, %v3048
    %v3333 = vmul.f32 %v3317, %v3063
    %v3334 = vmul.f32 %v3318, %v3078
    %v3335 = vmul.f32 %v3319, %v3093
    %v3336 = vmul.f32 %v3320, %v3108
    %v3337 = vmul.f32 %v3321, %v3123
    %v3338 = vmul.f32 %v3322, %v3138
    %v3339 = vmul.f32 %v3323, %v3153
    %v3340 = vmul.f32 %v3324, %v3168
    %v3341 = vmul.f32 %v3325, %v3183
    %v3342 = vmul.f32 %v3326, %v3198
    %v3343 = vsub.f32 0.0, %v2911
    %v3344 = vsub.f32 0.0, %v2912
    %v3345 = vsub.f32 0.0, %v2913
    %v3346 = vsub.f32 0.0, %v2914
    %v3347 = vsub.f32 0.0, %v2915
    %v3348 = vsub.f32 0.0, %v2916
    %v3349 = vsub.f32 0.0, %v2917
    %v3350 = vsub.f32 0.0, %v2918
    %v3351 = vsub.f32 0.0, %v2919
    %v3352 = vsub.f32 0.0, %v2920
    %v3353 = vsub.f32 0.0, %v2921
    %v3354 = vsub.f32 0.0, %v2922
    %v3355 = vsub.f32 0.0, %v2923
    %v3356 = vsub.f32 0.0, %v2924
    %v3357 = vsub.f32 0.0, %v2925
    %v3358 = vsub.f32 0.0, %v2926
    %v3359 = vmul.f32 %v3343, %v2911
    %v3360 = vmul.f32 %v3344, %v2912
    %v3361 = vmul.f32 %v3345, %v2913
    %v3362 = vmul.f32 %v3346, %v2914
    %v3363 = vmul.f32 %v3347, %v2915
    %v3364 = vmul.f32 %v3348, %v2916
    %v3365 = vmul.f32 %v3349, %v2917
    %v3366 = vmul.f32 %v3350, %v2918
    %v3367 = vmul.f32 %v3351, %v2919
    %v3368 = vmul.f32 %v3352, %v2920
    %v3369 = vmul.f32 %v3353, %v2921
    %v3370 = vmul.f32 %v3354, %v2922
    %v3371 = vmul.f32 %v3355, %v2923
    %v3372 = vmul.f32 %v3356, %v2924
    %v3373 = vmul.f32 %v3357, %v2925
    %v3374 = vmul.f32 %v3358, %v2926
    %v3375 = vmul.f32 %v3359, 1.442695
    %v3376 = vpow.pop %v3375
    %v3377 = vmul.f32 %v3360, 1.442695
    %v3378 = vpow.pop %v3377
    %v3379 = vmul.f32 %v3361, 1.442695
    %v3380 = vpow.pop %v3379
    %v3381 = vmul.f32 %v3362, 1.442695
    %v3382 = vpow.pop %v3381
    %v3383 = vmul.f32 %v3363, 1.442695
    %v3384 = vpow.pop %v3383
    %v3385 = vmul.f32 %v3364, 1.442695
    %v3386 = vpow.pop %v3385
    %v3387 = vmul.f32 %v3365, 1.442695
    %v3388 = vpow.pop %v3387
    %v3389 = vmul.f32 %v3366, 1.442695
    %v3390 = vpow.pop %v3389
    %v3391 = vmul.f32 %v3367, 1.442695
    %v3392 = vpow.pop %v3391
    %v3393 = vmul.f32 %v3368, 1.442695
    %v3394 = vpow.pop %v3393
    %v3395 = vmul.f32 %v3369, 1.442695
    %v3396 = vpow.pop %v3395
    %v3397 = vmul.f32 %v3370, 1.442695
    %v3398 = vpow.pop %v3397
    %v3399 = vmul.f32 %v3371, 1.442695
    %v3400 = vpow.pop %v3399
    %v3401 = vmul.f32 %v3372, 1.442695
    %v3402 = vpow.pop %v3401
    %v3403 = vmul.f32 %v3373, 1.442695
    %v3404 = vpow.pop %v3403
    %v3405 = vmul.f32 %v3374, 1.442695
    %v3406 = vpow.pop %v3405
    %v3407 = vmul.f32 %v3327, %v3376
    %v3408 = vmul.f32 %v3328, %v3378
    %v3409 = vmul.f32 %v3329, %v3380
    %v3410 = vmul.f32 %v3330, %v3382
    %v3411 = vmul.f32 %v3331, %v3384
    %v3412 = vmul.f32 %v3332, %v3386
    %v3413 = vmul.f32 %v3333, %v3388
    %v3414 = vmul.f32 %v3334, %v3390
    %v3415 = vmul.f32 %v3335, %v3392
    %v3416 = vmul.f32 %v3336, %v3394
    %v3417 = vmul.f32 %v3337, %v3396
    %v3418 = vmul.f32 %v3338, %v3398
    %v3419 = vmul.f32 %v3339, %v3400
    %v3420 = vmul.f32 %v3340, %v3402
    %v3421 = vmul.f32 %v3341, %v3404
    %v3422 = vmul.f32 %v3342, %v3406
    %v3423 = vsub.f32 1.0, %v3407
    %v3424 = vsub.f32 1.0, %v3408
    %v3425 = vsub.f32 1.0, %v3409
    %v3426 = vsub.f32 1.0, %v3410
    %v3427 = vsub.f32 1.0, %v3411
    %v3428 = vsub.f32 1.0, %v3412
    %v3429 = vsub.f32 1.0, %v3413
    %v3430 = vsub.f32 1.0, %v3414
    %v3431 = vsub.f32 1.0, %v3415
    %v3432 = vsub.f32 1.0, %v3416
    %v3433 = vsub.f32 1.0, %v3417
    %v3434 = vsub.f32 1.0, %v3418
    %v3435 = vsub.f32 1.0, %v3419
    %v3436 = vsub.f32 1.0, %v3420
    %v3437 = vsub.f32 1.0, %v3421
    %v3438 = vsub.f32 1.0, %v3422
    %v3439 = vmul.f32 %v2895, %v3423
    %v3440 = vmul.f32 %v2896, %v3424
    %v3441 = vmul.f32 %v2897, %v3425
    %v3442 = vmul.f32 %v2898, %v3426
    %v3443 = vmul.f32 %v2899, %v3427
    %v3444 = vmul.f32 %v2900, %v3428
    %v3445 = vmul.f32 %v2901, %v3429
    %v3446 = vmul.f32 %v2902, %v3430
    %v3447 = vmul.f32 %v2903, %v3431
    %v3448 = vmul.f32 %v2904, %v3432
    %v3449 = vmul.f32 %v2905, %v3433
    %v3450 = vmul.f32 %v2906, %v3434
    %v3451 = vmul.f32 %v2907, %v3435
    %v3452 = vmul.f32 %v2908, %v3436
    %v3453 = vmul.f32 %v2909, %v3437
    %v3454 = vmul.f32 %v2910, %v3438
    %v3455 = vadd.f32 %v3439, 1.0
    %v3456 = vadd.f32 %v3440, 1.0
    %v3457 = vadd.f32 %v3441, 1.0
    %v3458 = vadd.f32 %v3442, 1.0
    %v3459 = vadd.f32 %v3443, 1.0
    %v3460 = vadd.f32 %v3444, 1.0
    %v3461 = vadd.f32 %v3445, 1.0
    %v3462 = vadd.f32 %v3446, 1.0
    %v3463 = vadd.f32 %v3447, 1.0
    %v3464 = vadd.f32 %v3448, 1.0
    %v3465 = vadd.f32 %v3449, 1.0
    %v3466 = vadd.f32 %v3450, 1.0
    %v3467 = vadd.f32 %v3451, 1.0
    %v3468 = vadd.f32 %v3452, 1.0
    %v3469 = vadd.f32 %v3453, 1.0
    %v3470 = vadd.f32 %v3454, 1.0
    %v3471 = vmul.f32 %v2847, %v3455
    %v3472 = vmul.f32 %v2848, %v3456
    %v3473 = vmul.f32 %v2849, %v3457
    %v3474 = vmul.f32 %v2850, %v3458
    %v3475 = vmul.f32 %v2851, %v3459
    %v3476 = vmul.f32 %v2852, %v3460
    %v3477 = vmul.f32 %v2853, %v3461
    %v3478 = vmul.f32 %v2854, %v3462
    %v3479 = vmul.f32 %v2855, %v3463
    %v3480 = vmul.f32 %v2856, %v3464
    %v3481 = vmul.f32 %v2857, %v3465
    %v3482 = vmul.f32 %v2858, %v3466
    %v3483 = vmul.f32 %v2859, %v3467
    %v3484 = vmul.f32 %v2860, %v3468
    %v3485 = vmul.f32 %v2861, %v3469
    %v3486 = vmul.f32 %v2862, %v3470
    %v3487 = vld [vmem:[%s8] sm:$0xff]
    %v3488 = vld [vmem:[%s8 + $0x8] sm:$0xff]
    %v3489 = vld [vmem:[%s8 + $0x10] sm:$0xff]
    %v3490 = vld [vmem:[%s8 + $0x18] sm:$0xff]
    %v3491 = vld [vmem:[%s9] sm:$0xff]
    %v3492 = vld [vmem:[%s9 + $0x8] sm:$0xff]
    %v3493 = vld [vmem:[%s9 + $0x10] sm:$0xff]
    %v3494 = vld [vmem:[%s9 + $0x18] sm:$0xff]
    %v3495 = vmul.f32 %v3471, %v1244
    %v3496 = vmul.f32 %v3472, %v1245
    %v3497 = vmul.f32 %v3473, %v1246
    %v3498 = vmul.f32 %v3474, %v1247
    %v3499 = vmul.f32 %v3475, %v1244
    %v3500 = vmul.f32 %v3476, %v1245
    %v3501 = vmul.f32 %v3477, %v1246
    %v3502 = vmul.f32 %v3478, %v1247
    %v3503 = vmul.f32 %v3479, %v1244
    %v3504 = vmul.f32 %v3480, %v1245
    %v3505 = vmul.f32 %v3481, %v1246
    %v3506 = vmul.f32 %v3482, %v1247
    %v3507 = vmul.f32 %v3483, %v1244
    %v3508 = vmul.f32 %v3484, %v1245
    %v3509 = vmul.f32 %v3485, %v1246
    %v3510 = vmul.f32 %v3486, %v1247
    %v3511 = vadd.f32 %v3495, %v3496
    %v3512 = vadd.f32 %v3511, %v3497
    %v3513 = vadd.f32 %v3512, %v3498
    %3514 = vadd.xlane.f32.xlu0 %v3513
    %v3515 = vpop.xlane.xlu0 %3514
    %v3516 = vadd.f32 %v3499, %v3500
    %v3517 = vadd.f32 %v3516, %v3501
    %v3518 = vadd.f32 %v3517, %v3502
    %3519 = vadd.xlane.f32.xlu0 %v3518
    %v3520 = vpop.xlane.xlu0 %3519
    %v3521 = vadd.f32 %v3503, %v3504
    %v3522 = vadd.f32 %v3521, %v3505
    %v3523 = vadd.f32 %v3522, %v3506
    %3524 = vadd.xlane.f32.xlu0 %v3523
    %v3525 = vpop.xlane.xlu0 %3524
    %v3526 = vadd.f32 %v3507, %v3508
    %v3527 = vadd.f32 %v3526, %v3509
    %v3528 = vadd.f32 %v3527, %v3510
    %3529 = vadd.xlane.f32.xlu0 %v3528
    %v3530 = vpop.xlane.xlu0 %3529
    %v3531 = vmul.f32 %v3495, %v3495
    %v3532 = vmul.f32 %v3496, %v3496
    %v3533 = vmul.f32 %v3497, %v3497
    %v3534 = vmul.f32 %v3498, %v3498
    %v3535 = vmul.f32 %v3499, %v3499
    %v3536 = vmul.f32 %v3500, %v3500
    %v3537 = vmul.f32 %v3501, %v3501
    %v3538 = vmul.f32 %v3502, %v3502
    %v3539 = vmul.f32 %v3503, %v3503
    %v3540 = vmul.f32 %v3504, %v3504
    %v3541 = vmul.f32 %v3505, %v3505
    %v3542 = vmul.f32 %v3506, %v3506
    %v3543 = vmul.f32 %v3507, %v3507
    %v3544 = vmul.f32 %v3508, %v3508
    %v3545 = vmul.f32 %v3509, %v3509
    %v3546 = vmul.f32 %v3510, %v3510
    %v3547 = vadd.f32 %v3531, %v3532
    %v3548 = vadd.f32 %v3547, %v3533
    %v3549 = vadd.f32 %v3548, %v3534
    %3550 = vadd.xlane.f32.xlu0 %v3549
    %v3551 = vpop.xlane.xlu0 %3550
    %v3552 = vadd.f32 %v3535, %v3536
    %v3553 = vadd.f32 %v3552, %v3537
    %v3554 = vadd.f32 %v3553, %v3538
    %3555 = vadd.xlane.f32.xlu0 %v3554
    %v3556 = vpop.xlane.xlu0 %3555
    %v3557 = vadd.f32 %v3539, %v3540
    %v3558 = vadd.f32 %v3557, %v3541
    %v3559 = vadd.f32 %v3558, %v3542
    %3560 = vadd.xlane.f32.xlu0 %v3559
    %v3561 = vpop.xlane.xlu0 %3560
    %v3562 = vadd.f32 %v3543, %v3544
    %v3563 = vadd.f32 %v3562, %v3545
    %v3564 = vadd.f32 %v3563, %v3546
    %3565 = vadd.xlane.f32.xlu0 %v3564
    %v3566 = vpop.xlane.xlu0 %3565
    %v3567 = vadd.s32 %v1271, 8
    %v3568 = vadd.s32 %v1271, 16
    %v3569 = vadd.s32 %v1271, 24
    %vm3570 = vcmp.ge.s32.totalorder %v3567, 0
    %vm3571 = vcmp.ge.s32.totalorder %v3568, 0
    %vm3572 = vcmp.ge.s32.totalorder %v3569, 0
    %vm3573 = vcmp.lt.s32.totalorder %v1271, 16
    %vm3574 = vcmp.lt.s32.totalorder %v3567, 16
    %vm3575 = vcmp.lt.s32.totalorder %v3568, 16
    %vm3576 = vcmp.lt.s32.totalorder %v3569, 16
    %vm3577 = vmand %vm1272, %vm3573
    %vm3578 = vmand %vm3570, %vm3574
    %vm3579 = vmand %vm3571, %vm3575
    %vm3580 = vmand %vm3572, %vm3576
    %v3581 = vsel %vm3577, 1, 0
    %v3582 = vsel %vm3578, 1, 0
    %v3583 = vsel %vm3579, 1, 0
    %v3584 = vsel %vm3580, 1, 0
    %v3585 = vcvt.s32.f32 %v3581
    %v3586 = vcvt.s32.f32 %v3582
    %v3587 = vcvt.s32.f32 %v3583
    %v3588 = vcvt.s32.f32 %v3584
    %v3589 = vmul.f32 %v3515, %v3585
    %v3590 = vmul.f32 %v3520, %v3586
    %v3591 = vmul.f32 %v3525, %v3587
    %v3592 = vmul.f32 %v3530, %v3588
    %v3593 = vsel %vm1278, %v3589, 0.0
    %v3594 = vsel %vm1278, %v3590, 0.0
    %v3595 = vadd.f32 %v3593, %v3594
    %v3596 = vsel %vm1278, %v3591, 0.0
    %v3597 = vadd.f32 %v3595, %v3596
    %v3598 = vsel %vm1278, %v3592, 0.0
    %v3599 = vadd.f32 %v3597, %v3598
    %3600 = vadd.xlane.f32.xlu0 %v3599
    %v3601 = vpop.xlane.xlu0 %3600
    %v3602 = vrot.slane %v3601, 4
    %v3603 = vadd.f32 %v3601, %v3602
    %v3604 = vrot.slane %v3603, 2
    %v3605 = vadd.f32 %v3603, %v3604
    %v3606 = vrot.slane %v3605, 1
    %v3607 = vadd.f32 %v3605, %v3606
    %s3608 = vtos %v3607
    %v3609 = vmul.f32 %v3551, %v3585
    %v3610 = vmul.f32 %v3556, %v3586
    %v3611 = vmul.f32 %v3561, %v3587
    %v3612 = vmul.f32 %v3566, %v3588
    %v3613 = vsel %vm1278, %v3609, 0.0
    %v3614 = vsel %vm1278, %v3610, 0.0
    %v3615 = vadd.f32 %v3613, %v3614
    %v3616 = vsel %vm1278, %v3611, 0.0
    %v3617 = vadd.f32 %v3615, %v3616
    %v3618 = vsel %vm1278, %v3612, 0.0
    %v3619 = vadd.f32 %v3617, %v3618
    %3620 = vadd.xlane.f32.xlu0 %v3619
    %v3621 = vpop.xlane.xlu0 %3620
    %v3622 = vrot.slane %v3621, 4
    %v3623 = vadd.f32 %v3621, %v3622
    %v3624 = vrot.slane %v3623, 2
    %v3625 = vadd.f32 %v3623, %v3624
    %v3626 = vrot.slane %v3625, 1
    %v3627 = vadd.f32 %v3625, %v3626
    %s3628 = vtos %v3627
    %s3629 = smul.f32 %s3608, 0.00024414063
    %s3630 = smul.f32 %s3628, 0.00024414063
    %s3631 = smul.f32 %s3629, %s3629
    %s3632 = ssub.f32 %s3630, %s3631
    %s3633 = sadd.f32 %s3632, 1e-05
    %v3634 = vstv %s3633
    %v3635 = vrsqrt.pop %v3634
    %v3636 = vmul.f32 %v3635, %v3634
    %v3637 = vmul.f32 %v3636, %v3635
    %v3638 = vmul.f32 0.5, %v3637
    %v3639 = vsub.f32 1.5, %v3638
    %v3640 = vmul.f32 %v3635, %v3639
    %vm3641 = vweird.f32 %v3634
    %vm3642 = vweird.f32 %v3635
    %vm3643 = vmor %vm3641, %vm3642
    %v3644 = vsel %vm3643, %v3635, %v3640
    %s3645 = vtos %v3644
    %v3646 = vstv %s3645
    %v3647 = vmul.f32 %v3585, %v3646
    %v3648 = vmul.f32 %v3586, %v3646
    %v3649 = vmul.f32 %v3587, %v3646
    %v3650 = vmul.f32 %v3588, %v3646
    %v3651 = vadd.f32 %v3647, 0.0
    %v3652 = vadd.f32 %v3648, 0.0
    %v3653 = vadd.f32 %v3649, 0.0
    %v3654 = vadd.f32 %v3650, 0.0
    %s3655 = ssub.f32 0.0, %s3629
    %s3656 = smul.f32 %s3655, %s3645
    %v3657 = vstv %s3656
    %v3658 = vmul.f32 %v3585, %v3657
    %v3659 = vmul.f32 %v3586, %v3657
    %v3660 = vmul.f32 %v3587, %v3657
    %v3661 = vmul.f32 %v3588, %v3657
    %v3662 = vadd.f32 %v3658, 0.0
    %v3663 = vadd.f32 %v3659, 0.0
    %v3664 = vadd.f32 %v3660, 0.0
    %v3665 = vadd.f32 %v3661, 0.0
    %vm3666 = vcmp.ge.s32.totalorder %v1271, 16
    %vm3667 = vcmp.ge.s32.totalorder %v3567, 16
    %vm3668 = vcmp.ge.s32.totalorder %v3568, 16
    %vm3669 = vcmp.ge.s32.totalorder %v3569, 16
    %vm3670 = vcmp.lt.s32.totalorder %v1271, 32
    %vm3671 = vcmp.lt.s32.totalorder %v3567, 32
    %vm3672 = vcmp.lt.s32.totalorder %v3568, 32
    %vm3673 = vcmp.lt.s32.totalorder %v3569, 32
    %vm3674 = vmand %vm3666, %vm3670
    %vm3675 = vmand %vm3667, %vm3671
    %vm3676 = vmand %vm3668, %vm3672
    %vm3677 = vmand %vm3669, %vm3673
    %v3678 = vsel %vm3674, 1, 0
    %v3679 = vsel %vm3675, 1, 0
    %v3680 = vsel %vm3676, 1, 0
    %v3681 = vsel %vm3677, 1, 0
    %v3682 = vcvt.s32.f32 %v3678
    %v3683 = vcvt.s32.f32 %v3679
    %v3684 = vcvt.s32.f32 %v3680
    %v3685 = vcvt.s32.f32 %v3681
    %v3686 = vmul.f32 %v3515, %v3682
    %v3687 = vmul.f32 %v3520, %v3683
    %v3688 = vmul.f32 %v3525, %v3684
    %v3689 = vmul.f32 %v3530, %v3685
    %v3690 = vsel %vm1278, %v3686, 0.0
    %v3691 = vsel %vm1278, %v3687, 0.0
    %v3692 = vadd.f32 %v3690, %v3691
    %v3693 = vsel %vm1278, %v3688, 0.0
    %v3694 = vadd.f32 %v3692, %v3693
    %v3695 = vsel %vm1278, %v3689, 0.0
    %v3696 = vadd.f32 %v3694, %v3695
    %3697 = vadd.xlane.f32.xlu0 %v3696
    %v3698 = vpop.xlane.xlu0 %3697
    %v3699 = vrot.slane %v3698, 4
    %v3700 = vadd.f32 %v3698, %v3699
    %v3701 = vrot.slane %v3700, 2
    %v3702 = vadd.f32 %v3700, %v3701
    %v3703 = vrot.slane %v3702, 1
    %v3704 = vadd.f32 %v3702, %v3703
    %s3705 = vtos %v3704
    %v3706 = vmul.f32 %v3551, %v3682
    %v3707 = vmul.f32 %v3556, %v3683
    %v3708 = vmul.f32 %v3561, %v3684
    %v3709 = vmul.f32 %v3566, %v3685
    %v3710 = vsel %vm1278, %v3706, 0.0
    %v3711 = vsel %vm1278, %v3707, 0.0
    %v3712 = vadd.f32 %v3710, %v3711
    %v3713 = vsel %vm1278, %v3708, 0.0
    %v3714 = vadd.f32 %v3712, %v3713
    %v3715 = vsel %vm1278, %v3709, 0.0
    %v3716 = vadd.f32 %v3714, %v3715
    %3717 = vadd.xlane.f32.xlu0 %v3716
    %v3718 = vpop.xlane.xlu0 %3717
    %v3719 = vrot.slane %v3718, 4
    %v3720 = vadd.f32 %v3718, %v3719
    %v3721 = vrot.slane %v3720, 2
    %v3722 = vadd.f32 %v3720, %v3721
    %v3723 = vrot.slane %v3722, 1
    %v3724 = vadd.f32 %v3722, %v3723
    %s3725 = vtos %v3724
    %s3726 = smul.f32 %s3705, 0.00024414063
    %s3727 = smul.f32 %s3725, 0.00024414063
    %s3728 = smul.f32 %s3726, %s3726
    %s3729 = ssub.f32 %s3727, %s3728
    %s3730 = sadd.f32 %s3729, 1e-05
    %v3731 = vstv %s3730
    %v3732 = vrsqrt.pop %v3731
    %v3733 = vmul.f32 %v3732, %v3731
    %v3734 = vmul.f32 %v3733, %v3732
    %v3735 = vmul.f32 0.5, %v3734
    %v3736 = vsub.f32 1.5, %v3735
    %v3737 = vmul.f32 %v3732, %v3736
    %vm3738 = vweird.f32 %v3731
    %vm3739 = vweird.f32 %v3732
    %vm3740 = vmor %vm3738, %vm3739
    %v3741 = vsel %vm3740, %v3732, %v3737
    %s3742 = vtos %v3741
    %v3743 = vstv %s3742
    %v3744 = vmul.f32 %v3682, %v3743
    %v3745 = vmul.f32 %v3683, %v3743
    %v3746 = vmul.f32 %v3684, %v3743
    %v3747 = vmul.f32 %v3685, %v3743
    %v3748 = vadd.f32 %v3651, %v3744
    %v3749 = vadd.f32 %v3652, %v3745
    %v3750 = vadd.f32 %v3653, %v3746
    %v3751 = vadd.f32 %v3654, %v3747
    %s3752 = ssub.f32 0.0, %s3726
    %s3753 = smul.f32 %s3752, %s3742
    %v3754 = vstv %s3753
    %v3755 = vmul.f32 %v3682, %v3754
    %v3756 = vmul.f32 %v3683, %v3754
    %v3757 = vmul.f32 %v3684, %v3754
    %v3758 = vmul.f32 %v3685, %v3754
    %v3759 = vadd.f32 %v3662, %v3755
    %v3760 = vadd.f32 %v3663, %v3756
    %v3761 = vadd.f32 %v3664, %v3757
    %v3762 = vadd.f32 %v3665, %v3758
    %v3763 = vmul.f32 %v3748, %v3487
    %v3764 = vmul.f32 %v3749, %v3488
    %v3765 = vmul.f32 %v3750, %v3489
    %v3766 = vmul.f32 %v3751, %v3490
    %v3767 = vmul.f32 %v3759, %v3487
    %v3768 = vmul.f32 %v3760, %v3488
    %v3769 = vmul.f32 %v3761, %v3489
    %v3770 = vmul.f32 %v3762, %v3490
    %v3771 = vadd.f32 %v3767, %v3491
    %v3772 = vadd.f32 %v3768, %v3492
    %v3773 = vadd.f32 %v3769, %v3493
    %v3774 = vadd.f32 %v3770, %v3494
    %3776 = vset.pattern.permute.xlu0 0
    %3777 = vperm.xlu0 %3776, %v3763
    %v3778 = vpop.permute.xlu0 %3777
    %3781 = vset.pattern.permute.xlu0 0
    %3782 = vperm.xlu0 %3781, %v3764
    %v3783 = vpop.permute.xlu0 %3782
    %3786 = vset.pattern.permute.xlu0 0
    %3787 = vperm.xlu0 %3786, %v3765
    %v3788 = vpop.permute.xlu0 %3787
    %3791 = vset.pattern.permute.xlu0 0
    %3792 = vperm.xlu0 %3791, %v3766
    %v3793 = vpop.permute.xlu0 %3792
    %v3795 = vmul.f32 %v3471, %v3778
    %v3796 = vmul.f32 %v3472, %v3778
    %v3797 = vmul.f32 %v3473, %v3778
    %v3798 = vmul.f32 %v3474, %v3778
    %v3799 = vmul.f32 %v3475, %v3783
    %v3800 = vmul.f32 %v3476, %v3783
    %v3801 = vmul.f32 %v3477, %v3783
    %v3802 = vmul.f32 %v3478, %v3783
    %v3803 = vmul.f32 %v3479, %v3788
    %v3804 = vmul.f32 %v3480, %v3788
    %v3805 = vmul.f32 %v3481, %v3788
    %v3806 = vmul.f32 %v3482, %v3788
    %v3807 = vmul.f32 %v3483, %v3793
    %v3808 = vmul.f32 %v3484, %v3793
    %v3809 = vmul.f32 %v3485, %v3793
    %v3810 = vmul.f32 %v3486, %v3793
    %3812 = vset.pattern.permute.xlu0 0
    %3813 = vperm.xlu0 %3812, %v3771
    %v3814 = vpop.permute.xlu0 %3813
    %3817 = vset.pattern.permute.xlu0 0
    %3818 = vperm.xlu0 %3817, %v3772
    %v3819 = vpop.permute.xlu0 %3818
    %3822 = vset.pattern.permute.xlu0 0
    %3823 = vperm.xlu0 %3822, %v3773
    %v3824 = vpop.permute.xlu0 %3823
    %3827 = vset.pattern.permute.xlu0 0
    %3828 = vperm.xlu0 %3827, %v3774
    %v3829 = vpop.permute.xlu0 %3828
    %v3831 = vadd.f32 %v3795, %v3814
    %v3832 = vadd.f32 %v3796, %v3814
    %v3833 = vadd.f32 %v3797, %v3814
    %v3834 = vadd.f32 %v3798, %v3814
    %v3835 = vadd.f32 %v3799, %v3819
    %v3836 = vadd.f32 %v3800, %v3819
    %v3837 = vadd.f32 %v3801, %v3819
    %v3838 = vadd.f32 %v3802, %v3819
    %v3839 = vadd.f32 %v3803, %v3824
    %v3840 = vadd.f32 %v3804, %v3824
    %v3841 = vadd.f32 %v3805, %v3824
    %v3842 = vadd.f32 %v3806, %v3824
    %v3843 = vadd.f32 %v3807, %v3829
    %v3844 = vadd.f32 %v3808, %v3829
    %v3845 = vadd.f32 %v3809, %v3829
    %v3846 = vadd.f32 %v3810, %v3829
    %v3847 = vmul.f32 %v3831, %v1244
    %v3848 = vmul.f32 %v3832, %v1245
    %v3849 = vmul.f32 %v3833, %v1246
    %v3850 = vmul.f32 %v3834, %v1247
    %v3851 = vmul.f32 %v3835, %v1244
    %v3852 = vmul.f32 %v3836, %v1245
    %v3853 = vmul.f32 %v3837, %v1246
    %v3854 = vmul.f32 %v3838, %v1247
    %v3855 = vmul.f32 %v3839, %v1244
    %v3856 = vmul.f32 %v3840, %v1245
    %v3857 = vmul.f32 %v3841, %v1246
    %v3858 = vmul.f32 %v3842, %v1247
    %v3859 = vmul.f32 %v3843, %v1244
    %v3860 = vmul.f32 %v3844, %v1245
    %v3861 = vmul.f32 %v3845, %v1246
    %v3862 = vmul.f32 %v3846, %v1247
    %v3863 = vld [vmem:[%s11] sm:$0xff]
    %v3864 = vld [vmem:[%s11 + $0x8] sm:$0xff]
    %v3865 = vld [vmem:[%s10] sm:$0xff]
    %v3866 = vld [vmem:[%s10 + $0x8] sm:$0xff]
    %3867 = vrot.lane.b32.xlu0 %v3847, 23
    %v3868 = vpop.permute.xlu0 %3867
    %3869 = vrot.lane.b32.xlu0 %v3851, 23
    %v3870 = vpop.permute.xlu0 %3869
    %3871 = vrot.lane.b32.xlu0 %v3855, 23
    %v3872 = vpop.permute.xlu0 %3871
    %3873 = vrot.lane.b32.xlu0 %v3859, 23
    %v3874 = vpop.permute.xlu0 %3873
    %3875 = vrot.lane.b32.xlu0 %v3848, 23
    %v3876 = vpop.permute.xlu0 %3875
    %3877 = vrot.lane.b32.xlu0 %v3852, 23
    %v3878 = vpop.permute.xlu0 %3877
    %3879 = vrot.lane.b32.xlu0 %v3856, 23
    %v3880 = vpop.permute.xlu0 %3879
    %3881 = vrot.lane.b32.xlu0 %v3860, 23
    %v3882 = vpop.permute.xlu0 %3881
    %3883 = vrot.lane.b32.xlu0 %v3849, 23
    %v3884 = vpop.permute.xlu0 %3883
    %3885 = vrot.lane.b32.xlu0 %v3853, 23
    %v3886 = vpop.permute.xlu0 %3885
    %3887 = vrot.lane.b32.xlu0 %v3857, 23
    %v3888 = vpop.permute.xlu0 %3887
    %3889 = vrot.lane.b32.xlu0 %v3861, 23
    %v3890 = vpop.permute.xlu0 %3889
    %3891 = vrot.lane.b32.xlu0 %v3850, 23
    %v3892 = vpop.permute.xlu0 %3891
    %3893 = vrot.lane.b32.xlu0 %v3854, 23
    %v3894 = vpop.permute.xlu0 %3893
    %3895 = vrot.lane.b32.xlu0 %v3858, 23
    %v3896 = vpop.permute.xlu0 %3895
    %3897 = vrot.lane.b32.xlu0 %v3862, 23
    %v3898 = vpop.permute.xlu0 %3897
    %v3899 = vsel %vm462, %v3884, %v3892
    %v3900 = vsel %vm462, %v3886, %v3894
    %v3901 = vsel %vm462, %v3888, %v3896
    %v3902 = vsel %vm462, %v3890, %v3898
    %v3903 = vsel %vm462, %v3876, %v3884
    %v3904 = vsel %vm462, %v3878, %v3886
    %v3905 = vsel %vm462, %v3880, %v3888
    %v3906 = vsel %vm462, %v3882, %v3890
    %v3907 = vsel %vm462, %v3868, %v3876
    %v3908 = vsel %vm462, %v3870, %v3878
    %v3909 = vsel %vm462, %v3872, %v3880
    %v3910 = vsel %vm462, %v3874, %v3882
    %v3911 = vsel %vm462, %v3892, %v3868
    %v3912 = vsel %vm462, %v3894, %v3870
    %v3913 = vsel %vm462, %v3896, %v3872
    %v3914 = vsel %vm462, %v3898, %v3874
    %vm3915 = vcmask 261120
    %v3917 = vsel %vm3915, %v3865, 0
    %v3920 = vsel %vm3915, %v3866, 0
    %3922 = vmatpush.msra.mxu0 0.0
    %3923 = vmatpush.msra.mxu0 0.0
    %3924 = vmatpush.msra.mxu0 0.0
    %3925 = vmatpush.msra.mxu0 0.0
    %3926 = vmatpush.msra.mxu0 0.0
    %3927 = vmatpush.msra.mxu0 0.0
    %3928 = vmatpush.msra.mxu0 0.0
    %3929 = vmatpush.msra.mxu0 0.0
    %3930 = vmatpush.msra.mxu0 0.0
    %3931 = vmatpush.msra.mxu0 0.0
    %3932 = vmatpush.msra.mxu0 0.0
    %3933 = vmatpush.msra.mxu0 0.0
    %3934 = vmatpush.msra.mxu0 %v3914
    %3935 = vmatpush.msra.mxu0 %v3913
    %3936 = vmatpush.msra.mxu0 %v3912
    %3937 = vmatpush.msra.mxu0 %v3911
    %3938 = vmatmul.f32.gmra.mxu0 %v3917
    %v3939 = vpop.f32.mrf.mxu0
    %v3940 = vadd.f32 0.0, %v3939
    %3941 = vmatmul.f32.gmra.mxu0 %v3920
    %v3942 = vpop.f32.mrf.mxu0
    %v3943 = vadd.f32 0.0, %v3942
    %3944 = vdwg.mxu0
    %3945 = vmatpush.msra.mxu0 0.0
    %3946 = vmatpush.msra.mxu0 0.0
    %3947 = vmatpush.msra.mxu0 0.0
    %3948 = vmatpush.msra.mxu0 0.0
    %3949 = vmatpush.msra.mxu0 0.0
    %3950 = vmatpush.msra.mxu0 0.0
    %3951 = vmatpush.msra.mxu0 0.0
    %3952 = vmatpush.msra.mxu0 0.0
    %3953 = vmatpush.msra.mxu0 0.0
    %3954 = vmatpush.msra.mxu0 0.0
    %3955 = vmatpush.msra.mxu0 0.0
    %3956 = vmatpush.msra.mxu0 0.0
    %3957 = vmatpush.msra.mxu0 %v3910
    %3958 = vmatpush.msra.mxu0 %v3909
    %3959 = vmatpush.msra.mxu0 %v3908
    %3960 = vmatpush.msra.mxu0 %v3907
    %3961 = vmatmul.f32.gmra.mxu0 %v3917
    %v3962 = vpop.f32.mrf.mxu0
    %v3963 = vadd.f32 0.0, %v3962
    %3964 = vmatmul.f32.gmra.mxu0 %v3920
    %v3965 = vpop.f32.mrf.mxu0
    %v3966 = vadd.f32 0.0, %v3965
    %3967 = vdwg.mxu0
    %3968 = vmatpush.msra.mxu0 0.0
    %3969 = vmatpush.msra.mxu0 0.0
    %3970 = vmatpush.msra.mxu0 0.0
    %3971 = vmatpush.msra.mxu0 0.0
    %3972 = vmatpush.msra.mxu0 0.0
    %3973 = vmatpush.msra.mxu0 0.0
    %3974 = vmatpush.msra.mxu0 0.0
    %3975 = vmatpush.msra.mxu0 0.0
    %3976 = vmatpush.msra.mxu0 0.0
    %3977 = vmatpush.msra.mxu0 0.0
    %3978 = vmatpush.msra.mxu0 0.0
    %3979 = vmatpush.msra.mxu0 0.0
    %3980 = vmatpush.msra.mxu0 %v3906
    %3981 = vmatpush.msra.mxu0 %v3905
    %3982 = vmatpush.msra.mxu0 %v3904
    %3983 = vmatpush.msra.mxu0 %v3903
    %3984 = vmatmul.f32.gmra.mxu0 %v3917
    %v3985 = vpop.f32.mrf.mxu0
    %v3986 = vadd.f32 0.0, %v3985
    %3987 = vmatmul.f32.gmra.mxu0 %v3920
    %v3988 = vpop.f32.mrf.mxu0
    %v3989 = vadd.f32 0.0, %v3988
    %3990 = vdwg.mxu0
    %3991 = vmatpush.msra.mxu0 0.0
    %3992 = vmatpush.msra.mxu0 0.0
    %3993 = vmatpush.msra.mxu0 0.0
    %3994 = vmatpush.msra.mxu0 0.0
    %3995 = vmatpush.msra.mxu0 0.0
    %3996 = vmatpush.msra.mxu0 0.0
    %3997 = vmatpush.msra.mxu0 0.0
    %3998 = vmatpush.msra.mxu0 0.0
    %3999 = vmatpush.msra.mxu0 0.0
    %4000 = vmatpush.msra.mxu0 0.0
    %4001 = vmatpush.msra.mxu0 0.0
    %4002 = vmatpush.msra.mxu0 0.0
    %4003 = vmatpush.msra.mxu0 %v3902
    %4004 = vmatpush.msra.mxu0 %v3901
    %4005 = vmatpush.msra.mxu0 %v3900
    %4006 = vmatpush.msra.mxu0 %v3899
    %4007 = vmatmul.f32.gmra.mxu0 %v3917
    %v4008 = vpop.f32.mrf.mxu0
    %v4009 = vadd.f32 0.0, %v4008
    %4010 = vmatmul.f32.gmra.mxu0 %v3920
    %v4011 = vpop.f32.mrf.mxu0
    %v4012 = vadd.f32 0.0, %v4011
    %4013 = vdwg.mxu0
    %v4015 = vsel %vm1435, %v3863, 0
    %v4018 = vsel %vm1435, %v3864, 0
    %4020 = vmatpush.msra.mxu0 0.0
    %4021 = vmatpush.msra.mxu0 0.0
    %4022 = vmatpush.msra.mxu0 0.0
    %4023 = vmatpush.msra.mxu0 0.0
    %4024 = vmatpush.msra.mxu0 0.0
    %4025 = vmatpush.msra.mxu0 0.0
    %4026 = vmatpush.msra.mxu0 0.0
    %4027 = vmatpush.msra.mxu0 0.0
    %4028 = vmatpush.msra.mxu0 0.0
    %4029 = vmatpush.msra.mxu0 0.0
    %4030 = vmatpush.msra.mxu0 0.0
    %4031 = vmatpush.msra.mxu0 0.0
    %4032 = vmatpush.msra.mxu0 0.0
    %4033 = vmatpush.msra.mxu0 0.0
    %4034 = vmatpush.msra.mxu0 0.0
    %4035 = vmatpush.msra.mxu0 %v45
    %4036 = vmatmul.f32.gmra.mxu0 %v4015
    %v4037 = vpop.f32.mrf.mxu0
    %v4038 = vadd.f32 %v3940, %v4037
    %4039 = vmatmul.f32.gmra.mxu0 %v4018
    %v4040 = vpop.f32.mrf.mxu0
    %v4041 = vadd.f32 %v3943, %v4040
    %4042 = vdwg.mxu0
    %4043 = vmatpush.msra.mxu0 0.0
    %4044 = vmatpush.msra.mxu0 0.0
    %4045 = vmatpush.msra.mxu0 0.0
    %4046 = vmatpush.msra.mxu0 0.0
    %4047 = vmatpush.msra.mxu0 0.0
    %4048 = vmatpush.msra.mxu0 0.0
    %4049 = vmatpush.msra.mxu0 0.0
    %4050 = vmatpush.msra.mxu0 0.0
    %4051 = vmatpush.msra.mxu0 0.0
    %4052 = vmatpush.msra.mxu0 0.0
    %4053 = vmatpush.msra.mxu0 0.0
    %4054 = vmatpush.msra.mxu0 0.0
    %4055 = vmatpush.msra.mxu0 0.0
    %4056 = vmatpush.msra.mxu0 0.0
    %4057 = vmatpush.msra.mxu0 0.0
    %4058 = vmatpush.msra.mxu0 %v46
    %4059 = vmatmul.f32.gmra.mxu0 %v4015
    %v4060 = vpop.f32.mrf.mxu0
    %v4061 = vadd.f32 %v3963, %v4060
    %4062 = vmatmul.f32.gmra.mxu0 %v4018
    %v4063 = vpop.f32.mrf.mxu0
    %v4064 = vadd.f32 %v3966, %v4063
    %4065 = vdwg.mxu0
    %4066 = vmatpush.msra.mxu0 0.0
    %4067 = vmatpush.msra.mxu0 0.0
    %4068 = vmatpush.msra.mxu0 0.0
    %4069 = vmatpush.msra.mxu0 0.0
    %4070 = vmatpush.msra.mxu0 0.0
    %4071 = vmatpush.msra.mxu0 0.0
    %4072 = vmatpush.msra.mxu0 0.0
    %4073 = vmatpush.msra.mxu0 0.0
    %4074 = vmatpush.msra.mxu0 0.0
    %4075 = vmatpush.msra.mxu0 0.0
    %4076 = vmatpush.msra.mxu0 0.0
    %4077 = vmatpush.msra.mxu0 0.0
    %4078 = vmatpush.msra.mxu0 0.0
    %4079 = vmatpush.msra.mxu0 0.0
    %4080 = vmatpush.msra.mxu0 0.0
    %4081 = vmatpush.msra.mxu0 %v47
    %4082 = vmatmul.f32.gmra.mxu0 %v4015
    %v4083 = vpop.f32.mrf.mxu0
    %v4084 = vadd.f32 %v3986, %v4083
    %4085 = vmatmul.f32.gmra.mxu0 %v4018
    %v4086 = vpop.f32.mrf.mxu0
    %v4087 = vadd.f32 %v3989, %v4086
    %4088 = vdwg.mxu0
    %4089 = vmatpush.msra.mxu0 0.0
    %4090 = vmatpush.msra.mxu0 0.0
    %4091 = vmatpush.msra.mxu0 0.0
    %4092 = vmatpush.msra.mxu0 0.0
    %4093 = vmatpush.msra.mxu0 0.0
    %4094 = vmatpush.msra.mxu0 0.0
    %4095 = vmatpush.msra.mxu0 0.0
    %4096 = vmatpush.msra.mxu0 0.0
    %4097 = vmatpush.msra.mxu0 0.0
    %4098 = vmatpush.msra.mxu0 0.0
    %4099 = vmatpush.msra.mxu0 0.0
    %4100 = vmatpush.msra.mxu0 0.0
    %4101 = vmatpush.msra.mxu0 0.0
    %4102 = vmatpush.msra.mxu0 0.0
    %4103 = vmatpush.msra.mxu0 0.0
    %4104 = vmatpush.msra.mxu0 %v48
    %4105 = vmatmul.f32.gmra.mxu0 %v4015
    %v4106 = vpop.f32.mrf.mxu0
    %v4107 = vadd.f32 %v4009, %v4106
    %4108 = vmatmul.f32.gmra.mxu0 %v4018
    %v4109 = vpop.f32.mrf.mxu0
    %v4110 = vadd.f32 %v4012, %v4109
    %4111 = vdwg.mxu0
    %s4112 = scalar_lea.vmem %s10, 16
    %v4113 = vld [vmem:[%s4112] sm:$0xff]
    %v4114 = vld [vmem:[%s4112 + $0x8] sm:$0xff]
    %4115 = vrot.lane.b32.xlu0 %v3847, 22
    %v4116 = vpop.permute.xlu0 %4115
    %4117 = vrot.lane.b32.xlu0 %v3851, 22
    %v4118 = vpop.permute.xlu0 %4117
    %4119 = vrot.lane.b32.xlu0 %v3855, 22
    %v4120 = vpop.permute.xlu0 %4119
    %4121 = vrot.lane.b32.xlu0 %v3859, 22
    %v4122 = vpop.permute.xlu0 %4121
    %4123 = vrot.lane.b32.xlu0 %v3848, 22
    %v4124 = vpop.permute.xlu0 %4123
    %4125 = vrot.lane.b32.xlu0 %v3852, 22
    %v4126 = vpop.permute.xlu0 %4125
    %4127 = vrot.lane.b32.xlu0 %v3856, 22
    %v4128 = vpop.permute.xlu0 %4127
    %4129 = vrot.lane.b32.xlu0 %v3860, 22
    %v4130 = vpop.permute.xlu0 %4129
    %4131 = vrot.lane.b32.xlu0 %v3849, 22
    %v4132 = vpop.permute.xlu0 %4131
    %4133 = vrot.lane.b32.xlu0 %v3853, 22
    %v4134 = vpop.permute.xlu0 %4133
    %4135 = vrot.lane.b32.xlu0 %v3857, 22
    %v4136 = vpop.permute.xlu0 %4135
    %4137 = vrot.lane.b32.xlu0 %v3861, 22
    %v4138 = vpop.permute.xlu0 %4137
    %4139 = vrot.lane.b32.xlu0 %v3850, 22
    %v4140 = vpop.permute.xlu0 %4139
    %4141 = vrot.lane.b32.xlu0 %v3854, 22
    %v4142 = vpop.permute.xlu0 %4141
    %4143 = vrot.lane.b32.xlu0 %v3858, 22
    %v4144 = vpop.permute.xlu0 %4143
    %4145 = vrot.lane.b32.xlu0 %v3862, 22
    %v4146 = vpop.permute.xlu0 %4145
    %v4147 = vsel %vm487, %v4132, %v4140
    %v4148 = vsel %vm487, %v4134, %v4142
    %v4149 = vsel %vm487, %v4136, %v4144
    %v4150 = vsel %vm487, %v4138, %v4146
    %v4151 = vsel %vm487, %v4124, %v4132
    %v4152 = vsel %vm487, %v4126, %v4134
    %v4153 = vsel %vm487, %v4128, %v4136
    %v4154 = vsel %vm487, %v4130, %v4138
    %v4155 = vsel %vm487, %v4116, %v4124
    %v4156 = vsel %vm487, %v4118, %v4126
    %v4157 = vsel %vm487, %v4120, %v4128
    %v4158 = vsel %vm487, %v4122, %v4130
    %v4159 = vsel %vm487, %v4140, %v4116
    %v4160 = vsel %vm487, %v4142, %v4118
    %v4161 = vsel %vm487, %v4144, %v4120
    %v4162 = vsel %vm487, %v4146, %v4122
    %v4164 = vsel %vm3915, %v4113, 0
    %v4167 = vsel %vm3915, %v4114, 0
    %4169 = vmatpush.msra.mxu0 0.0
    %4170 = vmatpush.msra.mxu0 0.0
    %4171 = vmatpush.msra.mxu0 0.0
    %4172 = vmatpush.msra.mxu0 0.0
    %4173 = vmatpush.msra.mxu0 0.0
    %4174 = vmatpush.msra.mxu0 0.0
    %4175 = vmatpush.msra.mxu0 0.0
    %4176 = vmatpush.msra.mxu0 0.0
    %4177 = vmatpush.msra.mxu0 0.0
    %4178 = vmatpush.msra.mxu0 0.0
    %4179 = vmatpush.msra.mxu0 0.0
    %4180 = vmatpush.msra.mxu0 0.0
    %4181 = vmatpush.msra.mxu0 %v4162
    %4182 = vmatpush.msra.mxu0 %v4161
    %4183 = vmatpush.msra.mxu0 %v4160
    %4184 = vmatpush.msra.mxu0 %v4159
    %4185 = vmatmul.f32.gmra.mxu0 %v4164
    %v4186 = vpop.f32.mrf.mxu0
    %v4187 = vadd.f32 0.0, %v4186
    %4188 = vmatmul.f32.gmra.mxu0 %v4167
    %v4189 = vpop.f32.mrf.mxu0
    %v4190 = vadd.f32 0.0, %v4189
    %4191 = vdwg.mxu0
    %4192 = vmatpush.msra.mxu0 0.0
    %4193 = vmatpush.msra.mxu0 0.0
    %4194 = vmatpush.msra.mxu0 0.0
    %4195 = vmatpush.msra.mxu0 0.0
    %4196 = vmatpush.msra.mxu0 0.0
    %4197 = vmatpush.msra.mxu0 0.0
    %4198 = vmatpush.msra.mxu0 0.0
    %4199 = vmatpush.msra.mxu0 0.0
    %4200 = vmatpush.msra.mxu0 0.0
    %4201 = vmatpush.msra.mxu0 0.0
    %4202 = vmatpush.msra.mxu0 0.0
    %4203 = vmatpush.msra.mxu0 0.0
    %4204 = vmatpush.msra.mxu0 %v4158
    %4205 = vmatpush.msra.mxu0 %v4157
    %4206 = vmatpush.msra.mxu0 %v4156
    %4207 = vmatpush.msra.mxu0 %v4155
    %4208 = vmatmul.f32.gmra.mxu0 %v4164
    %v4209 = vpop.f32.mrf.mxu0
    %v4210 = vadd.f32 0.0, %v4209
    %4211 = vmatmul.f32.gmra.mxu0 %v4167
    %v4212 = vpop.f32.mrf.mxu0
    %v4213 = vadd.f32 0.0, %v4212
    %4214 = vdwg.mxu0
    %4215 = vmatpush.msra.mxu0 0.0
    %4216 = vmatpush.msra.mxu0 0.0
    %4217 = vmatpush.msra.mxu0 0.0
    %4218 = vmatpush.msra.mxu0 0.0
    %4219 = vmatpush.msra.mxu0 0.0
    %4220 = vmatpush.msra.mxu0 0.0
    %4221 = vmatpush.msra.mxu0 0.0
    %4222 = vmatpush.msra.mxu0 0.0
    %4223 = vmatpush.msra.mxu0 0.0
    %4224 = vmatpush.msra.mxu0 0.0
    %4225 = vmatpush.msra.mxu0 0.0
    %4226 = vmatpush.msra.mxu0 0.0
    %4227 = vmatpush.msra.mxu0 %v4154
    %4228 = vmatpush.msra.mxu0 %v4153
    %4229 = vmatpush.msra.mxu0 %v4152
    %4230 = vmatpush.msra.mxu0 %v4151
    %4231 = vmatmul.f32.gmra.mxu0 %v4164
    %v4232 = vpop.f32.mrf.mxu0
    %v4233 = vadd.f32 0.0, %v4232
    %4234 = vmatmul.f32.gmra.mxu0 %v4167
    %v4235 = vpop.f32.mrf.mxu0
    %v4236 = vadd.f32 0.0, %v4235
    %4237 = vdwg.mxu0
    %4238 = vmatpush.msra.mxu0 0.0
    %4239 = vmatpush.msra.mxu0 0.0
    %4240 = vmatpush.msra.mxu0 0.0
    %4241 = vmatpush.msra.mxu0 0.0
    %4242 = vmatpush.msra.mxu0 0.0
    %4243 = vmatpush.msra.mxu0 0.0
    %4244 = vmatpush.msra.mxu0 0.0
    %4245 = vmatpush.msra.mxu0 0.0
    %4246 = vmatpush.msra.mxu0 0.0
    %4247 = vmatpush.msra.mxu0 0.0
    %4248 = vmatpush.msra.mxu0 0.0
    %4249 = vmatpush.msra.mxu0 0.0
    %4250 = vmatpush.msra.mxu0 %v4150
    %4251 = vmatpush.msra.mxu0 %v4149
    %4252 = vmatpush.msra.mxu0 %v4148
    %4253 = vmatpush.msra.mxu0 %v4147
    %4254 = vmatmul.f32.gmra.mxu0 %v4164
    %v4255 = vpop.f32.mrf.mxu0
    %v4256 = vadd.f32 0.0, %v4255
    %4257 = vmatmul.f32.gmra.mxu0 %v4167
    %v4258 = vpop.f32.mrf.mxu0
    %v4259 = vadd.f32 0.0, %v4258
    %4260 = vdwg.mxu0
    %v4261 = vadd.f32 %v4038, %v4187
    %v4262 = vadd.f32 %v4061, %v4210
    %v4263 = vadd.f32 %v4084, %v4233
    %v4264 = vadd.f32 %v4107, %v4256
    %v4265 = vadd.f32 %v4041, %v4190
    %v4266 = vadd.f32 %v4064, %v4213
    %v4267 = vadd.f32 %v4087, %v4236
    %v4268 = vadd.f32 %v4110, %v4259
    %s4269 = scalar_lea.vmem %s10, 32
    %v4270 = vld [vmem:[%s4269] sm:$0xff]
    %v4271 = vld [vmem:[%s4269 + $0x8] sm:$0xff]
    %4272 = vrot.lane.b32.xlu0 %v3847, 21
    %v4273 = vpop.permute.xlu0 %4272
    %4274 = vrot.lane.b32.xlu0 %v3851, 21
    %v4275 = vpop.permute.xlu0 %4274
    %4276 = vrot.lane.b32.xlu0 %v3855, 21
    %v4277 = vpop.permute.xlu0 %4276
    %4278 = vrot.lane.b32.xlu0 %v3859, 21
    %v4279 = vpop.permute.xlu0 %4278
    %4280 = vrot.lane.b32.xlu0 %v3848, 21
    %v4281 = vpop.permute.xlu0 %4280
    %4282 = vrot.lane.b32.xlu0 %v3852, 21
    %v4283 = vpop.permute.xlu0 %4282
    %4284 = vrot.lane.b32.xlu0 %v3856, 21
    %v4285 = vpop.permute.xlu0 %4284
    %4286 = vrot.lane.b32.xlu0 %v3860, 21
    %v4287 = vpop.permute.xlu0 %4286
    %4288 = vrot.lane.b32.xlu0 %v3849, 21
    %v4289 = vpop.permute.xlu0 %4288
    %4290 = vrot.lane.b32.xlu0 %v3853, 21
    %v4291 = vpop.permute.xlu0 %4290
    %4292 = vrot.lane.b32.xlu0 %v3857, 21
    %v4293 = vpop.permute.xlu0 %4292
    %4294 = vrot.lane.b32.xlu0 %v3861, 21
    %v4295 = vpop.permute.xlu0 %4294
    %4296 = vrot.lane.b32.xlu0 %v3850, 21
    %v4297 = vpop.permute.xlu0 %4296
    %4298 = vrot.lane.b32.xlu0 %v3854, 21
    %v4299 = vpop.permute.xlu0 %4298
    %4300 = vrot.lane.b32.xlu0 %v3858, 21
    %v4301 = vpop.permute.xlu0 %4300
    %4302 = vrot.lane.b32.xlu0 %v3862, 21
    %v4303 = vpop.permute.xlu0 %4302
    %v4304 = vsel %vm512, %v4289, %v4297
    %v4305 = vsel %vm512, %v4291, %v4299
    %v4306 = vsel %vm512, %v4293, %v4301
    %v4307 = vsel %vm512, %v4295, %v4303
    %v4308 = vsel %vm512, %v4281, %v4289
    %v4309 = vsel %vm512, %v4283, %v4291
    %v4310 = vsel %vm512, %v4285, %v4293
    %v4311 = vsel %vm512, %v4287, %v4295
    %v4312 = vsel %vm512, %v4273, %v4281
    %v4313 = vsel %vm512, %v4275, %v4283
    %v4314 = vsel %vm512, %v4277, %v4285
    %v4315 = vsel %vm512, %v4279, %v4287
    %v4316 = vsel %vm512, %v4297, %v4273
    %v4317 = vsel %vm512, %v4299, %v4275
    %v4318 = vsel %vm512, %v4301, %v4277
    %v4319 = vsel %vm512, %v4303, %v4279
    %v4321 = vsel %vm3915, %v4270, 0
    %v4324 = vsel %vm3915, %v4271, 0
    %4326 = vmatpush.msra.mxu0 0.0
    %4327 = vmatpush.msra.mxu0 0.0
    %4328 = vmatpush.msra.mxu0 0.0
    %4329 = vmatpush.msra.mxu0 0.0
    %4330 = vmatpush.msra.mxu0 0.0
    %4331 = vmatpush.msra.mxu0 0.0
    %4332 = vmatpush.msra.mxu0 0.0
    %4333 = vmatpush.msra.mxu0 0.0
    %4334 = vmatpush.msra.mxu0 0.0
    %4335 = vmatpush.msra.mxu0 0.0
    %4336 = vmatpush.msra.mxu0 0.0
    %4337 = vmatpush.msra.mxu0 0.0
    %4338 = vmatpush.msra.mxu0 %v4319
    %4339 = vmatpush.msra.mxu0 %v4318
    %4340 = vmatpush.msra.mxu0 %v4317
    %4341 = vmatpush.msra.mxu0 %v4316
    %4342 = vmatmul.f32.gmra.mxu0 %v4321
    %v4343 = vpop.f32.mrf.mxu0
    %v4344 = vadd.f32 0.0, %v4343
    %4345 = vmatmul.f32.gmra.mxu0 %v4324
    %v4346 = vpop.f32.mrf.mxu0
    %v4347 = vadd.f32 0.0, %v4346
    %4348 = vdwg.mxu0
    %4349 = vmatpush.msra.mxu0 0.0
    %4350 = vmatpush.msra.mxu0 0.0
    %4351 = vmatpush.msra.mxu0 0.0
    %4352 = vmatpush.msra.mxu0 0.0
    %4353 = vmatpush.msra.mxu0 0.0
    %4354 = vmatpush.msra.mxu0 0.0
    %4355 = vmatpush.msra.mxu0 0.0
    %4356 = vmatpush.msra.mxu0 0.0
    %4357 = vmatpush.msra.mxu0 0.0
    %4358 = vmatpush.msra.mxu0 0.0
    %4359 = vmatpush.msra.mxu0 0.0
    %4360 = vmatpush.msra.mxu0 0.0
    %4361 = vmatpush.msra.mxu0 %v4315
    %4362 = vmatpush.msra.mxu0 %v4314
    %4363 = vmatpush.msra.mxu0 %v4313
    %4364 = vmatpush.msra.mxu0 %v4312
    %4365 = vmatmul.f32.gmra.mxu0 %v4321
    %v4366 = vpop.f32.mrf.mxu0
    %v4367 = vadd.f32 0.0, %v4366
    %4368 = vmatmul.f32.gmra.mxu0 %v4324
    %v4369 = vpop.f32.mrf.mxu0
    %v4370 = vadd.f32 0.0, %v4369
    %4371 = vdwg.mxu0
    %4372 = vmatpush.msra.mxu0 0.0
    %4373 = vmatpush.msra.mxu0 0.0
    %4374 = vmatpush.msra.mxu0 0.0
    %4375 = vmatpush.msra.mxu0 0.0
    %4376 = vmatpush.msra.mxu0 0.0
    %4377 = vmatpush.msra.mxu0 0.0
    %4378 = vmatpush.msra.mxu0 0.0
    %4379 = vmatpush.msra.mxu0 0.0
    %4380 = vmatpush.msra.mxu0 0.0
    %4381 = vmatpush.msra.mxu0 0.0
    %4382 = vmatpush.msra.mxu0 0.0
    %4383 = vmatpush.msra.mxu0 0.0
    %4384 = vmatpush.msra.mxu0 %v4311
    %4385 = vmatpush.msra.mxu0 %v4310
    %4386 = vmatpush.msra.mxu0 %v4309
    %4387 = vmatpush.msra.mxu0 %v4308
    %4388 = vmatmul.f32.gmra.mxu0 %v4321
    %v4389 = vpop.f32.mrf.mxu0
    %v4390 = vadd.f32 0.0, %v4389
    %4391 = vmatmul.f32.gmra.mxu0 %v4324
    %v4392 = vpop.f32.mrf.mxu0
    %v4393 = vadd.f32 0.0, %v4392
    %4394 = vdwg.mxu0
    %4395 = vmatpush.msra.mxu0 0.0
    %4396 = vmatpush.msra.mxu0 0.0
    %4397 = vmatpush.msra.mxu0 0.0
    %4398 = vmatpush.msra.mxu0 0.0
    %4399 = vmatpush.msra.mxu0 0.0
    %4400 = vmatpush.msra.mxu0 0.0
    %4401 = vmatpush.msra.mxu0 0.0
    %4402 = vmatpush.msra.mxu0 0.0
    %4403 = vmatpush.msra.mxu0 0.0
    %4404 = vmatpush.msra.mxu0 0.0
    %4405 = vmatpush.msra.mxu0 0.0
    %4406 = vmatpush.msra.mxu0 0.0
    %4407 = vmatpush.msra.mxu0 %v4307
    %4408 = vmatpush.msra.mxu0 %v4306
    %4409 = vmatpush.msra.mxu0 %v4305
    %4410 = vmatpush.msra.mxu0 %v4304
    %4411 = vmatmul.f32.gmra.mxu0 %v4321
    %v4412 = vpop.f32.mrf.mxu0
    %v4413 = vadd.f32 0.0, %v4412
    %4414 = vmatmul.f32.gmra.mxu0 %v4324
    %v4415 = vpop.f32.mrf.mxu0
    %v4416 = vadd.f32 0.0, %v4415
    %4417 = vdwg.mxu0
    %v4418 = vadd.f32 %v4261, %v4344
    %v4419 = vadd.f32 %v4262, %v4367
    %v4420 = vadd.f32 %v4263, %v4390
    %v4421 = vadd.f32 %v4264, %v4413
    %v4422 = vadd.f32 %v4265, %v4347
    %v4423 = vadd.f32 %v4266, %v4370
    %v4424 = vadd.f32 %v4267, %v4393
    %v4425 = vadd.f32 %v4268, %v4416
    %s4426 = scalar_lea.vmem %s10, 48
    %v4427 = vld [vmem:[%s4426] sm:$0xff]
    %v4428 = vld [vmem:[%s4426 + $0x8] sm:$0xff]
    %4429 = vrot.lane.b32.xlu0 %v3847, 1
    %v4430 = vpop.permute.xlu0 %4429
    %4431 = vrot.lane.b32.xlu0 %v3851, 1
    %v4432 = vpop.permute.xlu0 %4431
    %4433 = vrot.lane.b32.xlu0 %v3855, 1
    %v4434 = vpop.permute.xlu0 %4433
    %4435 = vrot.lane.b32.xlu0 %v3859, 1
    %v4436 = vpop.permute.xlu0 %4435
    %4437 = vrot.lane.b32.xlu0 %v3848, 1
    %v4438 = vpop.permute.xlu0 %4437
    %4439 = vrot.lane.b32.xlu0 %v3852, 1
    %v4440 = vpop.permute.xlu0 %4439
    %4441 = vrot.lane.b32.xlu0 %v3856, 1
    %v4442 = vpop.permute.xlu0 %4441
    %4443 = vrot.lane.b32.xlu0 %v3860, 1
    %v4444 = vpop.permute.xlu0 %4443
    %4445 = vrot.lane.b32.xlu0 %v3849, 1
    %v4446 = vpop.permute.xlu0 %4445
    %4447 = vrot.lane.b32.xlu0 %v3853, 1
    %v4448 = vpop.permute.xlu0 %4447
    %4449 = vrot.lane.b32.xlu0 %v3857, 1
    %v4450 = vpop.permute.xlu0 %4449
    %4451 = vrot.lane.b32.xlu0 %v3861, 1
    %v4452 = vpop.permute.xlu0 %4451
    %4453 = vrot.lane.b32.xlu0 %v3850, 1
    %v4454 = vpop.permute.xlu0 %4453
    %4455 = vrot.lane.b32.xlu0 %v3854, 1
    %v4456 = vpop.permute.xlu0 %4455
    %4457 = vrot.lane.b32.xlu0 %v3858, 1
    %v4458 = vpop.permute.xlu0 %4457
    %4459 = vrot.lane.b32.xlu0 %v3862, 1
    %v4460 = vpop.permute.xlu0 %4459
    %v4461 = vsel %vm637, %v4446, %v4454
    %v4462 = vsel %vm637, %v4448, %v4456
    %v4463 = vsel %vm637, %v4450, %v4458
    %v4464 = vsel %vm637, %v4452, %v4460
    %v4465 = vsel %vm637, %v4438, %v4446
    %v4466 = vsel %vm637, %v4440, %v4448
    %v4467 = vsel %vm637, %v4442, %v4450
    %v4468 = vsel %vm637, %v4444, %v4452
    %v4469 = vsel %vm637, %v4430, %v4438
    %v4470 = vsel %vm637, %v4432, %v4440
    %v4471 = vsel %vm637, %v4434, %v4442
    %v4472 = vsel %vm637, %v4436, %v4444
    %v4473 = vsel %vm637, %v4454, %v4430
    %v4474 = vsel %vm637, %v4456, %v4432
    %v4475 = vsel %vm637, %v4458, %v4434
    %v4476 = vsel %vm637, %v4460, %v4436
    %v4478 = vsel %vm3915, %v4427, 0
    %v4481 = vsel %vm3915, %v4428, 0
    %4483 = vmatpush.msra.mxu0 0.0
    %4484 = vmatpush.msra.mxu0 0.0
    %4485 = vmatpush.msra.mxu0 0.0
    %4486 = vmatpush.msra.mxu0 0.0
    %4487 = vmatpush.msra.mxu0 0.0
    %4488 = vmatpush.msra.mxu0 0.0
    %4489 = vmatpush.msra.mxu0 0.0
    %4490 = vmatpush.msra.mxu0 0.0
    %4491 = vmatpush.msra.mxu0 0.0
    %4492 = vmatpush.msra.mxu0 0.0
    %4493 = vmatpush.msra.mxu0 0.0
    %4494 = vmatpush.msra.mxu0 0.0
    %4495 = vmatpush.msra.mxu0 %v4476
    %4496 = vmatpush.msra.mxu0 %v4475
    %4497 = vmatpush.msra.mxu0 %v4474
    %4498 = vmatpush.msra.mxu0 %v4473
    %4499 = vmatmul.f32.gmra.mxu0 %v4478
    %v4500 = vpop.f32.mrf.mxu0
    %v4501 = vadd.f32 0.0, %v4500
    %4502 = vmatmul.f32.gmra.mxu0 %v4481
    %v4503 = vpop.f32.mrf.mxu0
    %v4504 = vadd.f32 0.0, %v4503
    %4505 = vdwg.mxu0
    %4506 = vmatpush.msra.mxu0 0.0
    %4507 = vmatpush.msra.mxu0 0.0
    %4508 = vmatpush.msra.mxu0 0.0
    %4509 = vmatpush.msra.mxu0 0.0
    %4510 = vmatpush.msra.mxu0 0.0
    %4511 = vmatpush.msra.mxu0 0.0
    %4512 = vmatpush.msra.mxu0 0.0
    %4513 = vmatpush.msra.mxu0 0.0
    %4514 = vmatpush.msra.mxu0 0.0
    %4515 = vmatpush.msra.mxu0 0.0
    %4516 = vmatpush.msra.mxu0 0.0
    %4517 = vmatpush.msra.mxu0 0.0
    %4518 = vmatpush.msra.mxu0 %v4472
    %4519 = vmatpush.msra.mxu0 %v4471
    %4520 = vmatpush.msra.mxu0 %v4470
    %4521 = vmatpush.msra.mxu0 %v4469
    %4522 = vmatmul.f32.gmra.mxu0 %v4478
    %v4523 = vpop.f32.mrf.mxu0
    %v4524 = vadd.f32 0.0, %v4523
    %4525 = vmatmul.f32.gmra.mxu0 %v4481
    %v4526 = vpop.f32.mrf.mxu0
    %v4527 = vadd.f32 0.0, %v4526
    %4528 = vdwg.mxu0
    %4529 = vmatpush.msra.mxu0 0.0
    %4530 = vmatpush.msra.mxu0 0.0
    %4531 = vmatpush.msra.mxu0 0.0
    %4532 = vmatpush.msra.mxu0 0.0
    %4533 = vmatpush.msra.mxu0 0.0
    %4534 = vmatpush.msra.mxu0 0.0
    %4535 = vmatpush.msra.mxu0 0.0
    %4536 = vmatpush.msra.mxu0 0.0
    %4537 = vmatpush.msra.mxu0 0.0
    %4538 = vmatpush.msra.mxu0 0.0
    %4539 = vmatpush.msra.mxu0 0.0
    %4540 = vmatpush.msra.mxu0 0.0
    %4541 = vmatpush.msra.mxu0 %v4468
    %4542 = vmatpush.msra.mxu0 %v4467
    %4543 = vmatpush.msra.mxu0 %v4466
    %4544 = vmatpush.msra.mxu0 %v4465
    %4545 = vmatmul.f32.gmra.mxu0 %v4478
    %v4546 = vpop.f32.mrf.mxu0
    %v4547 = vadd.f32 0.0, %v4546
    %4548 = vmatmul.f32.gmra.mxu0 %v4481
    %v4549 = vpop.f32.mrf.mxu0
    %v4550 = vadd.f32 0.0, %v4549
    %4551 = vdwg.mxu0
    %4552 = vmatpush.msra.mxu0 0.0
    %4553 = vmatpush.msra.mxu0 0.0
    %4554 = vmatpush.msra.mxu0 0.0
    %4555 = vmatpush.msra.mxu0 0.0
    %4556 = vmatpush.msra.mxu0 0.0
    %4557 = vmatpush.msra.mxu0 0.0
    %4558 = vmatpush.msra.mxu0 0.0
    %4559 = vmatpush.msra.mxu0 0.0
    %4560 = vmatpush.msra.mxu0 0.0
    %4561 = vmatpush.msra.mxu0 0.0
    %4562 = vmatpush.msra.mxu0 0.0
    %4563 = vmatpush.msra.mxu0 0.0
    %4564 = vmatpush.msra.mxu0 %v4464
    %4565 = vmatpush.msra.mxu0 %v4463
    %4566 = vmatpush.msra.mxu0 %v4462
    %4567 = vmatpush.msra.mxu0 %v4461
    %4568 = vmatmul.f32.gmra.mxu0 %v4478
    %v4569 = vpop.f32.mrf.mxu0
    %v4570 = vadd.f32 0.0, %v4569
    %4571 = vmatmul.f32.gmra.mxu0 %v4481
    %v4572 = vpop.f32.mrf.mxu0
    %v4573 = vadd.f32 0.0, %v4572
    %4574 = vdwg.mxu0
    %v4575 = vadd.f32 %v4418, %v4501
    %v4576 = vadd.f32 %v4419, %v4524
    %v4577 = vadd.f32 %v4420, %v4547
    %v4578 = vadd.f32 %v4421, %v4570
    %v4579 = vadd.f32 %v4422, %v4504
    %v4580 = vadd.f32 %v4423, %v4527
    %v4581 = vadd.f32 %v4424, %v4550
    %v4582 = vadd.f32 %v4425, %v4573
    %s4583 = scalar_lea.vmem %s10, 64
    %v4584 = vld [vmem:[%s4583] sm:$0xff]
    %v4585 = vld [vmem:[%s4583 + $0x8] sm:$0xff]
    %v4587 = vsel %vm3915, %v4584, 0
    %v4590 = vsel %vm3915, %v4585, 0
    %4592 = vmatpush.msra.mxu0 0.0
    %4593 = vmatpush.msra.mxu0 0.0
    %4594 = vmatpush.msra.mxu0 0.0
    %4595 = vmatpush.msra.mxu0 0.0
    %4596 = vmatpush.msra.mxu0 0.0
    %4597 = vmatpush.msra.mxu0 0.0
    %4598 = vmatpush.msra.mxu0 0.0
    %4599 = vmatpush.msra.mxu0 0.0
    %4600 = vmatpush.msra.mxu0 0.0
    %4601 = vmatpush.msra.mxu0 0.0
    %4602 = vmatpush.msra.mxu0 0.0
    %4603 = vmatpush.msra.mxu0 0.0
    %4604 = vmatpush.msra.mxu0 %v3859
    %4605 = vmatpush.msra.mxu0 %v3855
    %4606 = vmatpush.msra.mxu0 %v3851
    %4607 = vmatpush.msra.mxu0 %v3847
    %4608 = vmatmul.f32.gmra.mxu0 %v4587
    %v4609 = vpop.f32.mrf.mxu0
    %v4610 = vadd.f32 0.0, %v4609
    %4611 = vmatmul.f32.gmra.mxu0 %v4590
    %v4612 = vpop.f32.mrf.mxu0
    %v4613 = vadd.f32 0.0, %v4612
    %4614 = vdwg.mxu0
    %4615 = vmatpush.msra.mxu0 0.0
    %4616 = vmatpush.msra.mxu0 0.0
    %4617 = vmatpush.msra.mxu0 0.0
    %4618 = vmatpush.msra.mxu0 0.0
    %4619 = vmatpush.msra.mxu0 0.0
    %4620 = vmatpush.msra.mxu0 0.0
    %4621 = vmatpush.msra.mxu0 0.0
    %4622 = vmatpush.msra.mxu0 0.0
    %4623 = vmatpush.msra.mxu0 0.0
    %4624 = vmatpush.msra.mxu0 0.0
    %4625 = vmatpush.msra.mxu0 0.0
    %4626 = vmatpush.msra.mxu0 0.0
    %4627 = vmatpush.msra.mxu0 %v3860
    %4628 = vmatpush.msra.mxu0 %v3856
    %4629 = vmatpush.msra.mxu0 %v3852
    %4630 = vmatpush.msra.mxu0 %v3848
    %4631 = vmatmul.f32.gmra.mxu0 %v4587
    %v4632 = vpop.f32.mrf.mxu0
    %v4633 = vadd.f32 0.0, %v4632
    %4634 = vmatmul.f32.gmra.mxu0 %v4590
    %v4635 = vpop.f32.mrf.mxu0
    %v4636 = vadd.f32 0.0, %v4635
    %4637 = vdwg.mxu0
    %4638 = vmatpush.msra.mxu0 0.0
    %4639 = vmatpush.msra.mxu0 0.0
    %4640 = vmatpush.msra.mxu0 0.0
    %4641 = vmatpush.msra.mxu0 0.0
    %4642 = vmatpush.msra.mxu0 0.0
    %4643 = vmatpush.msra.mxu0 0.0
    %4644 = vmatpush.msra.mxu0 0.0
    %4645 = vmatpush.msra.mxu0 0.0
    %4646 = vmatpush.msra.mxu0 0.0
    %4647 = vmatpush.msra.mxu0 0.0
    %4648 = vmatpush.msra.mxu0 0.0
    %4649 = vmatpush.msra.mxu0 0.0
    %4650 = vmatpush.msra.mxu0 %v3861
    %4651 = vmatpush.msra.mxu0 %v3857
    %4652 = vmatpush.msra.mxu0 %v3853
    %4653 = vmatpush.msra.mxu0 %v3849
    %4654 = vmatmul.f32.gmra.mxu0 %v4587
    %v4655 = vpop.f32.mrf.mxu0
    %v4656 = vadd.f32 0.0, %v4655
    %4657 = vmatmul.f32.gmra.mxu0 %v4590
    %v4658 = vpop.f32.mrf.mxu0
    %v4659 = vadd.f32 0.0, %v4658
    %4660 = vdwg.mxu0
    %4661 = vmatpush.msra.mxu0 0.0
    %4662 = vmatpush.msra.mxu0 0.0
    %4663 = vmatpush.msra.mxu0 0.0
    %4664 = vmatpush.msra.mxu0 0.0
    %4665 = vmatpush.msra.mxu0 0.0
    %4666 = vmatpush.msra.mxu0 0.0
    %4667 = vmatpush.msra.mxu0 0.0
    %4668 = vmatpush.msra.mxu0 0.0
    %4669 = vmatpush.msra.mxu0 0.0
    %4670 = vmatpush.msra.mxu0 0.0
    %4671 = vmatpush.msra.mxu0 0.0
    %4672 = vmatpush.msra.mxu0 0.0
    %4673 = vmatpush.msra.mxu0 %v3862
    %4674 = vmatpush.msra.mxu0 %v3858
    %4675 = vmatpush.msra.mxu0 %v3854
    %4676 = vmatpush.msra.mxu0 %v3850
    %4677 = vmatmul.f32.gmra.mxu0 %v4587
    %v4678 = vpop.f32.mrf.mxu0
    %v4679 = vadd.f32 0.0, %v4678
    %4680 = vmatmul.f32.gmra.mxu0 %v4590
    %v4681 = vpop.f32.mrf.mxu0
    %v4682 = vadd.f32 0.0, %v4681
    %4683 = vdwg.mxu0
    %v4684 = vadd.f32 %v4575, %v4610
    %v4685 = vadd.f32 %v4576, %v4633
    %v4686 = vadd.f32 %v4577, %v4656
    %v4687 = vadd.f32 %v4578, %v4679
    %v4688 = vadd.f32 %v4579, %v4613
    %v4689 = vadd.f32 %v4580, %v4636
    %v4690 = vadd.f32 %v4581, %v4659
    %v4691 = vadd.f32 %v4582, %v4682
    %s4692 = scalar_lea.vmem %s10, 80
    %v4693 = vld [vmem:[%s4692] sm:$0xff]
    %v4694 = vld [vmem:[%s4692 + $0x8] sm:$0xff]
    %4695 = vrot.lane.b32.xlu0 %v3847, 127
    %v4696 = vpop.permute.xlu0 %4695
    %4697 = vrot.lane.b32.xlu0 %v3851, 127
    %v4698 = vpop.permute.xlu0 %4697
    %4699 = vrot.lane.b32.xlu0 %v3855, 127
    %v4700 = vpop.permute.xlu0 %4699
    %4701 = vrot.lane.b32.xlu0 %v3859, 127
    %v4702 = vpop.permute.xlu0 %4701
    %4703 = vrot.lane.b32.xlu0 %v3848, 127
    %v4704 = vpop.permute.xlu0 %4703
    %4705 = vrot.lane.b32.xlu0 %v3852, 127
    %v4706 = vpop.permute.xlu0 %4705
    %4707 = vrot.lane.b32.xlu0 %v3856, 127
    %v4708 = vpop.permute.xlu0 %4707
    %4709 = vrot.lane.b32.xlu0 %v3860, 127
    %v4710 = vpop.permute.xlu0 %4709
    %4711 = vrot.lane.b32.xlu0 %v3849, 127
    %v4712 = vpop.permute.xlu0 %4711
    %4713 = vrot.lane.b32.xlu0 %v3853, 127
    %v4714 = vpop.permute.xlu0 %4713
    %4715 = vrot.lane.b32.xlu0 %v3857, 127
    %v4716 = vpop.permute.xlu0 %4715
    %4717 = vrot.lane.b32.xlu0 %v3861, 127
    %v4718 = vpop.permute.xlu0 %4717
    %4719 = vrot.lane.b32.xlu0 %v3850, 127
    %v4720 = vpop.permute.xlu0 %4719
    %4721 = vrot.lane.b32.xlu0 %v3854, 127
    %v4722 = vpop.permute.xlu0 %4721
    %4723 = vrot.lane.b32.xlu0 %v3858, 127
    %v4724 = vpop.permute.xlu0 %4723
    %4725 = vrot.lane.b32.xlu0 %v3862, 127
    %v4726 = vpop.permute.xlu0 %4725
    %v4727 = vsel %vm674, %v4712, %v4720
    %v4728 = vsel %vm674, %v4714, %v4722
    %v4729 = vsel %vm674, %v4716, %v4724
    %v4730 = vsel %vm674, %v4718, %v4726
    %v4731 = vsel %vm674, %v4704, %v4712
    %v4732 = vsel %vm674, %v4706, %v4714
    %v4733 = vsel %vm674, %v4708, %v4716
    %v4734 = vsel %vm674, %v4710, %v4718
    %v4735 = vsel %vm674, %v4696, %v4704
    %v4736 = vsel %vm674, %v4698, %v4706
    %v4737 = vsel %vm674, %v4700, %v4708
    %v4738 = vsel %vm674, %v4702, %v4710
    %v4739 = vsel %vm674, %v4720, %v4696
    %v4740 = vsel %vm674, %v4722, %v4698
    %v4741 = vsel %vm674, %v4724, %v4700
    %v4742 = vsel %vm674, %v4726, %v4702
    %v4744 = vsel %vm3915, %v4693, 0
    %v4747 = vsel %vm3915, %v4694, 0
    %4749 = vmatpush.msra.mxu0 0.0
    %4750 = vmatpush.msra.mxu0 0.0
    %4751 = vmatpush.msra.mxu0 0.0
    %4752 = vmatpush.msra.mxu0 0.0
    %4753 = vmatpush.msra.mxu0 0.0
    %4754 = vmatpush.msra.mxu0 0.0
    %4755 = vmatpush.msra.mxu0 0.0
    %4756 = vmatpush.msra.mxu0 0.0
    %4757 = vmatpush.msra.mxu0 0.0
    %4758 = vmatpush.msra.mxu0 0.0
    %4759 = vmatpush.msra.mxu0 0.0
    %4760 = vmatpush.msra.mxu0 0.0
    %4761 = vmatpush.msra.mxu0 %v4738
    %4762 = vmatpush.msra.mxu0 %v4737
    %4763 = vmatpush.msra.mxu0 %v4736
    %4764 = vmatpush.msra.mxu0 %v4735
    %4765 = vmatmul.f32.gmra.mxu0 %v4744
    %v4766 = vpop.f32.mrf.mxu0
    %v4767 = vadd.f32 0.0, %v4766
    %4768 = vmatmul.f32.gmra.mxu0 %v4747
    %v4769 = vpop.f32.mrf.mxu0
    %v4770 = vadd.f32 0.0, %v4769
    %4771 = vdwg.mxu0
    %4772 = vmatpush.msra.mxu0 0.0
    %4773 = vmatpush.msra.mxu0 0.0
    %4774 = vmatpush.msra.mxu0 0.0
    %4775 = vmatpush.msra.mxu0 0.0
    %4776 = vmatpush.msra.mxu0 0.0
    %4777 = vmatpush.msra.mxu0 0.0
    %4778 = vmatpush.msra.mxu0 0.0
    %4779 = vmatpush.msra.mxu0 0.0
    %4780 = vmatpush.msra.mxu0 0.0
    %4781 = vmatpush.msra.mxu0 0.0
    %4782 = vmatpush.msra.mxu0 0.0
    %4783 = vmatpush.msra.mxu0 0.0
    %4784 = vmatpush.msra.mxu0 %v4734
    %4785 = vmatpush.msra.mxu0 %v4733
    %4786 = vmatpush.msra.mxu0 %v4732
    %4787 = vmatpush.msra.mxu0 %v4731
    %4788 = vmatmul.f32.gmra.mxu0 %v4744
    %v4789 = vpop.f32.mrf.mxu0
    %v4790 = vadd.f32 0.0, %v4789
    %4791 = vmatmul.f32.gmra.mxu0 %v4747
    %v4792 = vpop.f32.mrf.mxu0
    %v4793 = vadd.f32 0.0, %v4792
    %4794 = vdwg.mxu0
    %4795 = vmatpush.msra.mxu0 0.0
    %4796 = vmatpush.msra.mxu0 0.0
    %4797 = vmatpush.msra.mxu0 0.0
    %4798 = vmatpush.msra.mxu0 0.0
    %4799 = vmatpush.msra.mxu0 0.0
    %4800 = vmatpush.msra.mxu0 0.0
    %4801 = vmatpush.msra.mxu0 0.0
    %4802 = vmatpush.msra.mxu0 0.0
    %4803 = vmatpush.msra.mxu0 0.0
    %4804 = vmatpush.msra.mxu0 0.0
    %4805 = vmatpush.msra.mxu0 0.0
    %4806 = vmatpush.msra.mxu0 0.0
    %4807 = vmatpush.msra.mxu0 %v4730
    %4808 = vmatpush.msra.mxu0 %v4729
    %4809 = vmatpush.msra.mxu0 %v4728
    %4810 = vmatpush.msra.mxu0 %v4727
    %4811 = vmatmul.f32.gmra.mxu0 %v4744
    %v4812 = vpop.f32.mrf.mxu0
    %v4813 = vadd.f32 0.0, %v4812
    %4814 = vmatmul.f32.gmra.mxu0 %v4747
    %v4815 = vpop.f32.mrf.mxu0
    %v4816 = vadd.f32 0.0, %v4815
    %4817 = vdwg.mxu0
    %4818 = vmatpush.msra.mxu0 0.0
    %4819 = vmatpush.msra.mxu0 0.0
    %4820 = vmatpush.msra.mxu0 0.0
    %4821 = vmatpush.msra.mxu0 0.0
    %4822 = vmatpush.msra.mxu0 0.0
    %4823 = vmatpush.msra.mxu0 0.0
    %4824 = vmatpush.msra.mxu0 0.0
    %4825 = vmatpush.msra.mxu0 0.0
    %4826 = vmatpush.msra.mxu0 0.0
    %4827 = vmatpush.msra.mxu0 0.0
    %4828 = vmatpush.msra.mxu0 0.0
    %4829 = vmatpush.msra.mxu0 0.0
    %4830 = vmatpush.msra.mxu0 %v4742
    %4831 = vmatpush.msra.mxu0 %v4741
    %4832 = vmatpush.msra.mxu0 %v4740
    %4833 = vmatpush.msra.mxu0 %v4739
    %4834 = vmatmul.f32.gmra.mxu0 %v4744
    %v4835 = vpop.f32.mrf.mxu0
    %v4836 = vadd.f32 0.0, %v4835
    %4837 = vmatmul.f32.gmra.mxu0 %v4747
    %v4838 = vpop.f32.mrf.mxu0
    %v4839 = vadd.f32 0.0, %v4838
    %4840 = vdwg.mxu0
    %v4841 = vadd.f32 %v4684, %v4767
    %v4842 = vadd.f32 %v4685, %v4790
    %v4843 = vadd.f32 %v4686, %v4813
    %v4844 = vadd.f32 %v4687, %v4836
    %v4845 = vadd.f32 %v4688, %v4770
    %v4846 = vadd.f32 %v4689, %v4793
    %v4847 = vadd.f32 %v4690, %v4816
    %v4848 = vadd.f32 %v4691, %v4839
    %s4849 = scalar_lea.vmem %s10, 96
    %v4850 = vld [vmem:[%s4849] sm:$0xff]
    %v4851 = vld [vmem:[%s4849 + $0x8] sm:$0xff]
    %4852 = vrot.lane.b32.xlu0 %v3847, 107
    %v4853 = vpop.permute.xlu0 %4852
    %4854 = vrot.lane.b32.xlu0 %v3851, 107
    %v4855 = vpop.permute.xlu0 %4854
    %4856 = vrot.lane.b32.xlu0 %v3855, 107
    %v4857 = vpop.permute.xlu0 %4856
    %4858 = vrot.lane.b32.xlu0 %v3859, 107
    %v4859 = vpop.permute.xlu0 %4858
    %4860 = vrot.lane.b32.xlu0 %v3848, 107
    %v4861 = vpop.permute.xlu0 %4860
    %4862 = vrot.lane.b32.xlu0 %v3852, 107
    %v4863 = vpop.permute.xlu0 %4862
    %4864 = vrot.lane.b32.xlu0 %v3856, 107
    %v4865 = vpop.permute.xlu0 %4864
    %4866 = vrot.lane.b32.xlu0 %v3860, 107
    %v4867 = vpop.permute.xlu0 %4866
    %4868 = vrot.lane.b32.xlu0 %v3849, 107
    %v4869 = vpop.permute.xlu0 %4868
    %4870 = vrot.lane.b32.xlu0 %v3853, 107
    %v4871 = vpop.permute.xlu0 %4870
    %4872 = vrot.lane.b32.xlu0 %v3857, 107
    %v4873 = vpop.permute.xlu0 %4872
    %4874 = vrot.lane.b32.xlu0 %v3861, 107
    %v4875 = vpop.permute.xlu0 %4874
    %4876 = vrot.lane.b32.xlu0 %v3850, 107
    %v4877 = vpop.permute.xlu0 %4876
    %4878 = vrot.lane.b32.xlu0 %v3854, 107
    %v4879 = vpop.permute.xlu0 %4878
    %4880 = vrot.lane.b32.xlu0 %v3858, 107
    %v4881 = vpop.permute.xlu0 %4880
    %4882 = vrot.lane.b32.xlu0 %v3862, 107
    %v4883 = vpop.permute.xlu0 %4882
    %v4884 = vsel %vm799, %v4869, %v4877
    %v4885 = vsel %vm799, %v4871, %v4879
    %v4886 = vsel %vm799, %v4873, %v4881
    %v4887 = vsel %vm799, %v4875, %v4883
    %v4888 = vsel %vm799, %v4861, %v4869
    %v4889 = vsel %vm799, %v4863, %v4871
    %v4890 = vsel %vm799, %v4865, %v4873
    %v4891 = vsel %vm799, %v4867, %v4875
    %v4892 = vsel %vm799, %v4853, %v4861
    %v4893 = vsel %vm799, %v4855, %v4863
    %v4894 = vsel %vm799, %v4857, %v4865
    %v4895 = vsel %vm799, %v4859, %v4867
    %v4896 = vsel %vm799, %v4877, %v4853
    %v4897 = vsel %vm799, %v4879, %v4855
    %v4898 = vsel %vm799, %v4881, %v4857
    %v4899 = vsel %vm799, %v4883, %v4859
    %v4901 = vsel %vm3915, %v4850, 0
    %v4904 = vsel %vm3915, %v4851, 0
    %4906 = vmatpush.msra.mxu0 0.0
    %4907 = vmatpush.msra.mxu0 0.0
    %4908 = vmatpush.msra.mxu0 0.0
    %4909 = vmatpush.msra.mxu0 0.0
    %4910 = vmatpush.msra.mxu0 0.0
    %4911 = vmatpush.msra.mxu0 0.0
    %4912 = vmatpush.msra.mxu0 0.0
    %4913 = vmatpush.msra.mxu0 0.0
    %4914 = vmatpush.msra.mxu0 0.0
    %4915 = vmatpush.msra.mxu0 0.0
    %4916 = vmatpush.msra.mxu0 0.0
    %4917 = vmatpush.msra.mxu0 0.0
    %4918 = vmatpush.msra.mxu0 %v4895
    %4919 = vmatpush.msra.mxu0 %v4894
    %4920 = vmatpush.msra.mxu0 %v4893
    %4921 = vmatpush.msra.mxu0 %v4892
    %4922 = vmatmul.f32.gmra.mxu0 %v4901
    %v4923 = vpop.f32.mrf.mxu0
    %v4924 = vadd.f32 0.0, %v4923
    %4925 = vmatmul.f32.gmra.mxu0 %v4904
    %v4926 = vpop.f32.mrf.mxu0
    %v4927 = vadd.f32 0.0, %v4926
    %4928 = vdwg.mxu0
    %4929 = vmatpush.msra.mxu0 0.0
    %4930 = vmatpush.msra.mxu0 0.0
    %4931 = vmatpush.msra.mxu0 0.0
    %4932 = vmatpush.msra.mxu0 0.0
    %4933 = vmatpush.msra.mxu0 0.0
    %4934 = vmatpush.msra.mxu0 0.0
    %4935 = vmatpush.msra.mxu0 0.0
    %4936 = vmatpush.msra.mxu0 0.0
    %4937 = vmatpush.msra.mxu0 0.0
    %4938 = vmatpush.msra.mxu0 0.0
    %4939 = vmatpush.msra.mxu0 0.0
    %4940 = vmatpush.msra.mxu0 0.0
    %4941 = vmatpush.msra.mxu0 %v4891
    %4942 = vmatpush.msra.mxu0 %v4890
    %4943 = vmatpush.msra.mxu0 %v4889
    %4944 = vmatpush.msra.mxu0 %v4888
    %4945 = vmatmul.f32.gmra.mxu0 %v4901
    %v4946 = vpop.f32.mrf.mxu0
    %v4947 = vadd.f32 0.0, %v4946
    %4948 = vmatmul.f32.gmra.mxu0 %v4904
    %v4949 = vpop.f32.mrf.mxu0
    %v4950 = vadd.f32 0.0, %v4949
    %4951 = vdwg.mxu0
    %4952 = vmatpush.msra.mxu0 0.0
    %4953 = vmatpush.msra.mxu0 0.0
    %4954 = vmatpush.msra.mxu0 0.0
    %4955 = vmatpush.msra.mxu0 0.0
    %4956 = vmatpush.msra.mxu0 0.0
    %4957 = vmatpush.msra.mxu0 0.0
    %4958 = vmatpush.msra.mxu0 0.0
    %4959 = vmatpush.msra.mxu0 0.0
    %4960 = vmatpush.msra.mxu0 0.0
    %4961 = vmatpush.msra.mxu0 0.0
    %4962 = vmatpush.msra.mxu0 0.0
    %4963 = vmatpush.msra.mxu0 0.0
    %4964 = vmatpush.msra.mxu0 %v4887
    %4965 = vmatpush.msra.mxu0 %v4886
    %4966 = vmatpush.msra.mxu0 %v4885
    %4967 = vmatpush.msra.mxu0 %v4884
    %4968 = vmatmul.f32.gmra.mxu0 %v4901
    %v4969 = vpop.f32.mrf.mxu0
    %v4970 = vadd.f32 0.0, %v4969
    %4971 = vmatmul.f32.gmra.mxu0 %v4904
    %v4972 = vpop.f32.mrf.mxu0
    %v4973 = vadd.f32 0.0, %v4972
    %4974 = vdwg.mxu0
    %4975 = vmatpush.msra.mxu0 0.0
    %4976 = vmatpush.msra.mxu0 0.0
    %4977 = vmatpush.msra.mxu0 0.0
    %4978 = vmatpush.msra.mxu0 0.0
    %4979 = vmatpush.msra.mxu0 0.0
    %4980 = vmatpush.msra.mxu0 0.0
    %4981 = vmatpush.msra.mxu0 0.0
    %4982 = vmatpush.msra.mxu0 0.0
    %4983 = vmatpush.msra.mxu0 0.0
    %4984 = vmatpush.msra.mxu0 0.0
    %4985 = vmatpush.msra.mxu0 0.0
    %4986 = vmatpush.msra.mxu0 0.0
    %4987 = vmatpush.msra.mxu0 %v4899
    %4988 = vmatpush.msra.mxu0 %v4898
    %4989 = vmatpush.msra.mxu0 %v4897
    %4990 = vmatpush.msra.mxu0 %v4896
    %4991 = vmatmul.f32.gmra.mxu0 %v4901
    %v4992 = vpop.f32.mrf.mxu0
    %v4993 = vadd.f32 0.0, %v4992
    %4994 = vmatmul.f32.gmra.mxu0 %v4904
    %v4995 = vpop.f32.mrf.mxu0
    %v4996 = vadd.f32 0.0, %v4995
    %4997 = vdwg.mxu0
    %v4998 = vadd.f32 %v4841, %v4924
    %v4999 = vadd.f32 %v4842, %v4947
    %v5000 = vadd.f32 %v4843, %v4970
    %v5001 = vadd.f32 %v4844, %v4993
    %v5002 = vadd.f32 %v4845, %v4927
    %v5003 = vadd.f32 %v4846, %v4950
    %v5004 = vadd.f32 %v4847, %v4973
    %v5005 = vadd.f32 %v4848, %v4996
    %s5006 = scalar_lea.vmem %s10, 112
    %v5007 = vld [vmem:[%s5006] sm:$0xff]
    %v5008 = vld [vmem:[%s5006 + $0x8] sm:$0xff]
    %5009 = vrot.lane.b32.xlu0 %v3847, 106
    %v5010 = vpop.permute.xlu0 %5009
    %5011 = vrot.lane.b32.xlu0 %v3851, 106
    %v5012 = vpop.permute.xlu0 %5011
    %5013 = vrot.lane.b32.xlu0 %v3855, 106
    %v5014 = vpop.permute.xlu0 %5013
    %5015 = vrot.lane.b32.xlu0 %v3859, 106
    %v5016 = vpop.permute.xlu0 %5015
    %5017 = vrot.lane.b32.xlu0 %v3848, 106
    %v5018 = vpop.permute.xlu0 %5017
    %5019 = vrot.lane.b32.xlu0 %v3852, 106
    %v5020 = vpop.permute.xlu0 %5019
    %5021 = vrot.lane.b32.xlu0 %v3856, 106
    %v5022 = vpop.permute.xlu0 %5021
    %5023 = vrot.lane.b32.xlu0 %v3860, 106
    %v5024 = vpop.permute.xlu0 %5023
    %5025 = vrot.lane.b32.xlu0 %v3849, 106
    %v5026 = vpop.permute.xlu0 %5025
    %5027 = vrot.lane.b32.xlu0 %v3853, 106
    %v5028 = vpop.permute.xlu0 %5027
    %5029 = vrot.lane.b32.xlu0 %v3857, 106
    %v5030 = vpop.permute.xlu0 %5029
    %5031 = vrot.lane.b32.xlu0 %v3861, 106
    %v5032 = vpop.permute.xlu0 %5031
    %5033 = vrot.lane.b32.xlu0 %v3850, 106
    %v5034 = vpop.permute.xlu0 %5033
    %5035 = vrot.lane.b32.xlu0 %v3854, 106
    %v5036 = vpop.permute.xlu0 %5035
    %5037 = vrot.lane.b32.xlu0 %v3858, 106
    %v5038 = vpop.permute.xlu0 %5037
    %5039 = vrot.lane.b32.xlu0 %v3862, 106
    %v5040 = vpop.permute.xlu0 %5039
    %v5041 = vsel %vm824, %v5026, %v5034
    %v5042 = vsel %vm824, %v5028, %v5036
    %v5043 = vsel %vm824, %v5030, %v5038
    %v5044 = vsel %vm824, %v5032, %v5040
    %v5045 = vsel %vm824, %v5018, %v5026
    %v5046 = vsel %vm824, %v5020, %v5028
    %v5047 = vsel %vm824, %v5022, %v5030
    %v5048 = vsel %vm824, %v5024, %v5032
    %v5049 = vsel %vm824, %v5010, %v5018
    %v5050 = vsel %vm824, %v5012, %v5020
    %v5051 = vsel %vm824, %v5014, %v5022
    %v5052 = vsel %vm824, %v5016, %v5024
    %v5053 = vsel %vm824, %v5034, %v5010
    %v5054 = vsel %vm824, %v5036, %v5012
    %v5055 = vsel %vm824, %v5038, %v5014
    %v5056 = vsel %vm824, %v5040, %v5016
    %v5058 = vsel %vm3915, %v5007, 0
    %v5061 = vsel %vm3915, %v5008, 0
    %5063 = vmatpush.msra.mxu0 0.0
    %5064 = vmatpush.msra.mxu0 0.0
    %5065 = vmatpush.msra.mxu0 0.0
    %5066 = vmatpush.msra.mxu0 0.0
    %5067 = vmatpush.msra.mxu0 0.0
    %5068 = vmatpush.msra.mxu0 0.0
    %5069 = vmatpush.msra.mxu0 0.0
    %5070 = vmatpush.msra.mxu0 0.0
    %5071 = vmatpush.msra.mxu0 0.0
    %5072 = vmatpush.msra.mxu0 0.0
    %5073 = vmatpush.msra.mxu0 0.0
    %5074 = vmatpush.msra.mxu0 0.0
    %5075 = vmatpush.msra.mxu0 %v5052
    %5076 = vmatpush.msra.mxu0 %v5051
    %5077 = vmatpush.msra.mxu0 %v5050
    %5078 = vmatpush.msra.mxu0 %v5049
    %5079 = vmatmul.f32.gmra.mxu0 %v5058
    %v5080 = vpop.f32.mrf.mxu0
    %v5081 = vadd.f32 0.0, %v5080
    %5082 = vmatmul.f32.gmra.mxu0 %v5061
    %v5083 = vpop.f32.mrf.mxu0
    %v5084 = vadd.f32 0.0, %v5083
    %5085 = vdwg.mxu0
    %5086 = vmatpush.msra.mxu0 0.0
    %5087 = vmatpush.msra.mxu0 0.0
    %5088 = vmatpush.msra.mxu0 0.0
    %5089 = vmatpush.msra.mxu0 0.0
    %5090 = vmatpush.msra.mxu0 0.0
    %5091 = vmatpush.msra.mxu0 0.0
    %5092 = vmatpush.msra.mxu0 0.0
    %5093 = vmatpush.msra.mxu0 0.0
    %5094 = vmatpush.msra.mxu0 0.0
    %5095 = vmatpush.msra.mxu0 0.0
    %5096 = vmatpush.msra.mxu0 0.0
    %5097 = vmatpush.msra.mxu0 0.0
    %5098 = vmatpush.msra.mxu0 %v5048
    %5099 = vmatpush.msra.mxu0 %v5047
    %5100 = vmatpush.msra.mxu0 %v5046
    %5101 = vmatpush.msra.mxu0 %v5045
    %5102 = vmatmul.f32.gmra.mxu0 %v5058
    %v5103 = vpop.f32.mrf.mxu0
    %v5104 = vadd.f32 0.0, %v5103
    %5105 = vmatmul.f32.gmra.mxu0 %v5061
    %v5106 = vpop.f32.mrf.mxu0
    %v5107 = vadd.f32 0.0, %v5106
    %5108 = vdwg.mxu0
    %5109 = vmatpush.msra.mxu0 0.0
    %5110 = vmatpush.msra.mxu0 0.0
    %5111 = vmatpush.msra.mxu0 0.0
    %5112 = vmatpush.msra.mxu0 0.0
    %5113 = vmatpush.msra.mxu0 0.0
    %5114 = vmatpush.msra.mxu0 0.0
    %5115 = vmatpush.msra.mxu0 0.0
    %5116 = vmatpush.msra.mxu0 0.0
    %5117 = vmatpush.msra.mxu0 0.0
    %5118 = vmatpush.msra.mxu0 0.0
    %5119 = vmatpush.msra.mxu0 0.0
    %5120 = vmatpush.msra.mxu0 0.0
    %5121 = vmatpush.msra.mxu0 %v5044
    %5122 = vmatpush.msra.mxu0 %v5043
    %5123 = vmatpush.msra.mxu0 %v5042
    %5124 = vmatpush.msra.mxu0 %v5041
    %5125 = vmatmul.f32.gmra.mxu0 %v5058
    %v5126 = vpop.f32.mrf.mxu0
    %v5127 = vadd.f32 0.0, %v5126
    %5128 = vmatmul.f32.gmra.mxu0 %v5061
    %v5129 = vpop.f32.mrf.mxu0
    %v5130 = vadd.f32 0.0, %v5129
    %5131 = vdwg.mxu0
    %5132 = vmatpush.msra.mxu0 0.0
    %5133 = vmatpush.msra.mxu0 0.0
    %5134 = vmatpush.msra.mxu0 0.0
    %5135 = vmatpush.msra.mxu0 0.0
    %5136 = vmatpush.msra.mxu0 0.0
    %5137 = vmatpush.msra.mxu0 0.0
    %5138 = vmatpush.msra.mxu0 0.0
    %5139 = vmatpush.msra.mxu0 0.0
    %5140 = vmatpush.msra.mxu0 0.0
    %5141 = vmatpush.msra.mxu0 0.0
    %5142 = vmatpush.msra.mxu0 0.0
    %5143 = vmatpush.msra.mxu0 0.0
    %5144 = vmatpush.msra.mxu0 %v5056
    %5145 = vmatpush.msra.mxu0 %v5055
    %5146 = vmatpush.msra.mxu0 %v5054
    %5147 = vmatpush.msra.mxu0 %v5053
    %5148 = vmatmul.f32.gmra.mxu0 %v5058
    %v5149 = vpop.f32.mrf.mxu0
    %v5150 = vadd.f32 0.0, %v5149
    %5151 = vmatmul.f32.gmra.mxu0 %v5061
    %v5152 = vpop.f32.mrf.mxu0
    %v5153 = vadd.f32 0.0, %v5152
    %5154 = vdwg.mxu0
    %v5155 = vadd.f32 %v4998, %v5081
    %v5156 = vadd.f32 %v4999, %v5104
    %v5157 = vadd.f32 %v5000, %v5127
    %v5158 = vadd.f32 %v5001, %v5150
    %v5159 = vadd.f32 %v5002, %v5084
    %v5160 = vadd.f32 %v5003, %v5107
    %v5161 = vadd.f32 %v5004, %v5130
    %v5162 = vadd.f32 %v5005, %v5153
    %s5163 = scalar_lea.vmem %s10, 128
    %v5164 = vld [vmem:[%s5163] sm:$0xff]
    %v5165 = vld [vmem:[%s5163 + $0x8] sm:$0xff]
    %5166 = vrot.lane.b32.xlu0 %v3847, 105
    %v5167 = vpop.permute.xlu0 %5166
    %5168 = vrot.lane.b32.xlu0 %v3851, 105
    %v5169 = vpop.permute.xlu0 %5168
    %5170 = vrot.lane.b32.xlu0 %v3855, 105
    %v5171 = vpop.permute.xlu0 %5170
    %5172 = vrot.lane.b32.xlu0 %v3859, 105
    %v5173 = vpop.permute.xlu0 %5172
    %5174 = vrot.lane.b32.xlu0 %v3848, 105
    %v5175 = vpop.permute.xlu0 %5174
    %5176 = vrot.lane.b32.xlu0 %v3852, 105
    %v5177 = vpop.permute.xlu0 %5176
    %5178 = vrot.lane.b32.xlu0 %v3856, 105
    %v5179 = vpop.permute.xlu0 %5178
    %5180 = vrot.lane.b32.xlu0 %v3860, 105
    %v5181 = vpop.permute.xlu0 %5180
    %5182 = vrot.lane.b32.xlu0 %v3849, 105
    %v5183 = vpop.permute.xlu0 %5182
    %5184 = vrot.lane.b32.xlu0 %v3853, 105
    %v5185 = vpop.permute.xlu0 %5184
    %5186 = vrot.lane.b32.xlu0 %v3857, 105
    %v5187 = vpop.permute.xlu0 %5186
    %5188 = vrot.lane.b32.xlu0 %v3861, 105
    %v5189 = vpop.permute.xlu0 %5188
    %5190 = vrot.lane.b32.xlu0 %v3850, 105
    %v5191 = vpop.permute.xlu0 %5190
    %5192 = vrot.lane.b32.xlu0 %v3854, 105
    %v5193 = vpop.permute.xlu0 %5192
    %5194 = vrot.lane.b32.xlu0 %v3858, 105
    %v5195 = vpop.permute.xlu0 %5194
    %5196 = vrot.lane.b32.xlu0 %v3862, 105
    %v5197 = vpop.permute.xlu0 %5196
    %v5198 = vsel %vm849, %v5183, %v5191
    %v5199 = vsel %vm849, %v5185, %v5193
    %v5200 = vsel %vm849, %v5187, %v5195
    %v5201 = vsel %vm849, %v5189, %v5197
    %v5202 = vsel %vm849, %v5175, %v5183
    %v5203 = vsel %vm849, %v5177, %v5185
    %v5204 = vsel %vm849, %v5179, %v5187
    %v5205 = vsel %vm849, %v5181, %v5189
    %v5206 = vsel %vm849, %v5167, %v5175
    %v5207 = vsel %vm849, %v5169, %v5177
    %v5208 = vsel %vm849, %v5171, %v5179
    %v5209 = vsel %vm849, %v5173, %v5181
    %v5210 = vsel %vm849, %v5191, %v5167
    %v5211 = vsel %vm849, %v5193, %v5169
    %v5212 = vsel %vm849, %v5195, %v5171
    %v5213 = vsel %vm849, %v5197, %v5173
    %v5215 = vsel %vm3915, %v5164, 0
    %v5218 = vsel %vm3915, %v5165, 0
    %5220 = vmatpush.msra.mxu0 0.0
    %5221 = vmatpush.msra.mxu0 0.0
    %5222 = vmatpush.msra.mxu0 0.0
    %5223 = vmatpush.msra.mxu0 0.0
    %5224 = vmatpush.msra.mxu0 0.0
    %5225 = vmatpush.msra.mxu0 0.0
    %5226 = vmatpush.msra.mxu0 0.0
    %5227 = vmatpush.msra.mxu0 0.0
    %5228 = vmatpush.msra.mxu0 0.0
    %5229 = vmatpush.msra.mxu0 0.0
    %5230 = vmatpush.msra.mxu0 0.0
    %5231 = vmatpush.msra.mxu0 0.0
    %5232 = vmatpush.msra.mxu0 %v5209
    %5233 = vmatpush.msra.mxu0 %v5208
    %5234 = vmatpush.msra.mxu0 %v5207
    %5235 = vmatpush.msra.mxu0 %v5206
    %5236 = vmatmul.f32.gmra.mxu0 %v5215
    %v5237 = vpop.f32.mrf.mxu0
    %v5238 = vadd.f32 0.0, %v5237
    %5239 = vmatmul.f32.gmra.mxu0 %v5218
    %v5240 = vpop.f32.mrf.mxu0
    %v5241 = vadd.f32 0.0, %v5240
    %5242 = vdwg.mxu0
    %5243 = vmatpush.msra.mxu0 0.0
    %5244 = vmatpush.msra.mxu0 0.0
    %5245 = vmatpush.msra.mxu0 0.0
    %5246 = vmatpush.msra.mxu0 0.0
    %5247 = vmatpush.msra.mxu0 0.0
    %5248 = vmatpush.msra.mxu0 0.0
    %5249 = vmatpush.msra.mxu0 0.0
    %5250 = vmatpush.msra.mxu0 0.0
    %5251 = vmatpush.msra.mxu0 0.0
    %5252 = vmatpush.msra.mxu0 0.0
    %5253 = vmatpush.msra.mxu0 0.0
    %5254 = vmatpush.msra.mxu0 0.0
    %5255 = vmatpush.msra.mxu0 %v5205
    %5256 = vmatpush.msra.mxu0 %v5204
    %5257 = vmatpush.msra.mxu0 %v5203
    %5258 = vmatpush.msra.mxu0 %v5202
    %5259 = vmatmul.f32.gmra.mxu0 %v5215
    %v5260 = vpop.f32.mrf.mxu0
    %v5261 = vadd.f32 0.0, %v5260
    %5262 = vmatmul.f32.gmra.mxu0 %v5218
    %v5263 = vpop.f32.mrf.mxu0
    %v5264 = vadd.f32 0.0, %v5263
    %5265 = vdwg.mxu0
    %5266 = vmatpush.msra.mxu0 0.0
    %5267 = vmatpush.msra.mxu0 0.0
    %5268 = vmatpush.msra.mxu0 0.0
    %5269 = vmatpush.msra.mxu0 0.0
    %5270 = vmatpush.msra.mxu0 0.0
    %5271 = vmatpush.msra.mxu0 0.0
    %5272 = vmatpush.msra.mxu0 0.0
    %5273 = vmatpush.msra.mxu0 0.0
    %5274 = vmatpush.msra.mxu0 0.0
    %5275 = vmatpush.msra.mxu0 0.0
    %5276 = vmatpush.msra.mxu0 0.0
    %5277 = vmatpush.msra.mxu0 0.0
    %5278 = vmatpush.msra.mxu0 %v5201
    %5279 = vmatpush.msra.mxu0 %v5200
    %5280 = vmatpush.msra.mxu0 %v5199
    %5281 = vmatpush.msra.mxu0 %v5198
    %5282 = vmatmul.f32.gmra.mxu0 %v5215
    %v5283 = vpop.f32.mrf.mxu0
    %v5284 = vadd.f32 0.0, %v5283
    %5285 = vmatmul.f32.gmra.mxu0 %v5218
    %v5286 = vpop.f32.mrf.mxu0
    %v5287 = vadd.f32 0.0, %v5286
    %5288 = vdwg.mxu0
    %5289 = vmatpush.msra.mxu0 0.0
    %5290 = vmatpush.msra.mxu0 0.0
    %5291 = vmatpush.msra.mxu0 0.0
    %5292 = vmatpush.msra.mxu0 0.0
    %5293 = vmatpush.msra.mxu0 0.0
    %5294 = vmatpush.msra.mxu0 0.0
    %5295 = vmatpush.msra.mxu0 0.0
    %5296 = vmatpush.msra.mxu0 0.0
    %5297 = vmatpush.msra.mxu0 0.0
    %5298 = vmatpush.msra.mxu0 0.0
    %5299 = vmatpush.msra.mxu0 0.0
    %5300 = vmatpush.msra.mxu0 0.0
    %5301 = vmatpush.msra.mxu0 %v5213
    %5302 = vmatpush.msra.mxu0 %v5212
    %5303 = vmatpush.msra.mxu0 %v5211
    %5304 = vmatpush.msra.mxu0 %v5210
    %5305 = vmatmul.f32.gmra.mxu0 %v5215
    %v5306 = vpop.f32.mrf.mxu0
    %v5307 = vadd.f32 0.0, %v5306
    %5308 = vmatmul.f32.gmra.mxu0 %v5218
    %v5309 = vpop.f32.mrf.mxu0
    %v5310 = vadd.f32 0.0, %v5309
    %5311 = vdwg.mxu0
    %v5312 = vadd.f32 %v5155, %v5238
    %v5313 = vadd.f32 %v5156, %v5261
    %v5314 = vadd.f32 %v5157, %v5284
    %v5315 = vadd.f32 %v5158, %v5307
    %v5316 = vadd.f32 %v5159, %v5241
    %v5317 = vadd.f32 %v5160, %v5264
    %v5318 = vadd.f32 %v5161, %v5287
    %v5319 = vadd.f32 %v5162, %v5310
    %v5320 = vld [vmem:[%s12] sm:$0xff]
    %v5321 = vld [vmem:[%s12 + $0x8] sm:$0xff]
    %5323 = vset.pattern.permute.xlu0 0
    %5324 = vperm.xlu0 %5323, %v5320
    %v5325 = vpop.permute.xlu0 %5324
    %5328 = vset.pattern.permute.xlu0 0
    %5329 = vperm.xlu0 %5328, %v5321
    %v5330 = vpop.permute.xlu0 %5329
    %v5332 = vadd.f32 %v5312, %v5325
    %v5333 = vadd.f32 %v5313, %v5325
    %v5334 = vadd.f32 %v5314, %v5325
    %v5335 = vadd.f32 %v5315, %v5325
    %v5336 = vadd.f32 %v5316, %v5330
    %v5337 = vadd.f32 %v5317, %v5330
    %v5338 = vadd.f32 %v5318, %v5330
    %v5339 = vadd.f32 %v5319, %v5330
    %5340 = vst [vmem:[#allocation2] sm:$0xff] %v5332
    %5341 = vst [vmem:[#allocation2 + $0x8] sm:$0xff] %v5333
    %5342 = vst [vmem:[#allocation2 + $0x10] sm:$0xff] %v5334
    %5343 = vst [vmem:[#allocation2 + $0x18] sm:$0xff] %v5335
    %5344 = vst [vmem:[#allocation2 + $0x20] sm:$0xff] %v5336
    %5345 = vst [vmem:[#allocation2 + $0x28] sm:$0xff] %v5337
    %5346 = vst [vmem:[#allocation2 + $0x30] sm:$0xff] %v5338
    %5347 = vst [vmem:[#allocation2 + $0x38] sm:$0xff] %v5339
    // Predicated region
    $region54: #{tpu_custom_call.1} parent=1 // pred_check
      _
    $region55: #{tpu_custom_call.1} parent=1 // pred_check_branch
      %5349 = sbr.rel (0) target = $region57
    $region56: #{tpu_custom_call.1} parent=1 // pred_region
      %5351 = vsyncadd [#allocation3], 0
      %s5352 = sshll.u32 [#allocation2], 4
      %s5353 = int_to_ptr.vmem [resolvable:$true] %s5352
      %s5354 = sshll.u32 %s13, 4
      %s5355 = int_to_ptr.hbm [resolvable:$true] %s5354
      %5360 = dma.vmem_to_hbm [thread:$0]  %s5353, 1024, %s5355, [#allocation3], 512, 512, 32
    $region57: #{tpu_custom_call.1} parent=1 // pred_fallthru
      _
    // Predicated region
    $region58: #{tpu_custom_call.1} parent=1 // pred_check
      _
    $region59: #{tpu_custom_call.1} parent=1 // pred_check_branch
      %5362 = sbr.rel (0) target = $region61
    $region60: #{tpu_custom_call.1} parent=1 // pred_region
      %5364 = dma.done [#allocation3], 1024
    $region61: #{tpu_custom_call.1} parent=1 // pred_fallthru
      _
    %5365 = vsyncpa [#allocation3], 1

</llo_original>
